<compile_context>
chip_gen: v7x
topology: tpu7x:2x2x1
jax: 0.10.0
libtpu: 0.0.40
codegen_flags: <defaults>
</compile_context>

<pallas_src>
import numpy as np

import jax
import jax.numpy as jnp
from jax.experimental import pallas as pl
from jax.experimental.pallas import tpu as pltpu


# ------------------------------ layer geometry ------------------------------ #

def _layer_defs(number_of_classes, features_d, kernel_size):
    fd = features_d
    return [
        # (k, stride, pad, Cin, Cout, kind)
        (4, 2, 1, number_of_classes, fd, "bias_leaky"),
        (4, kernel_size, 1, fd, 2 * fd, "bn_leaky"),
        (kernel_size, 2, 1, 2 * fd, 4 * fd, "bn_leaky"),
        (kernel_size, 2, 1, 4 * fd, 8 * fd, "bn_leaky"),
        (2, 2, 0, 8 * fd, 1, "bias_sigmoid"),
    ]


def _conv_out(size, k, s, p):
    return (size + 2 * p - k) // s + 1


# ------------------------ parameter / operand packing ------------------------ #

def _row_select(k, s, p, H, Ho, N):
    """R[kh]: (N*Ho, N*H) 0/1 matrix.  (R[kh] @ X) picks input row oh*s+kh-p for
    every (batch, output-row); out-of-range rows (height padding) are all-zero."""
    R = np.zeros((k, N * Ho, N * H), np.float32)
    for kh in range(k):
        for n in range(N):
            for oh in range(Ho):
                h = oh * s + kh - p
                if 0 <= h < H:
                    R[kh, n * Ho + oh, n * H + h] = 1.0
    return R


def _banded_weight(w, s, p, W, Wo):
    """w: (k,k,Cin,Cout).  S[kh]: (W*Cin, Wo*Cout) banded matrix folding the kw
    taps, the channel mixing and the width zero-padding into one contraction."""
    k, _, cin, cout = w.shape
    S = np.zeros((k, W * cin, Wo * cout), np.float32)
    for kh in range(k):
        for ow in range(Wo):
            for kw in range(k):
                wc = ow * s + kw - p
                if 0 <= wc < W:
                    S[kh, wc * cin:(wc + 1) * cin, ow * cout:(ow + 1) * cout] = w[kh, kw]
    return S


def init_params(key, number_of_classes, features_d, kernel_size):
    defs = _layer_defs(number_of_classes, features_d, kernel_size)
    keys = jax.random.split(key, 3 * len(defs))
    params = []
    for i, (k, s, p, cin, cout, kind) in enumerate(defs):
        kw_, kb_, kg_ = keys[3 * i], keys[3 * i + 1], keys[3 * i + 2]
        layer = {"w": 0.05 * jax.random.normal(kw_, (k, k, cin, cout), jnp.float32)}
        if kind == "bn_leaky":
            layer["gamma"] = 1.0 + 0.1 * jax.random.normal(kg_, (1, cout), jnp.float32)
            layer["beta"] = 0.1 * jax.random.normal(kb_, (1, cout), jnp.float32)
        else:
            layer["b"] = 0.05 * jax.random.normal(kb_, (1, cout), jnp.float32)
        params.append(layer)
    return params


# --------------------------------- builder --------------------------------- #

def build_forward(number_of_classes, features_d, kernel_size, batch, height, width, params):
    defs = _layer_defs(number_of_classes, features_d, kernel_size)

    cfgs = []
    H, W = height, width
    for (k, s, p, cin, cout, kind) in defs:
        Ho, Wo = _conv_out(H, k, s, p), _conv_out(W, k, s, p)
        cfgs.append(dict(k=k, s=s, p=p, cin=cin, cout=cout, kind=kind,
                         H=H, W=W, Ho=Ho, Wo=Wo))
        H, W = Ho, Wo
    assert H == 1 and W == 1, (H, W)

    # One-time weight-side packing (outside the hot path).
    ops = []
    for cfg, layer in zip(cfgs, params):
        R = _row_select(cfg["k"], cfg["s"], cfg["p"], cfg["H"], cfg["Ho"], batch)
        S = _banded_weight(np.asarray(layer["w"]), cfg["s"], cfg["p"], cfg["W"], cfg["Wo"])
        ops += [jnp.asarray(R), jnp.asarray(S)]
        if cfg["kind"] == "bn_leaky":
            # G: (Wo*Cout, Cout) channel-grouping matrix; Gt broadcasts back to lanes.
            G = np.tile(np.eye(cfg["cout"], dtype=np.float32), (cfg["Wo"], 1))
            ops += [jnp.asarray(G), jnp.asarray(np.ascontiguousarray(G.T)),
                    layer["gamma"], layer["beta"]]
        else:
            # bias tiled once to the lane layout (1, Wo*Cout).
            ops.append(jnp.tile(layer["b"], (1, cfg["Wo"])))
    operands = tuple(ops)

    def leaky(z):
        return jnp.where(z > 0, z, 0.2 * z)

    def fused_kernel(*refs):
        o_ref = refs[-1]
        it = iter(refs[:-1])
        x = next(it)[...]                                   # (N*H0, W0*C0), lane-dense

        def conv(x, r_ref, s_ref, k):
            acc = None
            for kh in range(k):                             # static unroll, k <= 4
                rows = jnp.dot(r_ref[kh], x, preferred_element_type=jnp.float32)
                tap = jnp.dot(rows, s_ref[kh], preferred_element_type=jnp.float32)
                acc = tap if acc is None else acc + tap
            return acc

        for cfg in cfgs:
            r_ref = next(it)
            s_ref = next(it)
            y = conv(x, r_ref, s_ref, cfg["k"])             # (N*Ho, Wo*Cout)
            if cfg["kind"] == "bias_leaky":
                x = leaky(y + next(it)[...])
            elif cfg["kind"] == "bias_sigmoid":
                x = jax.nn.sigmoid(y + next(it)[...])
            else:                                           # bn_leaky (training-mode stats)
                G = next(it)[...]
                Gt = next(it)[...]
                gamma_c = next(it)[...]
                beta_c = next(it)[...]
                inv_n = 1.0 / float(batch * cfg["Ho"] * cfg["Wo"])
                colsum = jnp.sum(y, axis=0, keepdims=True)             # (1, Wo*Cout)
                colsq = jnp.sum(y * y, axis=0, keepdims=True)          # single pass sums
                mean_c = jnp.dot(colsum, G, preferred_element_type=jnp.float32) * inv_n
                ex2_c = jnp.dot(colsq, G, preferred_element_type=jnp.float32) * inv_n
                var_c = jnp.maximum(ex2_c - mean_c * mean_c, 0.0)      # biased variance
                scale_c = gamma_c * jax.lax.rsqrt(var_c + 1e-5)
                shift_c = beta_c - mean_c * scale_c
                scale_l = jnp.dot(scale_c, Gt, preferred_element_type=jnp.float32)
                shift_l = jnp.dot(shift_c, Gt, preferred_element_type=jnp.float32)
                x = leaky(y * scale_l + shift_l)

        o_ref[...] = x                                      # (N, 1)

    vmem = pl.BlockSpec(memory_space=pltpu.MemorySpace.VMEM)
    fused = pl.pallas_call(
        fused_kernel,
        out_shape=jax.ShapeDtypeStruct((batch, 1), jnp.float32),
        in_specs=[vmem] * (1 + len(operands)),
        out_specs=vmem,
    )

    @jax.jit
    def forward(x_nchw, packed):
        # NCHW -> lane-dense (N*H, W*C) slab; single cheap layout op at the boundary.
        x = jnp.transpose(x_nchw, (0, 2, 3, 1)).astype(jnp.float32)
        x = x.reshape(batch * height, width * number_of_classes)
        out = fused(x, *packed)
        return out.reshape(batch, 1, 1, 1)

    return forward, operands


# ----------------------------------- main ----------------------------------- #

if __name__ == "__main__":
    number_of_classes, features_d, kernel_size = 3, 8, 4
    batch, height, width = 2, 64, 64

    key = jax.random.PRNGKey(0)
    kx, kp = jax.random.split(key)

    x = jax.random.normal(kx, (batch, number_of_classes, height, width), jnp.float32)
    params = init_params(kp, number_of_classes, features_d, kernel_size)

    forward, packed = build_forward(number_of_classes, features_d, kernel_size,
                                    batch, height, width, params)

    out = jax.block_until_ready(forward(x, packed))

    assert out.shape == (batch, 1, 1, 1), out.shape
    assert bool(jnp.all((out >= 0.0) & (out <= 1.0)))
    print("KERNEL_OK")
</pallas_src>

<mosaic_0001>
module attributes {stable_mosaic.version = 11 : i64} {
  func.func @fused_kernel(%arg0: memref<128x192xf32, #tpu.memory_space<vmem>>, %arg1: memref<4x64x128xf32, #tpu.memory_space<vmem>>, %arg2: memref<4x192x256xf32, #tpu.memory_space<vmem>>, %arg3: memref<1x256xf32, #tpu.memory_space<vmem>>, %arg4: memref<4x16x64xf32, #tpu.memory_space<vmem>>, %arg5: memref<4x256x128xf32, #tpu.memory_space<vmem>>, %arg6: memref<128x16xf32, #tpu.memory_space<vmem>>, %arg7: memref<16x128xf32, #tpu.memory_space<vmem>>, %arg8: memref<1x16xf32, #tpu.memory_space<vmem>>, %arg9: memref<1x16xf32, #tpu.memory_space<vmem>>, %arg10: memref<4x8x16xf32, #tpu.memory_space<vmem>>, %arg11: memref<4x128x128xf32, #tpu.memory_space<vmem>>, %arg12: memref<128x32xf32, #tpu.memory_space<vmem>>, %arg13: memref<32x128xf32, #tpu.memory_space<vmem>>, %arg14: memref<1x32xf32, #tpu.memory_space<vmem>>, %arg15: memref<1x32xf32, #tpu.memory_space<vmem>>, %arg16: memref<4x4x8xf32, #tpu.memory_space<vmem>>, %arg17: memref<4x128x128xf32, #tpu.memory_space<vmem>>, %arg18: memref<128x64xf32, #tpu.memory_space<vmem>>, %arg19: memref<64x128xf32, #tpu.memory_space<vmem>>, %arg20: memref<1x64xf32, #tpu.memory_space<vmem>>, %arg21: memref<1x64xf32, #tpu.memory_space<vmem>>, %arg22: memref<2x2x4xf32, #tpu.memory_space<vmem>>, %arg23: memref<2x128x1xf32, #tpu.memory_space<vmem>>, %arg24: memref<1x1xf32, #tpu.memory_space<vmem>>, %arg25: memref<2x1xf32, #tpu.memory_space<vmem>>) attributes {dimension_semantics = [], scalar_prefetch = 0 : i64, scratch_operands = 0 : i64, tpu.core_type = #tpu.core_type<tc>} {
    %c0 = arith.constant 0 : index
    %c0_0 = arith.constant 0 : index
    %0 = vector.load %arg0[%c0, %c0_0] : memref<128x192xf32, #tpu.memory_space<vmem>>, vector<128x192xf32>
    %c0_1 = arith.constant 0 : index
    %c0_2 = arith.constant 0 : index
    %c0_3 = arith.constant 0 : index
    %1 = vector.load %arg1[%c0_1, %c0_2, %c0_3] : memref<4x64x128xf32, #tpu.memory_space<vmem>>, vector<1x64x128xf32>
    %2 = vector.shape_cast %1 : vector<1x64x128xf32> to vector<64x128xf32>
    %cst = arith.constant dense<0.000000e+00> : vector<64x192xf32>
    %3 = tpu.matmul %2, %0, %cst {dimension_numbers = #tpu.dot_dimension_numbers<[1], [0], [0], [1], [0, 0, 1, 1], [], []>} : vector<64x128xf32>, vector<128x192xf32>, vector<64x192xf32> -> vector<64x192xf32>
    %c0_4 = arith.constant 0 : index
    %c0_5 = arith.constant 0 : index
    %c0_6 = arith.constant 0 : index
    %4 = vector.load %arg2[%c0_4, %c0_5, %c0_6] : memref<4x192x256xf32, #tpu.memory_space<vmem>>, vector<1x192x256xf32>
    %5 = vector.shape_cast %4 : vector<1x192x256xf32> to vector<192x256xf32>
    %cst_7 = arith.constant dense<0.000000e+00> : vector<64x256xf32>
    %6 = tpu.matmul %3, %5, %cst_7 {dimension_numbers = #tpu.dot_dimension_numbers<[1], [0], [0], [1], [0, 0, 1, 1], [], []>} : vector<64x192xf32>, vector<192x256xf32>, vector<64x256xf32> -> vector<64x256xf32>
    %c1 = arith.constant 1 : index
    %c0_8 = arith.constant 0 : index
    %c0_9 = arith.constant 0 : index
    %7 = vector.load %arg1[%c1, %c0_8, %c0_9] : memref<4x64x128xf32, #tpu.memory_space<vmem>>, vector<1x64x128xf32>
    %8 = vector.shape_cast %7 : vector<1x64x128xf32> to vector<64x128xf32>
    %cst_10 = arith.constant dense<0.000000e+00> : vector<64x192xf32>
    %9 = tpu.matmul %8, %0, %cst_10 {dimension_numbers = #tpu.dot_dimension_numbers<[1], [0], [0], [1], [0, 0, 1, 1], [], []>} : vector<64x128xf32>, vector<128x192xf32>, vector<64x192xf32> -> vector<64x192xf32>
    %c1_11 = arith.constant 1 : index
    %c0_12 = arith.constant 0 : index
    %c0_13 = arith.constant 0 : index
    %10 = vector.load %arg2[%c1_11, %c0_12, %c0_13] : memref<4x192x256xf32, #tpu.memory_space<vmem>>, vector<1x192x256xf32>
    %11 = vector.shape_cast %10 : vector<1x192x256xf32> to vector<192x256xf32>
    %cst_14 = arith.constant dense<0.000000e+00> : vector<64x256xf32>
    %12 = tpu.matmul %9, %11, %cst_14 {dimension_numbers = #tpu.dot_dimension_numbers<[1], [0], [0], [1], [0, 0, 1, 1], [], []>} : vector<64x192xf32>, vector<192x256xf32>, vector<64x256xf32> -> vector<64x256xf32>
    %13 = arith.addf %6, %12 : vector<64x256xf32>
    %c2 = arith.constant 2 : index
    %c0_15 = arith.constant 0 : index
    %c0_16 = arith.constant 0 : index
    %14 = vector.load %arg1[%c2, %c0_15, %c0_16] : memref<4x64x128xf32, #tpu.memory_space<vmem>>, vector<1x64x128xf32>
    %15 = vector.shape_cast %14 : vector<1x64x128xf32> to vector<64x128xf32>
    %cst_17 = arith.constant dense<0.000000e+00> : vector<64x192xf32>
    %16 = tpu.matmul %15, %0, %cst_17 {dimension_numbers = #tpu.dot_dimension_numbers<[1], [0], [0], [1], [0, 0, 1, 1], [], []>} : vector<64x128xf32>, vector<128x192xf32>, vector<64x192xf32> -> vector<64x192xf32>
    %c2_18 = arith.constant 2 : index
    %c0_19 = arith.constant 0 : index
    %c0_20 = arith.constant 0 : index
    %17 = vector.load %arg2[%c2_18, %c0_19, %c0_20] : memref<4x192x256xf32, #tpu.memory_space<vmem>>, vector<1x192x256xf32>
    %18 = vector.shape_cast %17 : vector<1x192x256xf32> to vector<192x256xf32>
    %cst_21 = arith.constant dense<0.000000e+00> : vector<64x256xf32>
    %19 = tpu.matmul %16, %18, %cst_21 {dimension_numbers = #tpu.dot_dimension_numbers<[1], [0], [0], [1], [0, 0, 1, 1], [], []>} : vector<64x192xf32>, vector<192x256xf32>, vector<64x256xf32> -> vector<64x256xf32>
    %20 = arith.addf %13, %19 : vector<64x256xf32>
    %c3 = arith.constant 3 : index
    %c0_22 = arith.constant 0 : index
    %c0_23 = arith.constant 0 : index
    %21 = vector.load %arg1[%c3, %c0_22, %c0_23] : memref<4x64x128xf32, #tpu.memory_space<vmem>>, vector<1x64x128xf32>
    %22 = vector.shape_cast %21 : vector<1x64x128xf32> to vector<64x128xf32>
    %cst_24 = arith.constant dense<0.000000e+00> : vector<64x192xf32>
    %23 = tpu.matmul %22, %0, %cst_24 {dimension_numbers = #tpu.dot_dimension_numbers<[1], [0], [0], [1], [0, 0, 1, 1], [], []>} : vector<64x128xf32>, vector<128x192xf32>, vector<64x192xf32> -> vector<64x192xf32>
    %c3_25 = arith.constant 3 : index
    %c0_26 = arith.constant 0 : index
    %c0_27 = arith.constant 0 : index
    %24 = vector.load %arg2[%c3_25, %c0_26, %c0_27] : memref<4x192x256xf32, #tpu.memory_space<vmem>>, vector<1x192x256xf32>
    %25 = vector.shape_cast %24 : vector<1x192x256xf32> to vector<192x256xf32>
    %cst_28 = arith.constant dense<0.000000e+00> : vector<64x256xf32>
    %26 = tpu.matmul %23, %25, %cst_28 {dimension_numbers = #tpu.dot_dimension_numbers<[1], [0], [0], [1], [0, 0, 1, 1], [], []>} : vector<64x192xf32>, vector<192x256xf32>, vector<64x256xf32> -> vector<64x256xf32>
    %27 = arith.addf %20, %26 : vector<64x256xf32>
    %c0_29 = arith.constant 0 : index
    %c0_30 = arith.constant 0 : index
    %28 = vector.load %arg3[%c0_29, %c0_30] : memref<1x256xf32, #tpu.memory_space<vmem>>, vector<1x256xf32>
    %29 = vector.broadcast %28 : vector<1x256xf32> to vector<64x256xf32>
    %30 = arith.addf %27, %29 : vector<64x256xf32>
    %cst_31 = arith.constant 0.000000e+00 : f32
    %31 = vector.broadcast %cst_31 : f32 to vector<64x256xf32>
    %32 = arith.cmpf ogt, %30, %31 : vector<64x256xf32>
    %cst_32 = arith.constant 2.000000e-01 : f32
    %33 = vector.broadcast %cst_32 : f32 to vector<64x256xf32>
    %34 = arith.mulf %33, %30 : vector<64x256xf32>
    %35 = arith.select %32, %30, %34 : vector<64x256xi1>, vector<64x256xf32>
    %c0_33 = arith.constant 0 : index
    %c0_34 = arith.constant 0 : index
    %c0_35 = arith.constant 0 : index
    %36 = vector.load %arg4[%c0_33, %c0_34, %c0_35] : memref<4x16x64xf32, #tpu.memory_space<vmem>>, vector<1x16x64xf32>
    %37 = vector.shape_cast %36 : vector<1x16x64xf32> to vector<16x64xf32>
    %cst_36 = arith.constant dense<0.000000e+00> : vector<16x256xf32>
    %38 = tpu.matmul %37, %35, %cst_36 {dimension_numbers = #tpu.dot_dimension_numbers<[1], [0], [0], [1], [0, 0, 1, 1], [], []>} : vector<16x64xf32>, vector<64x256xf32>, vector<16x256xf32> -> vector<16x256xf32>
    %c0_37 = arith.constant 0 : index
    %c0_38 = arith.constant 0 : index
    %c0_39 = arith.constant 0 : index
    %39 = vector.load %arg5[%c0_37, %c0_38, %c0_39] : memref<4x256x128xf32, #tpu.memory_space<vmem>>, vector<1x256x128xf32>
    %40 = vector.shape_cast %39 : vector<1x256x128xf32> to vector<256x128xf32>
    %cst_40 = arith.constant dense<0.000000e+00> : vector<16x128xf32>
    %41 = tpu.matmul %38, %40, %cst_40 {dimension_numbers = #tpu.dot_dimension_numbers<[1], [0], [0], [1], [0, 0, 1, 1], [], []>} : vector<16x256xf32>, vector<256x128xf32>, vector<16x128xf32> -> vector<16x128xf32>
    %c1_41 = arith.constant 1 : index
    %c0_42 = arith.constant 0 : index
    %c0_43 = arith.constant 0 : index
    %42 = vector.load %arg4[%c1_41, %c0_42, %c0_43] : memref<4x16x64xf32, #tpu.memory_space<vmem>>, vector<1x16x64xf32>
    %43 = vector.shape_cast %42 : vector<1x16x64xf32> to vector<16x64xf32>
    %cst_44 = arith.constant dense<0.000000e+00> : vector<16x256xf32>
    %44 = tpu.matmul %43, %35, %cst_44 {dimension_numbers = #tpu.dot_dimension_numbers<[1], [0], [0], [1], [0, 0, 1, 1], [], []>} : vector<16x64xf32>, vector<64x256xf32>, vector<16x256xf32> -> vector<16x256xf32>
    %c1_45 = arith.constant 1 : index
    %c0_46 = arith.constant 0 : index
    %c0_47 = arith.constant 0 : index
    %45 = vector.load %arg5[%c1_45, %c0_46, %c0_47] : memref<4x256x128xf32, #tpu.memory_space<vmem>>, vector<1x256x128xf32>
    %46 = vector.shape_cast %45 : vector<1x256x128xf32> to vector<256x128xf32>
    %cst_48 = arith.constant dense<0.000000e+00> : vector<16x128xf32>
    %47 = tpu.matmul %44, %46, %cst_48 {dimension_numbers = #tpu.dot_dimension_numbers<[1], [0], [0], [1], [0, 0, 1, 1], [], []>} : vector<16x256xf32>, vector<256x128xf32>, vector<16x128xf32> -> vector<16x128xf32>
    %48 = arith.addf %41, %47 : vector<16x128xf32>
    %c2_49 = arith.constant 2 : index
    %c0_50 = arith.constant 0 : index
    %c0_51 = arith.constant 0 : index
    %49 = vector.load %arg4[%c2_49, %c0_50, %c0_51] : memref<4x16x64xf32, #tpu.memory_space<vmem>>, vector<1x16x64xf32>
    %50 = vector.shape_cast %49 : vector<1x16x64xf32> to vector<16x64xf32>
    %cst_52 = arith.constant dense<0.000000e+00> : vector<16x256xf32>
    %51 = tpu.matmul %50, %35, %cst_52 {dimension_numbers = #tpu.dot_dimension_numbers<[1], [0], [0], [1], [0, 0, 1, 1], [], []>} : vector<16x64xf32>, vector<64x256xf32>, vector<16x256xf32> -> vector<16x256xf32>
    %c2_53 = arith.constant 2 : index
    %c0_54 = arith.constant 0 : index
    %c0_55 = arith.constant 0 : index
    %52 = vector.load %arg5[%c2_53, %c0_54, %c0_55] : memref<4x256x128xf32, #tpu.memory_space<vmem>>, vector<1x256x128xf32>
    %53 = vector.shape_cast %52 : vector<1x256x128xf32> to vector<256x128xf32>
    %cst_56 = arith.constant dense<0.000000e+00> : vector<16x128xf32>
    %54 = tpu.matmul %51, %53, %cst_56 {dimension_numbers = #tpu.dot_dimension_numbers<[1], [0], [0], [1], [0, 0, 1, 1], [], []>} : vector<16x256xf32>, vector<256x128xf32>, vector<16x128xf32> -> vector<16x128xf32>
    %55 = arith.addf %48, %54 : vector<16x128xf32>
    %c3_57 = arith.constant 3 : index
    %c0_58 = arith.constant 0 : index
    %c0_59 = arith.constant 0 : index
    %56 = vector.load %arg4[%c3_57, %c0_58, %c0_59] : memref<4x16x64xf32, #tpu.memory_space<vmem>>, vector<1x16x64xf32>
    %57 = vector.shape_cast %56 : vector<1x16x64xf32> to vector<16x64xf32>
    %cst_60 = arith.constant dense<0.000000e+00> : vector<16x256xf32>
    %58 = tpu.matmul %57, %35, %cst_60 {dimension_numbers = #tpu.dot_dimension_numbers<[1], [0], [0], [1], [0, 0, 1, 1], [], []>} : vector<16x64xf32>, vector<64x256xf32>, vector<16x256xf32> -> vector<16x256xf32>
    %c3_61 = arith.constant 3 : index
    %c0_62 = arith.constant 0 : index
    %c0_63 = arith.constant 0 : index
    %59 = vector.load %arg5[%c3_61, %c0_62, %c0_63] : memref<4x256x128xf32, #tpu.memory_space<vmem>>, vector<1x256x128xf32>
    %60 = vector.shape_cast %59 : vector<1x256x128xf32> to vector<256x128xf32>
    %cst_64 = arith.constant dense<0.000000e+00> : vector<16x128xf32>
    %61 = tpu.matmul %58, %60, %cst_64 {dimension_numbers = #tpu.dot_dimension_numbers<[1], [0], [0], [1], [0, 0, 1, 1], [], []>} : vector<16x256xf32>, vector<256x128xf32>, vector<16x128xf32> -> vector<16x128xf32>
    %62 = arith.addf %55, %61 : vector<16x128xf32>
    %c0_65 = arith.constant 0 : index
    %c0_66 = arith.constant 0 : index
    %63 = vector.load %arg6[%c0_65, %c0_66] : memref<128x16xf32, #tpu.memory_space<vmem>>, vector<128x16xf32>
    %c0_67 = arith.constant 0 : index
    %c0_68 = arith.constant 0 : index
    %64 = vector.load %arg7[%c0_67, %c0_68] : memref<16x128xf32, #tpu.memory_space<vmem>>, vector<16x128xf32>
    %c0_69 = arith.constant 0 : index
    %c0_70 = arith.constant 0 : index
    %65 = vector.load %arg8[%c0_69, %c0_70] : memref<1x16xf32, #tpu.memory_space<vmem>>, vector<1x16xf32>
    %c0_71 = arith.constant 0 : index
    %c0_72 = arith.constant 0 : index
    %66 = vector.load %arg9[%c0_71, %c0_72] : memref<1x16xf32, #tpu.memory_space<vmem>>, vector<1x16xf32>
    %cst_73 = arith.constant dense<0.000000e+00> : vector<128xf32>
    %67 = vector.multi_reduction <add>, %62, %cst_73 [0] : vector<16x128xf32> to vector<128xf32>
    %68 = vector.shape_cast %67 : vector<128xf32> to vector<1x128xf32>
    %69 = arith.mulf %62, %62 : vector<16x128xf32>
    %cst_74 = arith.constant dense<0.000000e+00> : vector<128xf32>
    %70 = vector.multi_reduction <add>, %69, %cst_74 [0] : vector<16x128xf32> to vector<128xf32>
    %71 = vector.shape_cast %70 : vector<128xf32> to vector<1x128xf32>
    %cst_75 = arith.constant dense<0.000000e+00> : vector<1x16xf32>
    %72 = tpu.matmul %68, %63, %cst_75 {dimension_numbers = #tpu.dot_dimension_numbers<[1], [0], [0], [1], [0, 0, 1, 1], [], []>} : vector<1x128xf32>, vector<128x16xf32>, vector<1x16xf32> -> vector<1x16xf32>
    %cst_76 = arith.constant 7.812500e-03 : f32
    %73 = vector.broadcast %cst_76 : f32 to vector<1x16xf32>
    %74 = arith.mulf %72, %73 : vector<1x16xf32>
    %cst_77 = arith.constant dense<0.000000e+00> : vector<1x16xf32>
    %75 = tpu.matmul %71, %63, %cst_77 {dimension_numbers = #tpu.dot_dimension_numbers<[1], [0], [0], [1], [0, 0, 1, 1], [], []>} : vector<1x128xf32>, vector<128x16xf32>, vector<1x16xf32> -> vector<1x16xf32>
    %cst_78 = arith.constant 7.812500e-03 : f32
    %76 = vector.broadcast %cst_78 : f32 to vector<1x16xf32>
    %77 = arith.mulf %75, %76 : vector<1x16xf32>
    %78 = arith.mulf %74, %74 : vector<1x16xf32>
    %79 = arith.subf %77, %78 : vector<1x16xf32>
    %cst_79 = arith.constant 0.000000e+00 : f32
    %80 = vector.broadcast %cst_79 : f32 to vector<1x16xf32>
    %81 = arith.maximumf %79, %80 : vector<1x16xf32>
    %cst_80 = arith.constant 9.99999974E-6 : f32
    %82 = vector.broadcast %cst_80 : f32 to vector<1x16xf32>
    %83 = arith.addf %81, %82 : vector<1x16xf32>
    %84 = math.rsqrt %83 : vector<1x16xf32>
    %85 = arith.mulf %65, %84 : vector<1x16xf32>
    %86 = arith.mulf %74, %85 : vector<1x16xf32>
    %87 = arith.subf %66, %86 : vector<1x16xf32>
    %cst_81 = arith.constant dense<0.000000e+00> : vector<1x128xf32>
    %88 = tpu.matmul %85, %64, %cst_81 {dimension_numbers = #tpu.dot_dimension_numbers<[1], [0], [0], [1], [0, 0, 1, 1], [], []>} : vector<1x16xf32>, vector<16x128xf32>, vector<1x128xf32> -> vector<1x128xf32>
    %cst_82 = arith.constant dense<0.000000e+00> : vector<1x128xf32>
    %89 = tpu.matmul %87, %64, %cst_82 {dimension_numbers = #tpu.dot_dimension_numbers<[1], [0], [0], [1], [0, 0, 1, 1], [], []>} : vector<1x16xf32>, vector<16x128xf32>, vector<1x128xf32> -> vector<1x128xf32>
    %90 = vector.broadcast %88 : vector<1x128xf32> to vector<16x128xf32>
    %91 = arith.mulf %62, %90 : vector<16x128xf32>
    %92 = vector.broadcast %89 : vector<1x128xf32> to vector<16x128xf32>
    %93 = arith.addf %91, %92 : vector<16x128xf32>
    %cst_83 = arith.constant 0.000000e+00 : f32
    %94 = vector.broadcast %cst_83 : f32 to vector<16x128xf32>
    %95 = arith.cmpf ogt, %93, %94 : vector<16x128xf32>
    %cst_84 = arith.constant 2.000000e-01 : f32
    %96 = vector.broadcast %cst_84 : f32 to vector<16x128xf32>
    %97 = arith.mulf %96, %93 : vector<16x128xf32>
    %98 = arith.select %95, %93, %97 : vector<16x128xi1>, vector<16x128xf32>
    %c0_85 = arith.constant 0 : index
    %c0_86 = arith.constant 0 : index
    %c0_87 = arith.constant 0 : index
    %99 = vector.load %arg10[%c0_85, %c0_86, %c0_87] : memref<4x8x16xf32, #tpu.memory_space<vmem>>, vector<1x8x16xf32>
    %100 = vector.shape_cast %99 : vector<1x8x16xf32> to vector<8x16xf32>
    %cst_88 = arith.constant dense<0.000000e+00> : vector<8x128xf32>
    %101 = tpu.matmul %100, %98, %cst_88 {dimension_numbers = #tpu.dot_dimension_numbers<[1], [0], [0], [1], [0, 0, 1, 1], [], []>} : vector<8x16xf32>, vector<16x128xf32>, vector<8x128xf32> -> vector<8x128xf32>
    %c0_89 = arith.constant 0 : index
    %c0_90 = arith.constant 0 : index
    %c0_91 = arith.constant 0 : index
    %102 = vector.load %arg11[%c0_89, %c0_90, %c0_91] : memref<4x128x128xf32, #tpu.memory_space<vmem>>, vector<1x128x128xf32>
    %103 = vector.shape_cast %102 : vector<1x128x128xf32> to vector<128x128xf32>
    %cst_92 = arith.constant dense<0.000000e+00> : vector<8x128xf32>
    %104 = tpu.matmul %101, %103, %cst_92 {dimension_numbers = #tpu.dot_dimension_numbers<[1], [0], [0], [1], [0, 0, 1, 1], [], []>} : vector<8x128xf32>, vector<128x128xf32>, vector<8x128xf32> -> vector<8x128xf32>
    %c1_93 = arith.constant 1 : index
    %c0_94 = arith.constant 0 : index
    %c0_95 = arith.constant 0 : index
    %105 = vector.load %arg10[%c1_93, %c0_94, %c0_95] : memref<4x8x16xf32, #tpu.memory_space<vmem>>, vector<1x8x16xf32>
    %106 = vector.shape_cast %105 : vector<1x8x16xf32> to vector<8x16xf32>
    %cst_96 = arith.constant dense<0.000000e+00> : vector<8x128xf32>
    %107 = tpu.matmul %106, %98, %cst_96 {dimension_numbers = #tpu.dot_dimension_numbers<[1], [0], [0], [1], [0, 0, 1, 1], [], []>} : vector<8x16xf32>, vector<16x128xf32>, vector<8x128xf32> -> vector<8x128xf32>
    %c1_97 = arith.constant 1 : index
    %c0_98 = arith.constant 0 : index
    %c0_99 = arith.constant 0 : index
    %108 = vector.load %arg11[%c1_97, %c0_98, %c0_99] : memref<4x128x128xf32, #tpu.memory_space<vmem>>, vector<1x128x128xf32>
    %109 = vector.shape_cast %108 : vector<1x128x128xf32> to vector<128x128xf32>
    %cst_100 = arith.constant dense<0.000000e+00> : vector<8x128xf32>
    %110 = tpu.matmul %107, %109, %cst_100 {dimension_numbers = #tpu.dot_dimension_numbers<[1], [0], [0], [1], [0, 0, 1, 1], [], []>} : vector<8x128xf32>, vector<128x128xf32>, vector<8x128xf32> -> vector<8x128xf32>
    %111 = arith.addf %104, %110 : vector<8x128xf32>
    %c2_101 = arith.constant 2 : index
    %c0_102 = arith.constant 0 : index
    %c0_103 = arith.constant 0 : index
    %112 = vector.load %arg10[%c2_101, %c0_102, %c0_103] : memref<4x8x16xf32, #tpu.memory_space<vmem>>, vector<1x8x16xf32>
    %113 = vector.shape_cast %112 : vector<1x8x16xf32> to vector<8x16xf32>
    %cst_104 = arith.constant dense<0.000000e+00> : vector<8x128xf32>
    %114 = tpu.matmul %113, %98, %cst_104 {dimension_numbers = #tpu.dot_dimension_numbers<[1], [0], [0], [1], [0, 0, 1, 1], [], []>} : vector<8x16xf32>, vector<16x128xf32>, vector<8x128xf32> -> vector<8x128xf32>
    %c2_105 = arith.constant 2 : index
    %c0_106 = arith.constant 0 : index
    %c0_107 = arith.constant 0 : index
    %115 = vector.load %arg11[%c2_105, %c0_106, %c0_107] : memref<4x128x128xf32, #tpu.memory_space<vmem>>, vector<1x128x128xf32>
    %116 = vector.shape_cast %115 : vector<1x128x128xf32> to vector<128x128xf32>
    %cst_108 = arith.constant dense<0.000000e+00> : vector<8x128xf32>
    %117 = tpu.matmul %114, %116, %cst_108 {dimension_numbers = #tpu.dot_dimension_numbers<[1], [0], [0], [1], [0, 0, 1, 1], [], []>} : vector<8x128xf32>, vector<128x128xf32>, vector<8x128xf32> -> vector<8x128xf32>
    %118 = arith.addf %111, %117 : vector<8x128xf32>
    %c3_109 = arith.constant 3 : index
    %c0_110 = arith.constant 0 : index
    %c0_111 = arith.constant 0 : index
    %119 = vector.load %arg10[%c3_109, %c0_110, %c0_111] : memref<4x8x16xf32, #tpu.memory_space<vmem>>, vector<1x8x16xf32>
    %120 = vector.shape_cast %119 : vector<1x8x16xf32> to vector<8x16xf32>
    %cst_112 = arith.constant dense<0.000000e+00> : vector<8x128xf32>
    %121 = tpu.matmul %120, %98, %cst_112 {dimension_numbers = #tpu.dot_dimension_numbers<[1], [0], [0], [1], [0, 0, 1, 1], [], []>} : vector<8x16xf32>, vector<16x128xf32>, vector<8x128xf32> -> vector<8x128xf32>
    %c3_113 = arith.constant 3 : index
    %c0_114 = arith.constant 0 : index
    %c0_115 = arith.constant 0 : index
    %122 = vector.load %arg11[%c3_113, %c0_114, %c0_115] : memref<4x128x128xf32, #tpu.memory_space<vmem>>, vector<1x128x128xf32>
    %123 = vector.shape_cast %122 : vector<1x128x128xf32> to vector<128x128xf32>
    %cst_116 = arith.constant dense<0.000000e+00> : vector<8x128xf32>
    %124 = tpu.matmul %121, %123, %cst_116 {dimension_numbers = #tpu.dot_dimension_numbers<[1], [0], [0], [1], [0, 0, 1, 1], [], []>} : vector<8x128xf32>, vector<128x128xf32>, vector<8x128xf32> -> vector<8x128xf32>
    %125 = arith.addf %118, %124 : vector<8x128xf32>
    %c0_117 = arith.constant 0 : index
    %c0_118 = arith.constant 0 : index
    %126 = vector.load %arg12[%c0_117, %c0_118] : memref<128x32xf32, #tpu.memory_space<vmem>>, vector<128x32xf32>
    %c0_119 = arith.constant 0 : index
    %c0_120 = arith.constant 0 : index
    %127 = vector.load %arg13[%c0_119, %c0_120] : memref<32x128xf32, #tpu.memory_space<vmem>>, vector<32x128xf32>
    %c0_121 = arith.constant 0 : index
    %c0_122 = arith.constant 0 : index
    %128 = vector.load %arg14[%c0_121, %c0_122] : memref<1x32xf32, #tpu.memory_space<vmem>>, vector<1x32xf32>
    %c0_123 = arith.constant 0 : index
    %c0_124 = arith.constant 0 : index
    %129 = vector.load %arg15[%c0_123, %c0_124] : memref<1x32xf32, #tpu.memory_space<vmem>>, vector<1x32xf32>
    %cst_125 = arith.constant dense<0.000000e+00> : vector<128xf32>
    %130 = vector.multi_reduction <add>, %125, %cst_125 [0] : vector<8x128xf32> to vector<128xf32>
    %131 = vector.shape_cast %130 : vector<128xf32> to vector<1x128xf32>
    %132 = arith.mulf %125, %125 : vector<8x128xf32>
    %cst_126 = arith.constant dense<0.000000e+00> : vector<128xf32>
    %133 = vector.multi_reduction <add>, %132, %cst_126 [0] : vector<8x128xf32> to vector<128xf32>
    %134 = vector.shape_cast %133 : vector<128xf32> to vector<1x128xf32>
    %cst_127 = arith.constant dense<0.000000e+00> : vector<1x32xf32>
    %135 = tpu.matmul %131, %126, %cst_127 {dimension_numbers = #tpu.dot_dimension_numbers<[1], [0], [0], [1], [0, 0, 1, 1], [], []>} : vector<1x128xf32>, vector<128x32xf32>, vector<1x32xf32> -> vector<1x32xf32>
    %cst_128 = arith.constant 3.125000e-02 : f32
    %136 = vector.broadcast %cst_128 : f32 to vector<1x32xf32>
    %137 = arith.mulf %135, %136 : vector<1x32xf32>
    %cst_129 = arith.constant dense<0.000000e+00> : vector<1x32xf32>
    %138 = tpu.matmul %134, %126, %cst_129 {dimension_numbers = #tpu.dot_dimension_numbers<[1], [0], [0], [1], [0, 0, 1, 1], [], []>} : vector<1x128xf32>, vector<128x32xf32>, vector<1x32xf32> -> vector<1x32xf32>
    %cst_130 = arith.constant 3.125000e-02 : f32
    %139 = vector.broadcast %cst_130 : f32 to vector<1x32xf32>
    %140 = arith.mulf %138, %139 : vector<1x32xf32>
    %141 = arith.mulf %137, %137 : vector<1x32xf32>
    %142 = arith.subf %140, %141 : vector<1x32xf32>
    %cst_131 = arith.constant 0.000000e+00 : f32
    %143 = vector.broadcast %cst_131 : f32 to vector<1x32xf32>
    %144 = arith.maximumf %142, %143 : vector<1x32xf32>
    %cst_132 = arith.constant 9.99999974E-6 : f32
    %145 = vector.broadcast %cst_132 : f32 to vector<1x32xf32>
    %146 = arith.addf %144, %145 : vector<1x32xf32>
    %147 = math.rsqrt %146 : vector<1x32xf32>
    %148 = arith.mulf %128, %147 : vector<1x32xf32>
    %149 = arith.mulf %137, %148 : vector<1x32xf32>
    %150 = arith.subf %129, %149 : vector<1x32xf32>
    %cst_133 = arith.constant dense<0.000000e+00> : vector<1x128xf32>
    %151 = tpu.matmul %148, %127, %cst_133 {dimension_numbers = #tpu.dot_dimension_numbers<[1], [0], [0], [1], [0, 0, 1, 1], [], []>} : vector<1x32xf32>, vector<32x128xf32>, vector<1x128xf32> -> vector<1x128xf32>
    %cst_134 = arith.constant dense<0.000000e+00> : vector<1x128xf32>
    %152 = tpu.matmul %150, %127, %cst_134 {dimension_numbers = #tpu.dot_dimension_numbers<[1], [0], [0], [1], [0, 0, 1, 1], [], []>} : vector<1x32xf32>, vector<32x128xf32>, vector<1x128xf32> -> vector<1x128xf32>
    %153 = vector.broadcast %151 : vector<1x128xf32> to vector<8x128xf32>
    %154 = arith.mulf %125, %153 : vector<8x128xf32>
    %155 = vector.broadcast %152 : vector<1x128xf32> to vector<8x128xf32>
    %156 = arith.addf %154, %155 : vector<8x128xf32>
    %cst_135 = arith.constant 0.000000e+00 : f32
    %157 = vector.broadcast %cst_135 : f32 to vector<8x128xf32>
    %158 = arith.cmpf ogt, %156, %157 : vector<8x128xf32>
    %cst_136 = arith.constant 2.000000e-01 : f32
    %159 = vector.broadcast %cst_136 : f32 to vector<8x128xf32>
    %160 = arith.mulf %159, %156 : vector<8x128xf32>
    %161 = arith.select %158, %156, %160 : vector<8x128xi1>, vector<8x128xf32>
    %c0_137 = arith.constant 0 : index
    %c0_138 = arith.constant 0 : index
    %c0_139 = arith.constant 0 : index
    %162 = vector.load %arg16[%c0_137, %c0_138, %c0_139] : memref<4x4x8xf32, #tpu.memory_space<vmem>>, vector<1x4x8xf32>
    %163 = vector.shape_cast %162 : vector<1x4x8xf32> to vector<4x8xf32>
    %cst_140 = arith.constant dense<0.000000e+00> : vector<4x128xf32>
    %164 = tpu.matmul %163, %161, %cst_140 {dimension_numbers = #tpu.dot_dimension_numbers<[1], [0], [0], [1], [0, 0, 1, 1], [], []>} : vector<4x8xf32>, vector<8x128xf32>, vector<4x128xf32> -> vector<4x128xf32>
    %c0_141 = arith.constant 0 : index
    %c0_142 = arith.constant 0 : index
    %c0_143 = arith.constant 0 : index
    %165 = vector.load %arg17[%c0_141, %c0_142, %c0_143] : memref<4x128x128xf32, #tpu.memory_space<vmem>>, vector<1x128x128xf32>
    %166 = vector.shape_cast %165 : vector<1x128x128xf32> to vector<128x128xf32>
    %cst_144 = arith.constant dense<0.000000e+00> : vector<4x128xf32>
    %167 = tpu.matmul %164, %166, %cst_144 {dimension_numbers = #tpu.dot_dimension_numbers<[1], [0], [0], [1], [0, 0, 1, 1], [], []>} : vector<4x128xf32>, vector<128x128xf32>, vector<4x128xf32> -> vector<4x128xf32>
    %c1_145 = arith.constant 1 : index
    %c0_146 = arith.constant 0 : index
    %c0_147 = arith.constant 0 : index
    %168 = vector.load %arg16[%c1_145, %c0_146, %c0_147] : memref<4x4x8xf32, #tpu.memory_space<vmem>>, vector<1x4x8xf32>
    %169 = vector.shape_cast %168 : vector<1x4x8xf32> to vector<4x8xf32>
    %cst_148 = arith.constant dense<0.000000e+00> : vector<4x128xf32>
    %170 = tpu.matmul %169, %161, %cst_148 {dimension_numbers = #tpu.dot_dimension_numbers<[1], [0], [0], [1], [0, 0, 1, 1], [], []>} : vector<4x8xf32>, vector<8x128xf32>, vector<4x128xf32> -> vector<4x128xf32>
    %c1_149 = arith.constant 1 : index
    %c0_150 = arith.constant 0 : index
    %c0_151 = arith.constant 0 : index
    %171 = vector.load %arg17[%c1_149, %c0_150, %c0_151] : memref<4x128x128xf32, #tpu.memory_space<vmem>>, vector<1x128x128xf32>
    %172 = vector.shape_cast %171 : vector<1x128x128xf32> to vector<128x128xf32>
    %cst_152 = arith.constant dense<0.000000e+00> : vector<4x128xf32>
    %173 = tpu.matmul %170, %172, %cst_152 {dimension_numbers = #tpu.dot_dimension_numbers<[1], [0], [0], [1], [0, 0, 1, 1], [], []>} : vector<4x128xf32>, vector<128x128xf32>, vector<4x128xf32> -> vector<4x128xf32>
    %174 = arith.addf %167, %173 : vector<4x128xf32>
    %c2_153 = arith.constant 2 : index
    %c0_154 = arith.constant 0 : index
    %c0_155 = arith.constant 0 : index
    %175 = vector.load %arg16[%c2_153, %c0_154, %c0_155] : memref<4x4x8xf32, #tpu.memory_space<vmem>>, vector<1x4x8xf32>
    %176 = vector.shape_cast %175 : vector<1x4x8xf32> to vector<4x8xf32>
    %cst_156 = arith.constant dense<0.000000e+00> : vector<4x128xf32>
    %177 = tpu.matmul %176, %161, %cst_156 {dimension_numbers = #tpu.dot_dimension_numbers<[1], [0], [0], [1], [0, 0, 1, 1], [], []>} : vector<4x8xf32>, vector<8x128xf32>, vector<4x128xf32> -> vector<4x128xf32>
    %c2_157 = arith.constant 2 : index
    %c0_158 = arith.constant 0 : index
    %c0_159 = arith.constant 0 : index
    %178 = vector.load %arg17[%c2_157, %c0_158, %c0_159] : memref<4x128x128xf32, #tpu.memory_space<vmem>>, vector<1x128x128xf32>
    %179 = vector.shape_cast %178 : vector<1x128x128xf32> to vector<128x128xf32>
    %cst_160 = arith.constant dense<0.000000e+00> : vector<4x128xf32>
    %180 = tpu.matmul %177, %179, %cst_160 {dimension_numbers = #tpu.dot_dimension_numbers<[1], [0], [0], [1], [0, 0, 1, 1], [], []>} : vector<4x128xf32>, vector<128x128xf32>, vector<4x128xf32> -> vector<4x128xf32>
    %181 = arith.addf %174, %180 : vector<4x128xf32>
    %c3_161 = arith.constant 3 : index
    %c0_162 = arith.constant 0 : index
    %c0_163 = arith.constant 0 : index
    %182 = vector.load %arg16[%c3_161, %c0_162, %c0_163] : memref<4x4x8xf32, #tpu.memory_space<vmem>>, vector<1x4x8xf32>
    %183 = vector.shape_cast %182 : vector<1x4x8xf32> to vector<4x8xf32>
    %cst_164 = arith.constant dense<0.000000e+00> : vector<4x128xf32>
    %184 = tpu.matmul %183, %161, %cst_164 {dimension_numbers = #tpu.dot_dimension_numbers<[1], [0], [0], [1], [0, 0, 1, 1], [], []>} : vector<4x8xf32>, vector<8x128xf32>, vector<4x128xf32> -> vector<4x128xf32>
    %c3_165 = arith.constant 3 : index
    %c0_166 = arith.constant 0 : index
    %c0_167 = arith.constant 0 : index
    %185 = vector.load %arg17[%c3_165, %c0_166, %c0_167] : memref<4x128x128xf32, #tpu.memory_space<vmem>>, vector<1x128x128xf32>
    %186 = vector.shape_cast %185 : vector<1x128x128xf32> to vector<128x128xf32>
    %cst_168 = arith.constant dense<0.000000e+00> : vector<4x128xf32>
    %187 = tpu.matmul %184, %186, %cst_168 {dimension_numbers = #tpu.dot_dimension_numbers<[1], [0], [0], [1], [0, 0, 1, 1], [], []>} : vector<4x128xf32>, vector<128x128xf32>, vector<4x128xf32> -> vector<4x128xf32>
    %188 = arith.addf %181, %187 : vector<4x128xf32>
    %c0_169 = arith.constant 0 : index
    %c0_170 = arith.constant 0 : index
    %189 = vector.load %arg18[%c0_169, %c0_170] : memref<128x64xf32, #tpu.memory_space<vmem>>, vector<128x64xf32>
    %c0_171 = arith.constant 0 : index
    %c0_172 = arith.constant 0 : index
    %190 = vector.load %arg19[%c0_171, %c0_172] : memref<64x128xf32, #tpu.memory_space<vmem>>, vector<64x128xf32>
    %c0_173 = arith.constant 0 : index
    %c0_174 = arith.constant 0 : index
    %191 = vector.load %arg20[%c0_173, %c0_174] : memref<1x64xf32, #tpu.memory_space<vmem>>, vector<1x64xf32>
    %c0_175 = arith.constant 0 : index
    %c0_176 = arith.constant 0 : index
    %192 = vector.load %arg21[%c0_175, %c0_176] : memref<1x64xf32, #tpu.memory_space<vmem>>, vector<1x64xf32>
    %cst_177 = arith.constant dense<0.000000e+00> : vector<128xf32>
    %193 = vector.multi_reduction <add>, %188, %cst_177 [0] : vector<4x128xf32> to vector<128xf32>
    %194 = vector.shape_cast %193 : vector<128xf32> to vector<1x128xf32>
    %195 = arith.mulf %188, %188 : vector<4x128xf32>
    %cst_178 = arith.constant dense<0.000000e+00> : vector<128xf32>
    %196 = vector.multi_reduction <add>, %195, %cst_178 [0] : vector<4x128xf32> to vector<128xf32>
    %197 = vector.shape_cast %196 : vector<128xf32> to vector<1x128xf32>
    %cst_179 = arith.constant dense<0.000000e+00> : vector<1x64xf32>
    %198 = tpu.matmul %194, %189, %cst_179 {dimension_numbers = #tpu.dot_dimension_numbers<[1], [0], [0], [1], [0, 0, 1, 1], [], []>} : vector<1x128xf32>, vector<128x64xf32>, vector<1x64xf32> -> vector<1x64xf32>
    %cst_180 = arith.constant 1.250000e-01 : f32
    %199 = vector.broadcast %cst_180 : f32 to vector<1x64xf32>
    %200 = arith.mulf %198, %199 : vector<1x64xf32>
    %cst_181 = arith.constant dense<0.000000e+00> : vector<1x64xf32>
    %201 = tpu.matmul %197, %189, %cst_181 {dimension_numbers = #tpu.dot_dimension_numbers<[1], [0], [0], [1], [0, 0, 1, 1], [], []>} : vector<1x128xf32>, vector<128x64xf32>, vector<1x64xf32> -> vector<1x64xf32>
    %cst_182 = arith.constant 1.250000e-01 : f32
    %202 = vector.broadcast %cst_182 : f32 to vector<1x64xf32>
    %203 = arith.mulf %201, %202 : vector<1x64xf32>
    %204 = arith.mulf %200, %200 : vector<1x64xf32>
    %205 = arith.subf %203, %204 : vector<1x64xf32>
    %cst_183 = arith.constant 0.000000e+00 : f32
    %206 = vector.broadcast %cst_183 : f32 to vector<1x64xf32>
    %207 = arith.maximumf %205, %206 : vector<1x64xf32>
    %cst_184 = arith.constant 9.99999974E-6 : f32
    %208 = vector.broadcast %cst_184 : f32 to vector<1x64xf32>
    %209 = arith.addf %207, %208 : vector<1x64xf32>
    %210 = math.rsqrt %209 : vector<1x64xf32>
    %211 = arith.mulf %191, %210 : vector<1x64xf32>
    %212 = arith.mulf %200, %211 : vector<1x64xf32>
    %213 = arith.subf %192, %212 : vector<1x64xf32>
    %cst_185 = arith.constant dense<0.000000e+00> : vector<1x128xf32>
    %214 = tpu.matmul %211, %190, %cst_185 {dimension_numbers = #tpu.dot_dimension_numbers<[1], [0], [0], [1], [0, 0, 1, 1], [], []>} : vector<1x64xf32>, vector<64x128xf32>, vector<1x128xf32> -> vector<1x128xf32>
    %cst_186 = arith.constant dense<0.000000e+00> : vector<1x128xf32>
    %215 = tpu.matmul %213, %190, %cst_186 {dimension_numbers = #tpu.dot_dimension_numbers<[1], [0], [0], [1], [0, 0, 1, 1], [], []>} : vector<1x64xf32>, vector<64x128xf32>, vector<1x128xf32> -> vector<1x128xf32>
    %216 = vector.broadcast %214 : vector<1x128xf32> to vector<4x128xf32>
    %217 = arith.mulf %188, %216 : vector<4x128xf32>
    %218 = vector.broadcast %215 : vector<1x128xf32> to vector<4x128xf32>
    %219 = arith.addf %217, %218 : vector<4x128xf32>
    %cst_187 = arith.constant 0.000000e+00 : f32
    %220 = vector.broadcast %cst_187 : f32 to vector<4x128xf32>
    %221 = arith.cmpf ogt, %219, %220 : vector<4x128xf32>
    %cst_188 = arith.constant 2.000000e-01 : f32
    %222 = vector.broadcast %cst_188 : f32 to vector<4x128xf32>
    %223 = arith.mulf %222, %219 : vector<4x128xf32>
    %224 = arith.select %221, %219, %223 : vector<4x128xi1>, vector<4x128xf32>
    %c0_189 = arith.constant 0 : index
    %c0_190 = arith.constant 0 : index
    %c0_191 = arith.constant 0 : index
    %225 = vector.load %arg22[%c0_189, %c0_190, %c0_191] : memref<2x2x4xf32, #tpu.memory_space<vmem>>, vector<1x2x4xf32>
    %226 = vector.shape_cast %225 : vector<1x2x4xf32> to vector<2x4xf32>
    %cst_192 = arith.constant dense<0.000000e+00> : vector<2x128xf32>
    %227 = tpu.matmul %226, %224, %cst_192 {dimension_numbers = #tpu.dot_dimension_numbers<[1], [0], [0], [1], [0, 0, 1, 1], [], []>} : vector<2x4xf32>, vector<4x128xf32>, vector<2x128xf32> -> vector<2x128xf32>
    %c0_193 = arith.constant 0 : index
    %c0_194 = arith.constant 0 : index
    %c0_195 = arith.constant 0 : index
    %228 = vector.load %arg23[%c0_193, %c0_194, %c0_195] : memref<2x128x1xf32, #tpu.memory_space<vmem>>, vector<1x128x1xf32>
    %229 = vector.shape_cast %228 : vector<1x128x1xf32> to vector<128x1xf32>
    %cst_196 = arith.constant dense<0.000000e+00> : vector<2x1xf32>
    %230 = tpu.matmul %227, %229, %cst_196 {dimension_numbers = #tpu.dot_dimension_numbers<[1], [0], [0], [1], [0, 0, 1, 1], [], []>} : vector<2x128xf32>, vector<128x1xf32>, vector<2x1xf32> -> vector<2x1xf32>
    %c1_197 = arith.constant 1 : index
    %c0_198 = arith.constant 0 : index
    %c0_199 = arith.constant 0 : index
    %231 = vector.load %arg22[%c1_197, %c0_198, %c0_199] : memref<2x2x4xf32, #tpu.memory_space<vmem>>, vector<1x2x4xf32>
    %232 = vector.shape_cast %231 : vector<1x2x4xf32> to vector<2x4xf32>
    %cst_200 = arith.constant dense<0.000000e+00> : vector<2x128xf32>
    %233 = tpu.matmul %232, %224, %cst_200 {dimension_numbers = #tpu.dot_dimension_numbers<[1], [0], [0], [1], [0, 0, 1, 1], [], []>} : vector<2x4xf32>, vector<4x128xf32>, vector<2x128xf32> -> vector<2x128xf32>
    %c1_201 = arith.constant 1 : index
    %c0_202 = arith.constant 0 : index
    %c0_203 = arith.constant 0 : index
    %234 = vector.load %arg23[%c1_201, %c0_202, %c0_203] : memref<2x128x1xf32, #tpu.memory_space<vmem>>, vector<1x128x1xf32>
    %235 = vector.shape_cast %234 : vector<1x128x1xf32> to vector<128x1xf32>
    %cst_204 = arith.constant dense<0.000000e+00> : vector<2x1xf32>
    %236 = tpu.matmul %233, %235, %cst_204 {dimension_numbers = #tpu.dot_dimension_numbers<[1], [0], [0], [1], [0, 0, 1, 1], [], []>} : vector<2x128xf32>, vector<128x1xf32>, vector<2x1xf32> -> vector<2x1xf32>
    %237 = arith.addf %230, %236 : vector<2x1xf32>
    %c0_205 = arith.constant 0 : index
    %c0_206 = arith.constant 0 : index
    %238 = vector.load %arg24[%c0_205, %c0_206] : memref<1x1xf32, #tpu.memory_space<vmem>>, vector<1x1xf32>
    %239 = vector.broadcast %238 : vector<1x1xf32> to vector<2x1xf32>
    %240 = arith.addf %237, %239 : vector<2x1xf32>
    %241 = arith.negf %240 : vector<2x1xf32>
    %242 = math.exp %241 : vector<2x1xf32>
    %cst_207 = arith.constant 1.000000e+00 : f32
    %243 = vector.broadcast %cst_207 : f32 to vector<2x1xf32>
    %244 = arith.addf %243, %242 : vector<2x1xf32>
    %245 = arith.divf %243, %244 : vector<2x1xf32>
    %c0_208 = arith.constant 0 : index
    %c0_209 = arith.constant 0 : index
    %246 = vector.load %arg25[%c0_208, %c0_209] : memref<2x1xf32, #tpu.memory_space<vmem>>, vector<2x1xf32>
    tpu.vector_store %arg25[%c0_208, %c0_209], %245 {strides = array<i32>} : memref<2x1xf32, #tpu.memory_space<vmem>>, vector<2x1xf32>,
    return
  }
}

</mosaic_0001>

<llo_original>
// kernel: forward.1
$region0: #{forward.1}
  #allocation0 [shape = 'u32[]', space=smem, size = 0x4, offset = 0x4, fixed_abs, tag = 'smem constant byte address 0x4 - core index']
  #allocation1 [shape = 'u32[144,128]{1,0:T(1,128)}', space=vmem, size = 0x12000, scoped, tag = 'internal scratch']
  #allocation2 [shape = 'f32[1,1]{1,0:T(1,128)S(1)}', space=vmem, size = 0x200, scoped, tag = 'scoped memory for forward.1']
  %s0 = inlined_call_operand.vmem [shape: f32[128,192], index: 0, kind: input, shape index: {}]
  %s1 = inlined_call_operand.hbm [shape: f32[4,64,128], index: 1, kind: input, shape index: {}]
  %s2 = inlined_call_operand.vmem [shape: f32[4,192,256], index: 2, kind: input, shape index: {}]
  %s3 = inlined_call_operand.hbm [shape: f32[1,256], index: 3, kind: input, shape index: {}]
  %s4 = inlined_call_operand.hbm [shape: f32[4,16,64], index: 4, kind: input, shape index: {}]
  %s5 = inlined_call_operand.vmem [shape: f32[4,256,128], index: 5, kind: input, shape index: {}]
  %s6 = inlined_call_operand.vmem [shape: f32[128,16], index: 6, kind: input, shape index: {}]
  %s7 = inlined_call_operand.hbm [shape: f32[16,128], index: 7, kind: input, shape index: {}]
  %s8 = inlined_call_operand.vmem [shape: f32[1,16], index: 8, kind: input, shape index: {}]
  %s9 = inlined_call_operand.hbm [shape: f32[1,16], index: 9, kind: input, shape index: {}]
  %s10 = inlined_call_operand.hbm [shape: f32[4,8,16], index: 10, kind: input, shape index: {}]
  %s11 = inlined_call_operand.hbm [shape: f32[4,128,128], index: 11, kind: input, shape index: {}]
  %s12 = inlined_call_operand.vmem [shape: f32[128,32], index: 12, kind: input, shape index: {}]
  %s13 = inlined_call_operand.hbm [shape: f32[32,128], index: 13, kind: input, shape index: {}]
  %s14 = inlined_call_operand.hbm [shape: f32[1,32], index: 14, kind: input, shape index: {}]
  %s15 = inlined_call_operand.hbm [shape: f32[1,32], index: 15, kind: input, shape index: {}]
  %s16 = inlined_call_operand.hbm [shape: f32[4,4,8], index: 16, kind: input, shape index: {}]
  %s17 = inlined_call_operand.hbm [shape: f32[4,128,128], index: 17, kind: input, shape index: {}]
  %s18 = inlined_call_operand.vmem [shape: f32[128,64], index: 18, kind: input, shape index: {}]
  %s19 = inlined_call_operand.hbm [shape: f32[64,128], index: 19, kind: input, shape index: {}]
  %s20 = inlined_call_operand.hbm [shape: f32[1,64], index: 20, kind: input, shape index: {}]
  %s21 = inlined_call_operand.hbm [shape: f32[1,64], index: 21, kind: input, shape index: {}]
  %s22 = inlined_call_operand.vmem [shape: f32[2,2,4], index: 22, kind: input, shape index: {}]
  %s23 = inlined_call_operand.vmem [shape: f32[2,128,1], index: 23, kind: input, shape index: {}]
  %s24 = inlined_call_operand.<no memory space> [shape: f32[1,1], index: 24, kind: input, shape index: {}]
  %s25 = inlined_call_operand.vmem [shape: f32[2,1], index: 25, kind: output, shape index: {}]
  %s26 = sld [smem:[#allocation0]]
  $region170: #{forward.1} parent=0
    _
  %s28 = ssub.s32 1, %s26
  %s29 = scalar_select 0, %s28, %s26
  %v30 = vstv %s24
  %31 = vst [vmem:[#allocation2] sm:$0x1] %v30
  $region1: #{forward.1} parent=0
    #allocation3 [shape = 'u8[131072]{0}', space=vmem, size = 0x20000, scoped, tag = 'input window, operand 1, single buffered']
    #allocation4 [shape = 's32[1]{0}', space=sflag, size = 0x4, scoped, tag = 'scoped memory for forward.1']
    #allocation5 [shape = 'u8[1024]{0}', space=vmem, size = 0x400, scoped, tag = 'input window, operand 3, single buffered']
    #allocation6 [shape = 's32[1]{0}', space=sflag, size = 0x4, scoped, tag = 'scoped memory for forward.1']
    #allocation7 [shape = 'u8[32768]{0}', space=vmem, size = 0x8000, scoped, tag = 'input window, operand 4, single buffered']
    #allocation8 [shape = 'u8[8192]{0}', space=vmem, size = 0x2000, scoped, tag = 'input window, operand 7, single buffered']
    #allocation9 [shape = 's32[1]{0}', space=sflag, size = 0x4, scoped, tag = 'scoped memory for forward.1']
    #allocation10 [shape = 'u8[512]{0}', space=vmem, size = 0x400, scoped, tag = 'input window, operand 9, single buffered']
    #allocation11 [shape = 'u8[16384]{0}', space=vmem, size = 0x4000, scoped, tag = 'input window, operand 10, single buffered']
    #allocation12 [shape = 's32[1]{0}', space=sflag, size = 0x4, scoped, tag = 'scoped memory for forward.1']
    #allocation13 [shape = 'u8[262144]{0}', space=vmem, size = 0x40000, scoped, tag = 'input window, operand 11, single buffered']
    #allocation14 [shape = 'u8[16384]{0}', space=vmem, size = 0x4000, scoped, tag = 'input window, operand 13, single buffered']
    #allocation15 [shape = 's32[1]{0}', space=sflag, size = 0x4, scoped, tag = 'scoped memory for forward.1']
    #allocation16 [shape = 'u8[512]{0}', space=vmem, size = 0x400, scoped, tag = 'input window, operand 14, single buffered']
    #allocation17 [shape = 'u8[512]{0}', space=vmem, size = 0x400, scoped, tag = 'input window, operand 15, single buffered']
    #allocation18 [shape = 's32[1]{0}', space=sflag, size = 0x4, scoped, tag = 'scoped memory for forward.1']
    #allocation19 [shape = 'u8[8192]{0}', space=vmem, size = 0x2000, scoped, tag = 'input window, operand 16, single buffered']
    #allocation20 [shape = 'u8[262144]{0}', space=vmem, size = 0x40000, scoped, tag = 'input window, operand 17, single buffered']
    #allocation21 [shape = 's32[1]{0}', space=sflag, size = 0x4, scoped, tag = 'scoped memory for forward.1']
    #allocation22 [shape = 'u8[32768]{0}', space=vmem, size = 0x8000, scoped, tag = 'input window, operand 19, single buffered']
    #allocation23 [shape = 'u8[512]{0}', space=vmem, size = 0x400, scoped, tag = 'input window, operand 20, single buffered']
    #allocation24 [shape = 's32[1]{0}', space=sflag, size = 0x4, scoped, tag = 'scoped memory for forward.1']
    #allocation25 [shape = 'u8[512]{0}', space=vmem, size = 0x400, scoped, tag = 'input window, operand 21, single buffered']
    %32 = vsyncpa [#allocation4], 0
    %33 = vsyncpa [#allocation6], 0
    %34 = vsyncpa [#allocation9], 0
    %35 = vsyncpa [#allocation12], 0
    %36 = vsyncpa [#allocation15], 0
    %37 = vsyncpa [#allocation18], 0
    %38 = vsyncpa [#allocation21], 0
    %39 = vsyncpa [#allocation24], 0
    // Predicated region
    $region2: #{forward.1} parent=1 // pred_check
      _
    $region3: #{forward.1} parent=1 // pred_check_branch
      %41 = sbr.rel (0) target = $region5
    $region4: #{forward.1} parent=1 // pred_region
      _
    $region5: #{forward.1} parent=1 // pred_fallthru
      _
    // Predicated region
    $region6: #{forward.1} parent=1 // pred_check
      _
    $region7: #{forward.1} parent=1 // pred_check_branch
      %43 = sbr.rel (0) target = $region9
    $region8: #{forward.1} parent=1 // pred_region
      %s45 = ssub.s32 4096, 4096
      %46 = vsyncadd [#allocation4], %s45
      %s47 = sshll.u32 [#allocation3], 4
      %s48 = int_to_ptr.vmem [resolvable:$true] %s47
      %53 = dma.hbm_to_vmem [thread:$0]  %s1, 4096, %s48, [#allocation4], 128, 128, 8
    $region9: #{forward.1} parent=1 // pred_fallthru
      _
    // Predicated region
    $region10: #{forward.1} parent=1 // pred_check
      _
    $region11: #{forward.1} parent=1 // pred_check_branch
      %55 = sbr.rel (0) target = $region13
    $region12: #{forward.1} parent=1 // pred_region
      _
    $region13: #{forward.1} parent=1 // pred_fallthru
      _
    // Predicated region
    $region14: #{forward.1} parent=1 // pred_check
      _
    $region15: #{forward.1} parent=1 // pred_check_branch
      %57 = sbr.rel (0) target = $region17
    $region16: #{forward.1} parent=1 // pred_region
      %s59 = ssub.s32 32, 32
      %60 = vsyncadd [#allocation6], %s59
      %s62 = sshll.u32 [#allocation5], 4
      %s63 = int_to_ptr.vmem [resolvable:$true] %s62
      %65 = dma.hbm_to_vmem [thread:$0]  %s3, 32, %s63, [#allocation6]
    $region17: #{forward.1} parent=1 // pred_fallthru
      _
    // Predicated region
    $region18: #{forward.1} parent=1 // pred_check
      _
    $region19: #{forward.1} parent=1 // pred_check_branch
      %67 = sbr.rel (0) target = $region21
    $region20: #{forward.1} parent=1 // pred_region
      %s69 = ssub.s32 1024, 1024
      %70 = vsyncadd [#allocation6], %s69
      %s71 = sshll.u32 [#allocation7], 4
      %s72 = int_to_ptr.vmem [resolvable:$true] %s71
      %77 = dma.hbm_to_vmem [thread:$0]  %s4, 1024, %s72, [#allocation6], 128, 128, 8
    $region21: #{forward.1} parent=1 // pred_fallthru
      _
    // Predicated region
    $region22: #{forward.1} parent=1 // pred_check
      _
    $region23: #{forward.1} parent=1 // pred_check_branch
      %79 = sbr.rel (0) target = $region25
    $region24: #{forward.1} parent=1 // pred_region
      _
    $region25: #{forward.1} parent=1 // pred_fallthru
      _
    // Predicated region
    $region26: #{forward.1} parent=1 // pred_check
      _
    $region27: #{forward.1} parent=1 // pred_check_branch
      %81 = sbr.rel (0) target = $region29
    $region28: #{forward.1} parent=1 // pred_region
      _
    $region29: #{forward.1} parent=1 // pred_fallthru
      _
    // Predicated region
    $region30: #{forward.1} parent=1 // pred_check
      _
    $region31: #{forward.1} parent=1 // pred_check_branch
      %83 = sbr.rel (0) target = $region33
    $region32: #{forward.1} parent=1 // pred_region
      %s85 = ssub.s32 256, 256
      %86 = vsyncadd [#allocation9], %s85
      %s87 = sshll.u32 [#allocation8], 4
      %s88 = int_to_ptr.vmem [resolvable:$true] %s87
      %93 = dma.hbm_to_vmem [thread:$0]  %s7, 256, %s88, [#allocation9], 128, 128, 8
    $region33: #{forward.1} parent=1 // pred_fallthru
      _
    // Predicated region
    $region34: #{forward.1} parent=1 // pred_check
      _
    $region35: #{forward.1} parent=1 // pred_check_branch
      %95 = sbr.rel (0) target = $region37
    $region36: #{forward.1} parent=1 // pred_region
      _
    $region37: #{forward.1} parent=1 // pred_fallthru
      _
    // Predicated region
    $region38: #{forward.1} parent=1 // pred_check
      _
    $region39: #{forward.1} parent=1 // pred_check_branch
      %97 = sbr.rel (0) target = $region41
    $region40: #{forward.1} parent=1 // pred_region
      %s99 = ssub.s32 16, 16
      %100 = vsyncadd [#allocation9], %s99
      %s102 = sshll.u32 [#allocation10], 4
      %s103 = int_to_ptr.vmem [resolvable:$true] %s102
      %105 = dma.hbm_to_vmem [thread:$0]  %s9, 16, %s103, [#allocation9]
    $region41: #{forward.1} parent=1 // pred_fallthru
      _
    // Predicated region
    $region42: #{forward.1} parent=1 // pred_check
      _
    $region43: #{forward.1} parent=1 // pred_check_branch
      %107 = sbr.rel (0) target = $region45
    $region44: #{forward.1} parent=1 // pred_region
      %s109 = ssub.s32 512, 512
      %110 = vsyncadd [#allocation12], %s109
      %s111 = sshll.u32 [#allocation11], 4
      %s112 = int_to_ptr.vmem [resolvable:$true] %s111
      %117 = dma.hbm_to_vmem [thread:$0]  %s10, 512, %s112, [#allocation12], 128, 128, 8
    $region45: #{forward.1} parent=1 // pred_fallthru
      _
    // Predicated region
    $region46: #{forward.1} parent=1 // pred_check
      _
    $region47: #{forward.1} parent=1 // pred_check_branch
      %119 = sbr.rel (0) target = $region49
    $region48: #{forward.1} parent=1 // pred_region
      %s121 = ssub.s32 8192, 8192
      %122 = vsyncadd [#allocation12], %s121
      %s123 = sshll.u32 [#allocation13], 4
      %s124 = int_to_ptr.vmem [resolvable:$true] %s123
      %129 = dma.hbm_to_vmem [thread:$0]  %s11, 8192, %s124, [#allocation12], 128, 128, 8
    $region49: #{forward.1} parent=1 // pred_fallthru
      _
    // Predicated region
    $region50: #{forward.1} parent=1 // pred_check
      _
    $region51: #{forward.1} parent=1 // pred_check_branch
      %131 = sbr.rel (0) target = $region53
    $region52: #{forward.1} parent=1 // pred_region
      _
    $region53: #{forward.1} parent=1 // pred_fallthru
      _
    // Predicated region
    $region54: #{forward.1} parent=1 // pred_check
      _
    $region55: #{forward.1} parent=1 // pred_check_branch
      %133 = sbr.rel (0) target = $region57
    $region56: #{forward.1} parent=1 // pred_region
      %s135 = ssub.s32 512, 512
      %136 = vsyncadd [#allocation15], %s135
      %s137 = sshll.u32 [#allocation14], 4
      %s138 = int_to_ptr.vmem [resolvable:$true] %s137
      %143 = dma.hbm_to_vmem [thread:$0]  %s13, 512, %s138, [#allocation15], 128, 128, 8
    $region57: #{forward.1} parent=1 // pred_fallthru
      _
    // Predicated region
    $region58: #{forward.1} parent=1 // pred_check
      _
    $region59: #{forward.1} parent=1 // pred_check_branch
      %145 = sbr.rel (0) target = $region61
    $region60: #{forward.1} parent=1 // pred_region
      %s147 = ssub.s32 16, 16
      %148 = vsyncadd [#allocation15], %s147
      %s150 = sshll.u32 [#allocation16], 4
      %s151 = int_to_ptr.vmem [resolvable:$true] %s150
      %153 = dma.hbm_to_vmem [thread:$0]  %s14, 16, %s151, [#allocation15]
    $region61: #{forward.1} parent=1 // pred_fallthru
      _
    // Predicated region
    $region62: #{forward.1} parent=1 // pred_check
      _
    $region63: #{forward.1} parent=1 // pred_check_branch
      %155 = sbr.rel (0) target = $region65
    $region64: #{forward.1} parent=1 // pred_region
      %s157 = ssub.s32 16, 16
      %158 = vsyncadd [#allocation18], %s157
      %s160 = sshll.u32 [#allocation17], 4
      %s161 = int_to_ptr.vmem [resolvable:$true] %s160
      %163 = dma.hbm_to_vmem [thread:$0]  %s15, 16, %s161, [#allocation18]
    $region65: #{forward.1} parent=1 // pred_fallthru
      _
    // Predicated region
    $region66: #{forward.1} parent=1 // pred_check
      _
    $region67: #{forward.1} parent=1 // pred_check_branch
      %165 = sbr.rel (0) target = $region69
    $region68: #{forward.1} parent=1 // pred_region
      %s167 = ssub.s32 256, 256
      %168 = vsyncadd [#allocation18], %s167
      %s169 = sshll.u32 [#allocation19], 4
      %s170 = int_to_ptr.vmem [resolvable:$true] %s169
      %175 = dma.hbm_to_vmem [thread:$0]  %s16, 256, %s170, [#allocation18], 64, 64, 4
    $region69: #{forward.1} parent=1 // pred_fallthru
      _
    // Predicated region
    $region70: #{forward.1} parent=1 // pred_check
      _
    $region71: #{forward.1} parent=1 // pred_check_branch
      %177 = sbr.rel (0) target = $region73
    $region72: #{forward.1} parent=1 // pred_region
      %s179 = ssub.s32 8192, 8192
      %180 = vsyncadd [#allocation21], %s179
      %s181 = sshll.u32 [#allocation20], 4
      %s182 = int_to_ptr.vmem [resolvable:$true] %s181
      %187 = dma.hbm_to_vmem [thread:$0]  %s17, 8192, %s182, [#allocation21], 128, 128, 8
    $region73: #{forward.1} parent=1 // pred_fallthru
      _
    // Predicated region
    $region74: #{forward.1} parent=1 // pred_check
      _
    $region75: #{forward.1} parent=1 // pred_check_branch
      %189 = sbr.rel (0) target = $region77
    $region76: #{forward.1} parent=1 // pred_region
      _
    $region77: #{forward.1} parent=1 // pred_fallthru
      _
    // Predicated region
    $region78: #{forward.1} parent=1 // pred_check
      _
    $region79: #{forward.1} parent=1 // pred_check_branch
      %191 = sbr.rel (0) target = $region81
    $region80: #{forward.1} parent=1 // pred_region
      %s193 = ssub.s32 1024, 1024
      %194 = vsyncadd [#allocation21], %s193
      %s195 = sshll.u32 [#allocation22], 4
      %s196 = int_to_ptr.vmem [resolvable:$true] %s195
      %201 = dma.hbm_to_vmem [thread:$0]  %s19, 1024, %s196, [#allocation21], 128, 128, 8
    $region81: #{forward.1} parent=1 // pred_fallthru
      _
    // Predicated region
    $region82: #{forward.1} parent=1 // pred_check
      _
    $region83: #{forward.1} parent=1 // pred_check_branch
      %203 = sbr.rel (0) target = $region85
    $region84: #{forward.1} parent=1 // pred_region
      %s205 = ssub.s32 16, 16
      %206 = vsyncadd [#allocation24], %s205
      %s208 = sshll.u32 [#allocation23], 4
      %s209 = int_to_ptr.vmem [resolvable:$true] %s208
      %211 = dma.hbm_to_vmem [thread:$0]  %s20, 16, %s209, [#allocation24]
    $region85: #{forward.1} parent=1 // pred_fallthru
      _
    // Predicated region
    $region86: #{forward.1} parent=1 // pred_check
      _
    $region87: #{forward.1} parent=1 // pred_check_branch
      %213 = sbr.rel (0) target = $region89
    $region88: #{forward.1} parent=1 // pred_region
      %s215 = ssub.s32 16, 16
      %216 = vsyncadd [#allocation24], %s215
      %s218 = sshll.u32 [#allocation25], 4
      %s219 = int_to_ptr.vmem [resolvable:$true] %s218
      %221 = dma.hbm_to_vmem [thread:$0]  %s21, 16, %s219, [#allocation24]
    $region89: #{forward.1} parent=1 // pred_fallthru
      _
    // Predicated region
    $region90: #{forward.1} parent=1 // pred_check
      _
    $region91: #{forward.1} parent=1 // pred_check_branch
      %223 = sbr.rel (0) target = $region93
    $region92: #{forward.1} parent=1 // pred_region
      _
    $region93: #{forward.1} parent=1 // pred_fallthru
      _
    // Predicated region
    $region94: #{forward.1} parent=1 // pred_check
      _
    $region95: #{forward.1} parent=1 // pred_check_branch
      %225 = sbr.rel (0) target = $region97
    $region96: #{forward.1} parent=1 // pred_region
      _
    $region97: #{forward.1} parent=1 // pred_fallthru
      _
    // Predicated region
    $region98: #{forward.1} parent=1 // pred_check
      _
    $region99: #{forward.1} parent=1 // pred_check_branch
      %227 = sbr.rel (0) target = $region101
    $region100: #{forward.1} parent=1 // pred_region
      _
    $region101: #{forward.1} parent=1 // pred_fallthru
      _
    // Predicated region
    $region102: #{forward.1} parent=1 // pred_check
      _
    $region103: #{forward.1} parent=1 // pred_check_branch
      %229 = sbr.rel (0) target = $region105
    $region104: #{forward.1} parent=1 // pred_region
      %230 = dma.done [#allocation4], 4096
    $region105: #{forward.1} parent=1 // pred_fallthru
      _
    // Predicated region
    $region106: #{forward.1} parent=1 // pred_check
      _
    $region107: #{forward.1} parent=1 // pred_check_branch
      %232 = sbr.rel (0) target = $region109
    $region108: #{forward.1} parent=1 // pred_region
      %233 = dma.done [#allocation6], 32
    $region109: #{forward.1} parent=1 // pred_fallthru
      _
    // Predicated region
    $region110: #{forward.1} parent=1 // pred_check
      _
    $region111: #{forward.1} parent=1 // pred_check_branch
      %235 = sbr.rel (0) target = $region113
    $region112: #{forward.1} parent=1 // pred_region
      %236 = dma.done [#allocation6], 1024
    $region113: #{forward.1} parent=1 // pred_fallthru
      _
    // Predicated region
    $region114: #{forward.1} parent=1 // pred_check
      _
    $region115: #{forward.1} parent=1 // pred_check_branch
      %238 = sbr.rel (0) target = $region117
    $region116: #{forward.1} parent=1 // pred_region
      %239 = dma.done [#allocation9], 256
    $region117: #{forward.1} parent=1 // pred_fallthru
      _
    // Predicated region
    $region118: #{forward.1} parent=1 // pred_check
      _
    $region119: #{forward.1} parent=1 // pred_check_branch
      %241 = sbr.rel (0) target = $region121
    $region120: #{forward.1} parent=1 // pred_region
      %242 = dma.done [#allocation9], 16
    $region121: #{forward.1} parent=1 // pred_fallthru
      _
    // Predicated region
    $region122: #{forward.1} parent=1 // pred_check
      _
    $region123: #{forward.1} parent=1 // pred_check_branch
      %244 = sbr.rel (0) target = $region125
    $region124: #{forward.1} parent=1 // pred_region
      %245 = dma.done [#allocation12], 512
    $region125: #{forward.1} parent=1 // pred_fallthru
      _
    // Predicated region
    $region126: #{forward.1} parent=1 // pred_check
      _
    $region127: #{forward.1} parent=1 // pred_check_branch
      %247 = sbr.rel (0) target = $region129
    $region128: #{forward.1} parent=1 // pred_region
      %248 = dma.done [#allocation12], 8192
    $region129: #{forward.1} parent=1 // pred_fallthru
      _
    // Predicated region
    $region130: #{forward.1} parent=1 // pred_check
      _
    $region131: #{forward.1} parent=1 // pred_check_branch
      %250 = sbr.rel (0) target = $region133
    $region132: #{forward.1} parent=1 // pred_region
      %251 = dma.done [#allocation15], 512
    $region133: #{forward.1} parent=1 // pred_fallthru
      _
    // Predicated region
    $region134: #{forward.1} parent=1 // pred_check
      _
    $region135: #{forward.1} parent=1 // pred_check_branch
      %253 = sbr.rel (0) target = $region137
    $region136: #{forward.1} parent=1 // pred_region
      %254 = dma.done [#allocation15], 16
    $region137: #{forward.1} parent=1 // pred_fallthru
      _
    // Predicated region
    $region138: #{forward.1} parent=1 // pred_check
      _
    $region139: #{forward.1} parent=1 // pred_check_branch
      %256 = sbr.rel (0) target = $region141
    $region140: #{forward.1} parent=1 // pred_region
      %257 = dma.done [#allocation18], 16
    $region141: #{forward.1} parent=1 // pred_fallthru
      _
    // Predicated region
    $region142: #{forward.1} parent=1 // pred_check
      _
    $region143: #{forward.1} parent=1 // pred_check_branch
      %259 = sbr.rel (0) target = $region145
    $region144: #{forward.1} parent=1 // pred_region
      %260 = dma.done [#allocation18], 256
    $region145: #{forward.1} parent=1 // pred_fallthru
      _
    // Predicated region
    $region146: #{forward.1} parent=1 // pred_check
      _
    $region147: #{forward.1} parent=1 // pred_check_branch
      %262 = sbr.rel (0) target = $region149
    $region148: #{forward.1} parent=1 // pred_region
      %263 = dma.done [#allocation21], 8192
    $region149: #{forward.1} parent=1 // pred_fallthru
      _
    // Predicated region
    $region150: #{forward.1} parent=1 // pred_check
      _
    $region151: #{forward.1} parent=1 // pred_check_branch
      %265 = sbr.rel (0) target = $region153
    $region152: #{forward.1} parent=1 // pred_region
      %266 = dma.done [#allocation21], 1024
    $region153: #{forward.1} parent=1 // pred_fallthru
      _
    // Predicated region
    $region154: #{forward.1} parent=1 // pred_check
      _
    $region155: #{forward.1} parent=1 // pred_check_branch
      %268 = sbr.rel (0) target = $region157
    $region156: #{forward.1} parent=1 // pred_region
      %269 = dma.done [#allocation24], 16
    $region157: #{forward.1} parent=1 // pred_fallthru
      _
    // Predicated region
    $region158: #{forward.1} parent=1 // pred_check
      _
    $region159: #{forward.1} parent=1 // pred_check_branch
      %271 = sbr.rel (0) target = $region161
    $region160: #{forward.1} parent=1 // pred_region
      %272 = dma.done [#allocation24], 16
    $region161: #{forward.1} parent=1 // pred_fallthru
      _
    %v273 = vld [vmem:[%s0] sm:$0xff]
    %v274 = vld [vmem:[%s0 + $0x8] sm:$0xff]
    %v275 = vld [vmem:[%s0 + $0x10] sm:$0xff]
    %v276 = vld [vmem:[%s0 + $0x18] sm:$0xff]
    %v277 = vld [vmem:[%s0 + $0x20] sm:$0xff]
    %v278 = vld [vmem:[%s0 + $0x28] sm:$0xff]
    %v279 = vld [vmem:[%s0 + $0x30] sm:$0xff]
    %v280 = vld [vmem:[%s0 + $0x38] sm:$0xff]
    %v281 = vld [vmem:[%s0 + $0x40] sm:$0xff]
    %v282 = vld [vmem:[%s0 + $0x48] sm:$0xff]
    %v283 = vld [vmem:[%s0 + $0x50] sm:$0xff]
    %v284 = vld [vmem:[%s0 + $0x58] sm:$0xff]
    %v285 = vld [vmem:[%s0 + $0x60] sm:$0xff]
    %v286 = vld [vmem:[%s0 + $0x68] sm:$0xff]
    %v287 = vld [vmem:[%s0 + $0x70] sm:$0xff]
    %v288 = vld [vmem:[%s0 + $0x78] sm:$0xff]
    %v289 = vld [vmem:[%s0 + $0x80] sm:$0xff]
    %v290 = vld [vmem:[%s0 + $0x88] sm:$0xff]
    %v291 = vld [vmem:[%s0 + $0x90] sm:$0xff]
    %v292 = vld [vmem:[%s0 + $0x98] sm:$0xff]
    %v293 = vld [vmem:[%s0 + $0xa0] sm:$0xff]
    %v294 = vld [vmem:[%s0 + $0xa8] sm:$0xff]
    %v295 = vld [vmem:[%s0 + $0xb0] sm:$0xff]
    %v296 = vld [vmem:[%s0 + $0xb8] sm:$0xff]
    %v297 = vld [vmem:[%s0 + $0xc0] sm:$0xff]
    %v298 = vld [vmem:[%s0 + $0xc8] sm:$0xff]
    %v299 = vld [vmem:[%s0 + $0xd0] sm:$0xff]
    %v300 = vld [vmem:[%s0 + $0xd8] sm:$0xff]
    %v301 = vld [vmem:[%s0 + $0xe0] sm:$0xff]
    %v302 = vld [vmem:[%s0 + $0xe8] sm:$0xff]
    %v303 = vld [vmem:[%s0 + $0xf0] sm:$0xff]
    %v304 = vld [vmem:[%s0 + $0xf8] sm:$0xff]
    %v305 = vld [vmem:[#allocation3] sm:$0xff]
    %v306 = vld [vmem:[#allocation3 + $0x8] sm:$0xff]
    %v307 = vld [vmem:[#allocation3 + $0x10] sm:$0xff]
    %v308 = vld [vmem:[#allocation3 + $0x18] sm:$0xff]
    %v309 = vld [vmem:[#allocation3 + $0x20] sm:$0xff]
    %v310 = vld [vmem:[#allocation3 + $0x28] sm:$0xff]
    %v311 = vld [vmem:[#allocation3 + $0x30] sm:$0xff]
    %v312 = vld [vmem:[#allocation3 + $0x38] sm:$0xff]
    %313 = vmatprep.subr.mxu0 %v274
    %314 = vmatpush1.msra.mxu0 %v273
    %315 = vmatprep.subr.mxu0 %v276
    %316 = vmatpush1.msra.mxu0 %v275
    %317 = vmatprep.subr.mxu0 %v278
    %318 = vmatpush1.msra.mxu0 %v277
    %319 = vmatprep.subr.mxu0 %v280
    %320 = vmatpush1.msra.mxu0 %v279
    %321 = vmatprep.subr.mxu0 %v282
    %322 = vmatpush1.msra.mxu0 %v281
    %323 = vmatprep.subr.mxu0 %v284
    %324 = vmatpush1.msra.mxu0 %v283
    %325 = vmatprep.subr.mxu0 %v286
    %326 = vmatpush1.msra.mxu0 %v285
    %327 = vmatprep.subr.mxu0 %v288
    %328 = vmatpush1.msra.mxu0 %v287
    %329 = vmatprep.subr.mxu0 %v290
    %330 = vmatpush1.msra.mxu0 %v289
    %331 = vmatprep.subr.mxu0 %v292
    %332 = vmatpush1.msra.mxu0 %v291
    %333 = vmatprep.subr.mxu0 %v294
    %334 = vmatpush1.msra.mxu0 %v293
    %335 = vmatprep.subr.mxu0 %v296
    %336 = vmatpush1.msra.mxu0 %v295
    %337 = vmatprep.subr.mxu0 %v298
    %338 = vmatpush1.msra.mxu0 %v297
    %339 = vmatprep.subr.mxu0 %v300
    %340 = vmatpush1.msra.mxu0 %v299
    %341 = vmatprep.subr.mxu0 %v302
    %342 = vmatpush1.msra.mxu0 %v301
    %343 = vmatprep.subr.mxu0 %v304
    %344 = vmatpush1.msra.mxu0 %v303
    %345 = vmatprep.subr.mxu0 0.0
    %346 = vmatpush1.msra.mxu0 0.0
    %347 = vmatprep.subr.mxu0 0.0
    %348 = vmatpush1.msra.mxu0 0.0
    %349 = vmatprep.subr.mxu0 0.0
    %350 = vmatpush1.msra.mxu0 0.0
    %351 = vmatprep.subr.mxu0 0.0
    %352 = vmatpush1.msra.mxu0 0.0
    %353 = vmatprep.subr.mxu0 0.0
    %354 = vmatpush1.msra.mxu0 0.0
    %355 = vmatprep.subr.mxu0 0.0
    %356 = vmatpush1.msra.mxu0 0.0
    %357 = vmatprep.subr.mxu0 0.0
    %358 = vmatpush1.msra.mxu0 0.0
    %359 = vmatprep.subr.mxu0 0.0
    %360 = vmatpush1.msra.mxu0 0.0
    %361 = vmatprep.subr.mxu0 0.0
    %362 = vmatpush1.msra.mxu0 0.0
    %363 = vmatprep.subr.mxu0 0.0
    %364 = vmatpush1.msra.mxu0 0.0
    %365 = vmatprep.subr.mxu0 0.0
    %366 = vmatpush1.msra.mxu0 0.0
    %367 = vmatprep.subr.mxu0 0.0
    %368 = vmatpush1.msra.mxu0 0.0
    %369 = vmatprep.subr.mxu0 0.0
    %370 = vmatpush1.msra.mxu0 0.0
    %371 = vmatprep.subr.mxu0 0.0
    %372 = vmatpush1.msra.mxu0 0.0
    %373 = vmatprep.subr.mxu0 0.0
    %374 = vmatpush1.msra.mxu0 0.0
    %375 = vmatprep.subr.mxu0 0.0
    %376 = vmatpush1.msra.mxu0 0.0
    %377 = vmatprep.mubr.f32.mxu0 0.0
    %378 = vmatmul.mubr.f32.gmra.mrb[0].mxu0 %v305
    %v379 = vpop.f32.mrb[0].mxu0
    %v380 = vadd.f32 0.0, %v379
    %v381 = vpop.f32.mrb[0].mxu0
    %v382 = vadd.f32 0.0, %v381
    %383 = vmatprep.mubr.f32.mxu0 0.0
    %384 = vmatmul.mubr.f32.gmra.mrb[0].mxu0 %v306
    %v385 = vpop.f32.mrb[0].mxu0
    %v386 = vadd.f32 0.0, %v385
    %v387 = vpop.f32.mrb[0].mxu0
    %v388 = vadd.f32 0.0, %v387
    %389 = vmatprep.mubr.f32.mxu0 0.0
    %390 = vmatmul.mubr.f32.gmra.mrb[0].mxu0 %v307
    %v391 = vpop.f32.mrb[0].mxu0
    %v392 = vadd.f32 0.0, %v391
    %v393 = vpop.f32.mrb[0].mxu0
    %v394 = vadd.f32 0.0, %v393
    %395 = vmatprep.mubr.f32.mxu0 0.0
    %396 = vmatmul.mubr.f32.gmra.mrb[0].mxu0 %v308
    %v397 = vpop.f32.mrb[0].mxu0
    %v398 = vadd.f32 0.0, %v397
    %v399 = vpop.f32.mrb[0].mxu0
    %v400 = vadd.f32 0.0, %v399
    %401 = vmatprep.mubr.f32.mxu0 0.0
    %402 = vmatmul.mubr.f32.gmra.mrb[0].mxu0 %v309
    %v403 = vpop.f32.mrb[0].mxu0
    %v404 = vadd.f32 0.0, %v403
    %v405 = vpop.f32.mrb[0].mxu0
    %v406 = vadd.f32 0.0, %v405
    %407 = vmatprep.mubr.f32.mxu0 0.0
    %408 = vmatmul.mubr.f32.gmra.mrb[0].mxu0 %v310
    %v409 = vpop.f32.mrb[0].mxu0
    %v410 = vadd.f32 0.0, %v409
    %v411 = vpop.f32.mrb[0].mxu0
    %v412 = vadd.f32 0.0, %v411
    %413 = vmatprep.mubr.f32.mxu0 0.0
    %414 = vmatmul.mubr.f32.gmra.mrb[0].mxu0 %v311
    %v415 = vpop.f32.mrb[0].mxu0
    %v416 = vadd.f32 0.0, %v415
    %v417 = vpop.f32.mrb[0].mxu0
    %v418 = vadd.f32 0.0, %v417
    %419 = vmatprep.mubr.f32.mxu0 0.0
    %420 = vmatmul.mubr.f32.gmra.mrb[0].mxu0 %v312
    %v421 = vpop.f32.mrb[0].mxu0
    %v422 = vadd.f32 0.0, %v421
    %v423 = vpop.f32.mrb[0].mxu0
    %v424 = vadd.f32 0.0, %v423
    %425 = vdwg.mxu0
    %v426 = vld [vmem:[%s2] sm:$0xff]
    %v427 = vld [vmem:[%s2 + $0x8] sm:$0xff]
    %v428 = vld [vmem:[%s2 + $0x10] sm:$0xff]
    %v429 = vld [vmem:[%s2 + $0x18] sm:$0xff]
    %v430 = vld [vmem:[%s2 + $0x20] sm:$0xff]
    %v431 = vld [vmem:[%s2 + $0x28] sm:$0xff]
    %v432 = vld [vmem:[%s2 + $0x30] sm:$0xff]
    %v433 = vld [vmem:[%s2 + $0x38] sm:$0xff]
    %v434 = vld [vmem:[%s2 + $0x40] sm:$0xff]
    %v435 = vld [vmem:[%s2 + $0x48] sm:$0xff]
    %v436 = vld [vmem:[%s2 + $0x50] sm:$0xff]
    %v437 = vld [vmem:[%s2 + $0x58] sm:$0xff]
    %v438 = vld [vmem:[%s2 + $0x60] sm:$0xff]
    %v439 = vld [vmem:[%s2 + $0x68] sm:$0xff]
    %v440 = vld [vmem:[%s2 + $0x70] sm:$0xff]
    %v441 = vld [vmem:[%s2 + $0x78] sm:$0xff]
    %v442 = vld [vmem:[%s2 + $0x80] sm:$0xff]
    %v443 = vld [vmem:[%s2 + $0x88] sm:$0xff]
    %v444 = vld [vmem:[%s2 + $0x90] sm:$0xff]
    %v445 = vld [vmem:[%s2 + $0x98] sm:$0xff]
    %v446 = vld [vmem:[%s2 + $0xa0] sm:$0xff]
    %v447 = vld [vmem:[%s2 + $0xa8] sm:$0xff]
    %v448 = vld [vmem:[%s2 + $0xb0] sm:$0xff]
    %v449 = vld [vmem:[%s2 + $0xb8] sm:$0xff]
    %v450 = vld [vmem:[%s2 + $0xc0] sm:$0xff]
    %v451 = vld [vmem:[%s2 + $0xc8] sm:$0xff]
    %v452 = vld [vmem:[%s2 + $0xd0] sm:$0xff]
    %v453 = vld [vmem:[%s2 + $0xd8] sm:$0xff]
    %v454 = vld [vmem:[%s2 + $0xe0] sm:$0xff]
    %v455 = vld [vmem:[%s2 + $0xe8] sm:$0xff]
    %v456 = vld [vmem:[%s2 + $0xf0] sm:$0xff]
    %v457 = vld [vmem:[%s2 + $0xf8] sm:$0xff]
    %v458 = vld [vmem:[%s2 + $0x100] sm:$0xff]
    %v459 = vld [vmem:[%s2 + $0x108] sm:$0xff]
    %v460 = vld [vmem:[%s2 + $0x110] sm:$0xff]
    %v461 = vld [vmem:[%s2 + $0x118] sm:$0xff]
    %v462 = vld [vmem:[%s2 + $0x120] sm:$0xff]
    %v463 = vld [vmem:[%s2 + $0x128] sm:$0xff]
    %v464 = vld [vmem:[%s2 + $0x130] sm:$0xff]
    %v465 = vld [vmem:[%s2 + $0x138] sm:$0xff]
    %v466 = vld [vmem:[%s2 + $0x140] sm:$0xff]
    %v467 = vld [vmem:[%s2 + $0x148] sm:$0xff]
    %v468 = vld [vmem:[%s2 + $0x150] sm:$0xff]
    %v469 = vld [vmem:[%s2 + $0x158] sm:$0xff]
    %v470 = vld [vmem:[%s2 + $0x160] sm:$0xff]
    %v471 = vld [vmem:[%s2 + $0x168] sm:$0xff]
    %v472 = vld [vmem:[%s2 + $0x170] sm:$0xff]
    %v473 = vld [vmem:[%s2 + $0x178] sm:$0xff]
    %s474 = scalar_lea.vmem [#allocation3], 64
    %v475 = vld [vmem:[%s474] sm:$0xff]
    %v476 = vld [vmem:[%s474 + $0x8] sm:$0xff]
    %v477 = vld [vmem:[%s474 + $0x10] sm:$0xff]
    %v478 = vld [vmem:[%s474 + $0x18] sm:$0xff]
    %v479 = vld [vmem:[%s474 + $0x20] sm:$0xff]
    %v480 = vld [vmem:[%s474 + $0x28] sm:$0xff]
    %v481 = vld [vmem:[%s474 + $0x30] sm:$0xff]
    %v482 = vld [vmem:[%s474 + $0x38] sm:$0xff]
    %483 = vmatprep.subr.mxu0 %v274
    %484 = vmatpush1.msra.mxu0 %v273
    %485 = vmatprep.subr.mxu0 %v276
    %486 = vmatpush1.msra.mxu0 %v275
    %487 = vmatprep.subr.mxu0 %v278
    %488 = vmatpush1.msra.mxu0 %v277
    %489 = vmatprep.subr.mxu0 %v280
    %490 = vmatpush1.msra.mxu0 %v279
    %491 = vmatprep.subr.mxu0 %v282
    %492 = vmatpush1.msra.mxu0 %v281
    %493 = vmatprep.subr.mxu0 %v284
    %494 = vmatpush1.msra.mxu0 %v283
    %495 = vmatprep.subr.mxu0 %v286
    %496 = vmatpush1.msra.mxu0 %v285
    %497 = vmatprep.subr.mxu0 %v288
    %498 = vmatpush1.msra.mxu0 %v287
    %499 = vmatprep.subr.mxu0 %v290
    %500 = vmatpush1.msra.mxu0 %v289
    %501 = vmatprep.subr.mxu0 %v292
    %502 = vmatpush1.msra.mxu0 %v291
    %503 = vmatprep.subr.mxu0 %v294
    %504 = vmatpush1.msra.mxu0 %v293
    %505 = vmatprep.subr.mxu0 %v296
    %506 = vmatpush1.msra.mxu0 %v295
    %507 = vmatprep.subr.mxu0 %v298
    %508 = vmatpush1.msra.mxu0 %v297
    %509 = vmatprep.subr.mxu0 %v300
    %510 = vmatpush1.msra.mxu0 %v299
    %511 = vmatprep.subr.mxu0 %v302
    %512 = vmatpush1.msra.mxu0 %v301
    %513 = vmatprep.subr.mxu0 %v304
    %514 = vmatpush1.msra.mxu0 %v303
    %515 = vmatprep.subr.mxu0 0.0
    %516 = vmatpush1.msra.mxu0 0.0
    %517 = vmatprep.subr.mxu0 0.0
    %518 = vmatpush1.msra.mxu0 0.0
    %519 = vmatprep.subr.mxu0 0.0
    %520 = vmatpush1.msra.mxu0 0.0
    %521 = vmatprep.subr.mxu0 0.0
    %522 = vmatpush1.msra.mxu0 0.0
    %523 = vmatprep.subr.mxu0 0.0
    %524 = vmatpush1.msra.mxu0 0.0
    %525 = vmatprep.subr.mxu0 0.0
    %526 = vmatpush1.msra.mxu0 0.0
    %527 = vmatprep.subr.mxu0 0.0
    %528 = vmatpush1.msra.mxu0 0.0
    %529 = vmatprep.subr.mxu0 0.0
    %530 = vmatpush1.msra.mxu0 0.0
    %531 = vmatprep.subr.mxu0 0.0
    %532 = vmatpush1.msra.mxu0 0.0
    %533 = vmatprep.subr.mxu0 0.0
    %534 = vmatpush1.msra.mxu0 0.0
    %535 = vmatprep.subr.mxu0 0.0
    %536 = vmatpush1.msra.mxu0 0.0
    %537 = vmatprep.subr.mxu0 0.0
    %538 = vmatpush1.msra.mxu0 0.0
    %539 = vmatprep.subr.mxu0 0.0
    %540 = vmatpush1.msra.mxu0 0.0
    %541 = vmatprep.subr.mxu0 0.0
    %542 = vmatpush1.msra.mxu0 0.0
    %543 = vmatprep.subr.mxu0 0.0
    %544 = vmatpush1.msra.mxu0 0.0
    %545 = vmatprep.subr.mxu0 0.0
    %546 = vmatpush1.msra.mxu0 0.0
    %547 = vmatprep.mubr.f32.mxu0 0.0
    %548 = vmatmul.mubr.f32.gmra.mrb[0].mxu0 %v475
    %v549 = vpop.f32.mrb[0].mxu0
    %v550 = vadd.f32 0.0, %v549
    %v551 = vpop.f32.mrb[0].mxu0
    %v552 = vadd.f32 0.0, %v551
    %553 = vmatprep.mubr.f32.mxu0 0.0
    %554 = vmatmul.mubr.f32.gmra.mrb[0].mxu0 %v476
    %v555 = vpop.f32.mrb[0].mxu0
    %v556 = vadd.f32 0.0, %v555
    %v557 = vpop.f32.mrb[0].mxu0
    %v558 = vadd.f32 0.0, %v557
    %559 = vmatprep.mubr.f32.mxu0 0.0
    %560 = vmatmul.mubr.f32.gmra.mrb[0].mxu0 %v477
    %v561 = vpop.f32.mrb[0].mxu0
    %v562 = vadd.f32 0.0, %v561
    %v563 = vpop.f32.mrb[0].mxu0
    %v564 = vadd.f32 0.0, %v563
    %565 = vmatprep.mubr.f32.mxu0 0.0
    %566 = vmatmul.mubr.f32.gmra.mrb[0].mxu0 %v478
    %v567 = vpop.f32.mrb[0].mxu0
    %v568 = vadd.f32 0.0, %v567
    %v569 = vpop.f32.mrb[0].mxu0
    %v570 = vadd.f32 0.0, %v569
    %571 = vmatprep.mubr.f32.mxu0 0.0
    %572 = vmatmul.mubr.f32.gmra.mrb[0].mxu0 %v479
    %v573 = vpop.f32.mrb[0].mxu0
    %v574 = vadd.f32 0.0, %v573
    %v575 = vpop.f32.mrb[0].mxu0
    %v576 = vadd.f32 0.0, %v575
    %577 = vmatprep.mubr.f32.mxu0 0.0
    %578 = vmatmul.mubr.f32.gmra.mrb[0].mxu0 %v480
    %v579 = vpop.f32.mrb[0].mxu0
    %v580 = vadd.f32 0.0, %v579
    %v581 = vpop.f32.mrb[0].mxu0
    %v582 = vadd.f32 0.0, %v581
    %583 = vmatprep.mubr.f32.mxu0 0.0
    %584 = vmatmul.mubr.f32.gmra.mrb[0].mxu0 %v481
    %v585 = vpop.f32.mrb[0].mxu0
    %v586 = vadd.f32 0.0, %v585
    %v587 = vpop.f32.mrb[0].mxu0
    %v588 = vadd.f32 0.0, %v587
    %589 = vmatprep.mubr.f32.mxu0 0.0
    %590 = vmatmul.mubr.f32.gmra.mrb[0].mxu0 %v482
    %v591 = vpop.f32.mrb[0].mxu0
    %v592 = vadd.f32 0.0, %v591
    %v593 = vpop.f32.mrb[0].mxu0
    %v594 = vadd.f32 0.0, %v593
    %595 = vdwg.mxu0
    %s596 = scalar_lea.vmem %s2, 384
    %v597 = vld [vmem:[%s596] sm:$0xff]
    %v598 = vld [vmem:[%s596 + $0x8] sm:$0xff]
    %v599 = vld [vmem:[%s596 + $0x10] sm:$0xff]
    %v600 = vld [vmem:[%s596 + $0x18] sm:$0xff]
    %v601 = vld [vmem:[%s596 + $0x20] sm:$0xff]
    %v602 = vld [vmem:[%s596 + $0x28] sm:$0xff]
    %v603 = vld [vmem:[%s596 + $0x30] sm:$0xff]
    %v604 = vld [vmem:[%s596 + $0x38] sm:$0xff]
    %v605 = vld [vmem:[%s596 + $0x40] sm:$0xff]
    %v606 = vld [vmem:[%s596 + $0x48] sm:$0xff]
    %v607 = vld [vmem:[%s596 + $0x50] sm:$0xff]
    %v608 = vld [vmem:[%s596 + $0x58] sm:$0xff]
    %v609 = vld [vmem:[%s596 + $0x60] sm:$0xff]
    %v610 = vld [vmem:[%s596 + $0x68] sm:$0xff]
    %v611 = vld [vmem:[%s596 + $0x70] sm:$0xff]
    %v612 = vld [vmem:[%s596 + $0x78] sm:$0xff]
    %v613 = vld [vmem:[%s596 + $0x80] sm:$0xff]
    %v614 = vld [vmem:[%s596 + $0x88] sm:$0xff]
    %v615 = vld [vmem:[%s596 + $0x90] sm:$0xff]
    %v616 = vld [vmem:[%s596 + $0x98] sm:$0xff]
    %v617 = vld [vmem:[%s596 + $0xa0] sm:$0xff]
    %v618 = vld [vmem:[%s596 + $0xa8] sm:$0xff]
    %v619 = vld [vmem:[%s596 + $0xb0] sm:$0xff]
    %v620 = vld [vmem:[%s596 + $0xb8] sm:$0xff]
    %v621 = vld [vmem:[%s596 + $0xc0] sm:$0xff]
    %v622 = vld [vmem:[%s596 + $0xc8] sm:$0xff]
    %v623 = vld [vmem:[%s596 + $0xd0] sm:$0xff]
    %v624 = vld [vmem:[%s596 + $0xd8] sm:$0xff]
    %v625 = vld [vmem:[%s596 + $0xe0] sm:$0xff]
    %v626 = vld [vmem:[%s596 + $0xe8] sm:$0xff]
    %v627 = vld [vmem:[%s596 + $0xf0] sm:$0xff]
    %v628 = vld [vmem:[%s596 + $0xf8] sm:$0xff]
    %v629 = vld [vmem:[%s596 + $0x100] sm:$0xff]
    %v630 = vld [vmem:[%s596 + $0x108] sm:$0xff]
    %v631 = vld [vmem:[%s596 + $0x110] sm:$0xff]
    %v632 = vld [vmem:[%s596 + $0x118] sm:$0xff]
    %v633 = vld [vmem:[%s596 + $0x120] sm:$0xff]
    %v634 = vld [vmem:[%s596 + $0x128] sm:$0xff]
    %v635 = vld [vmem:[%s596 + $0x130] sm:$0xff]
    %v636 = vld [vmem:[%s596 + $0x138] sm:$0xff]
    %v637 = vld [vmem:[%s596 + $0x140] sm:$0xff]
    %v638 = vld [vmem:[%s596 + $0x148] sm:$0xff]
    %v639 = vld [vmem:[%s596 + $0x150] sm:$0xff]
    %v640 = vld [vmem:[%s596 + $0x158] sm:$0xff]
    %v641 = vld [vmem:[%s596 + $0x160] sm:$0xff]
    %v642 = vld [vmem:[%s596 + $0x168] sm:$0xff]
    %v643 = vld [vmem:[%s596 + $0x170] sm:$0xff]
    %v644 = vld [vmem:[%s596 + $0x178] sm:$0xff]
    %vm645 = vcmask 523264
    %v647 = vsel %vm645, %v552, 0
    %v650 = vsel %vm645, %v558, 0
    %v653 = vsel %vm645, %v564, 0
    %v656 = vsel %vm645, %v570, 0
    %v659 = vsel %vm645, %v576, 0
    %v662 = vsel %vm645, %v582, 0
    %v665 = vsel %vm645, %v588, 0
    %v668 = vsel %vm645, %v594, 0
    %670 = vmatprep.subr.mxu0 %v598
    %671 = vmatpush1.msra.mxu0 %v597
    %672 = vmatprep.subr.mxu0 %v600
    %673 = vmatpush1.msra.mxu0 %v599
    %674 = vmatprep.subr.mxu0 %v602
    %675 = vmatpush1.msra.mxu0 %v601
    %676 = vmatprep.subr.mxu0 %v604
    %677 = vmatpush1.msra.mxu0 %v603
    %678 = vmatprep.subr.mxu0 %v606
    %679 = vmatpush1.msra.mxu0 %v605
    %680 = vmatprep.subr.mxu0 %v608
    %681 = vmatpush1.msra.mxu0 %v607
    %682 = vmatprep.subr.mxu0 %v610
    %683 = vmatpush1.msra.mxu0 %v609
    %684 = vmatprep.subr.mxu0 %v612
    %685 = vmatpush1.msra.mxu0 %v611
    %686 = vmatprep.subr.mxu0 %v614
    %687 = vmatpush1.msra.mxu0 %v613
    %688 = vmatprep.subr.mxu0 %v616
    %689 = vmatpush1.msra.mxu0 %v615
    %690 = vmatprep.subr.mxu0 %v618
    %691 = vmatpush1.msra.mxu0 %v617
    %692 = vmatprep.subr.mxu0 %v620
    %693 = vmatpush1.msra.mxu0 %v619
    %694 = vmatprep.subr.mxu0 %v622
    %695 = vmatpush1.msra.mxu0 %v621
    %696 = vmatprep.subr.mxu0 %v624
    %697 = vmatpush1.msra.mxu0 %v623
    %698 = vmatprep.subr.mxu0 %v626
    %699 = vmatpush1.msra.mxu0 %v625
    %700 = vmatprep.subr.mxu0 %v628
    %701 = vmatpush1.msra.mxu0 %v627
    %702 = vmatprep.subr.mxu0 %v630
    %703 = vmatpush1.msra.mxu0 %v629
    %704 = vmatprep.subr.mxu0 %v632
    %705 = vmatpush1.msra.mxu0 %v631
    %706 = vmatprep.subr.mxu0 %v634
    %707 = vmatpush1.msra.mxu0 %v633
    %708 = vmatprep.subr.mxu0 %v636
    %709 = vmatpush1.msra.mxu0 %v635
    %710 = vmatprep.subr.mxu0 %v638
    %711 = vmatpush1.msra.mxu0 %v637
    %712 = vmatprep.subr.mxu0 %v640
    %713 = vmatpush1.msra.mxu0 %v639
    %714 = vmatprep.subr.mxu0 %v642
    %715 = vmatpush1.msra.mxu0 %v641
    %716 = vmatprep.subr.mxu0 %v644
    %717 = vmatpush1.msra.mxu0 %v643
    %718 = vmatprep.subr.mxu0 0.0
    %719 = vmatpush1.msra.mxu0 0.0
    %720 = vmatprep.subr.mxu0 0.0
    %721 = vmatpush1.msra.mxu0 0.0
    %722 = vmatprep.subr.mxu0 0.0
    %723 = vmatpush1.msra.mxu0 0.0
    %724 = vmatprep.subr.mxu0 0.0
    %725 = vmatpush1.msra.mxu0 0.0
    %726 = vmatprep.subr.mxu0 0.0
    %727 = vmatpush1.msra.mxu0 0.0
    %728 = vmatprep.subr.mxu0 0.0
    %729 = vmatpush1.msra.mxu0 0.0
    %730 = vmatprep.subr.mxu0 0.0
    %731 = vmatpush1.msra.mxu0 0.0
    %732 = vmatprep.subr.mxu0 0.0
    %733 = vmatpush1.msra.mxu0 0.0
    %734 = vmatprep.mubr.f32.mxu0 %v647
    %735 = vmatmul.mubr.f32.gmra.mrb[0].mxu0 %v550
    %v736 = vpop.f32.mrb[0].mxu0
    %v737 = vadd.f32 0.0, %v736
    %v738 = vpop.f32.mrb[0].mxu0
    %v739 = vadd.f32 0.0, %v738
    %740 = vmatprep.mubr.f32.mxu0 %v650
    %741 = vmatmul.mubr.f32.gmra.mrb[0].mxu0 %v556
    %v742 = vpop.f32.mrb[0].mxu0
    %v743 = vadd.f32 0.0, %v742
    %v744 = vpop.f32.mrb[0].mxu0
    %v745 = vadd.f32 0.0, %v744
    %746 = vmatprep.mubr.f32.mxu0 %v653
    %747 = vmatmul.mubr.f32.gmra.mrb[0].mxu0 %v562
    %v748 = vpop.f32.mrb[0].mxu0
    %v749 = vadd.f32 0.0, %v748
    %v750 = vpop.f32.mrb[0].mxu0
    %v751 = vadd.f32 0.0, %v750
    %752 = vmatprep.mubr.f32.mxu0 %v656
    %753 = vmatmul.mubr.f32.gmra.mrb[0].mxu0 %v568
    %v754 = vpop.f32.mrb[0].mxu0
    %v755 = vadd.f32 0.0, %v754
    %v756 = vpop.f32.mrb[0].mxu0
    %v757 = vadd.f32 0.0, %v756
    %758 = vmatprep.mubr.f32.mxu0 %v659
    %759 = vmatmul.mubr.f32.gmra.mrb[0].mxu0 %v574
    %v760 = vpop.f32.mrb[0].mxu0
    %v761 = vadd.f32 0.0, %v760
    %v762 = vpop.f32.mrb[0].mxu0
    %v763 = vadd.f32 0.0, %v762
    %764 = vmatprep.mubr.f32.mxu0 %v662
    %765 = vmatmul.mubr.f32.gmra.mrb[0].mxu0 %v580
    %v766 = vpop.f32.mrb[0].mxu0
    %v767 = vadd.f32 0.0, %v766
    %v768 = vpop.f32.mrb[0].mxu0
    %v769 = vadd.f32 0.0, %v768
    %770 = vmatprep.mubr.f32.mxu0 %v665
    %771 = vmatmul.mubr.f32.gmra.mrb[0].mxu0 %v586
    %v772 = vpop.f32.mrb[0].mxu0
    %v773 = vadd.f32 0.0, %v772
    %v774 = vpop.f32.mrb[0].mxu0
    %v775 = vadd.f32 0.0, %v774
    %776 = vmatprep.mubr.f32.mxu0 %v668
    %777 = vmatmul.mubr.f32.gmra.mrb[0].mxu0 %v592
    %v778 = vpop.f32.mrb[0].mxu0
    %v779 = vadd.f32 0.0, %v778
    %v780 = vpop.f32.mrb[0].mxu0
    %v781 = vadd.f32 0.0, %v780
    %782 = vdwg.mxu0
    %v784 = vsel %vm645, %v382, 0
    %v787 = vsel %vm645, %v388, 0
    %v790 = vsel %vm645, %v394, 0
    %v793 = vsel %vm645, %v400, 0
    %v796 = vsel %vm645, %v406, 0
    %v799 = vsel %vm645, %v412, 0
    %v802 = vsel %vm645, %v418, 0
    %v805 = vsel %vm645, %v424, 0
    %807 = vmatprep.subr.mxu0 %v427
    %808 = vmatpush1.msra.mxu0 %v426
    %809 = vmatprep.subr.mxu0 %v429
    %810 = vmatpush1.msra.mxu0 %v428
    %811 = vmatprep.subr.mxu0 %v431
    %812 = vmatpush1.msra.mxu0 %v430
    %813 = vmatprep.subr.mxu0 %v433
    %814 = vmatpush1.msra.mxu0 %v432
    %815 = vmatprep.subr.mxu0 %v435
    %816 = vmatpush1.msra.mxu0 %v434
    %817 = vmatprep.subr.mxu0 %v437
    %818 = vmatpush1.msra.mxu0 %v436
    %819 = vmatprep.subr.mxu0 %v439
    %820 = vmatpush1.msra.mxu0 %v438
    %821 = vmatprep.subr.mxu0 %v441
    %822 = vmatpush1.msra.mxu0 %v440
    %823 = vmatprep.subr.mxu0 %v443
    %824 = vmatpush1.msra.mxu0 %v442
    %825 = vmatprep.subr.mxu0 %v445
    %826 = vmatpush1.msra.mxu0 %v444
    %827 = vmatprep.subr.mxu0 %v447
    %828 = vmatpush1.msra.mxu0 %v446
    %829 = vmatprep.subr.mxu0 %v449
    %830 = vmatpush1.msra.mxu0 %v448
    %831 = vmatprep.subr.mxu0 %v451
    %832 = vmatpush1.msra.mxu0 %v450
    %833 = vmatprep.subr.mxu0 %v453
    %834 = vmatpush1.msra.mxu0 %v452
    %835 = vmatprep.subr.mxu0 %v455
    %836 = vmatpush1.msra.mxu0 %v454
    %837 = vmatprep.subr.mxu0 %v457
    %838 = vmatpush1.msra.mxu0 %v456
    %839 = vmatprep.subr.mxu0 %v459
    %840 = vmatpush1.msra.mxu0 %v458
    %841 = vmatprep.subr.mxu0 %v461
    %842 = vmatpush1.msra.mxu0 %v460
    %843 = vmatprep.subr.mxu0 %v463
    %844 = vmatpush1.msra.mxu0 %v462
    %845 = vmatprep.subr.mxu0 %v465
    %846 = vmatpush1.msra.mxu0 %v464
    %847 = vmatprep.subr.mxu0 %v467
    %848 = vmatpush1.msra.mxu0 %v466
    %849 = vmatprep.subr.mxu0 %v469
    %850 = vmatpush1.msra.mxu0 %v468
    %851 = vmatprep.subr.mxu0 %v471
    %852 = vmatpush1.msra.mxu0 %v470
    %853 = vmatprep.subr.mxu0 %v473
    %854 = vmatpush1.msra.mxu0 %v472
    %855 = vmatprep.subr.mxu0 0.0
    %856 = vmatpush1.msra.mxu0 0.0
    %857 = vmatprep.subr.mxu0 0.0
    %858 = vmatpush1.msra.mxu0 0.0
    %859 = vmatprep.subr.mxu0 0.0
    %860 = vmatpush1.msra.mxu0 0.0
    %861 = vmatprep.subr.mxu0 0.0
    %862 = vmatpush1.msra.mxu0 0.0
    %863 = vmatprep.subr.mxu0 0.0
    %864 = vmatpush1.msra.mxu0 0.0
    %865 = vmatprep.subr.mxu0 0.0
    %866 = vmatpush1.msra.mxu0 0.0
    %867 = vmatprep.subr.mxu0 0.0
    %868 = vmatpush1.msra.mxu0 0.0
    %869 = vmatprep.subr.mxu0 0.0
    %870 = vmatpush1.msra.mxu0 0.0
    %871 = vmatprep.mubr.f32.mxu0 %v784
    %872 = vmatmul.mubr.f32.gmra.mrb[0].mxu0 %v380
    %v873 = vpop.f32.mrb[0].mxu0
    %v874 = vadd.f32 %v737, %v873
    %v875 = vpop.f32.mrb[0].mxu0
    %v876 = vadd.f32 %v739, %v875
    %877 = vmatprep.mubr.f32.mxu0 %v787
    %878 = vmatmul.mubr.f32.gmra.mrb[0].mxu0 %v386
    %v879 = vpop.f32.mrb[0].mxu0
    %v880 = vadd.f32 %v743, %v879
    %v881 = vpop.f32.mrb[0].mxu0
    %v882 = vadd.f32 %v745, %v881
    %883 = vmatprep.mubr.f32.mxu0 %v790
    %884 = vmatmul.mubr.f32.gmra.mrb[0].mxu0 %v392
    %v885 = vpop.f32.mrb[0].mxu0
    %v886 = vadd.f32 %v749, %v885
    %v887 = vpop.f32.mrb[0].mxu0
    %v888 = vadd.f32 %v751, %v887
    %889 = vmatprep.mubr.f32.mxu0 %v793
    %890 = vmatmul.mubr.f32.gmra.mrb[0].mxu0 %v398
    %v891 = vpop.f32.mrb[0].mxu0
    %v892 = vadd.f32 %v755, %v891
    %v893 = vpop.f32.mrb[0].mxu0
    %v894 = vadd.f32 %v757, %v893
    %895 = vmatprep.mubr.f32.mxu0 %v796
    %896 = vmatmul.mubr.f32.gmra.mrb[0].mxu0 %v404
    %v897 = vpop.f32.mrb[0].mxu0
    %v898 = vadd.f32 %v761, %v897
    %v899 = vpop.f32.mrb[0].mxu0
    %v900 = vadd.f32 %v763, %v899
    %901 = vmatprep.mubr.f32.mxu0 %v799
    %902 = vmatmul.mubr.f32.gmra.mrb[0].mxu0 %v410
    %v903 = vpop.f32.mrb[0].mxu0
    %v904 = vadd.f32 %v767, %v903
    %v905 = vpop.f32.mrb[0].mxu0
    %v906 = vadd.f32 %v769, %v905
    %907 = vmatprep.mubr.f32.mxu0 %v802
    %908 = vmatmul.mubr.f32.gmra.mrb[0].mxu0 %v416
    %v909 = vpop.f32.mrb[0].mxu0
    %v910 = vadd.f32 %v773, %v909
    %v911 = vpop.f32.mrb[0].mxu0
    %v912 = vadd.f32 %v775, %v911
    %913 = vmatprep.mubr.f32.mxu0 %v805
    %914 = vmatmul.mubr.f32.gmra.mrb[0].mxu0 %v422
    %v915 = vpop.f32.mrb[0].mxu0
    %v916 = vadd.f32 %v779, %v915
    %v917 = vpop.f32.mrb[0].mxu0
    %v918 = vadd.f32 %v781, %v917
    %919 = vdwg.mxu0
    %s920 = scalar_lea.vmem [#allocation3], 128
    %v921 = vld [vmem:[%s920] sm:$0xff]
    %v922 = vld [vmem:[%s920 + $0x8] sm:$0xff]
    %v923 = vld [vmem:[%s920 + $0x10] sm:$0xff]
    %v924 = vld [vmem:[%s920 + $0x18] sm:$0xff]
    %v925 = vld [vmem:[%s920 + $0x20] sm:$0xff]
    %v926 = vld [vmem:[%s920 + $0x28] sm:$0xff]
    %v927 = vld [vmem:[%s920 + $0x30] sm:$0xff]
    %v928 = vld [vmem:[%s920 + $0x38] sm:$0xff]
    %929 = vmatprep.subr.mxu0 %v274
    %930 = vmatpush1.msra.mxu0 %v273
    %931 = vmatprep.subr.mxu0 %v276
    %932 = vmatpush1.msra.mxu0 %v275
    %933 = vmatprep.subr.mxu0 %v278
    %934 = vmatpush1.msra.mxu0 %v277
    %935 = vmatprep.subr.mxu0 %v280
    %936 = vmatpush1.msra.mxu0 %v279
    %937 = vmatprep.subr.mxu0 %v282
    %938 = vmatpush1.msra.mxu0 %v281
    %939 = vmatprep.subr.mxu0 %v284
    %940 = vmatpush1.msra.mxu0 %v283
    %941 = vmatprep.subr.mxu0 %v286
    %942 = vmatpush1.msra.mxu0 %v285
    %943 = vmatprep.subr.mxu0 %v288
    %944 = vmatpush1.msra.mxu0 %v287
    %945 = vmatprep.subr.mxu0 %v290
    %946 = vmatpush1.msra.mxu0 %v289
    %947 = vmatprep.subr.mxu0 %v292
    %948 = vmatpush1.msra.mxu0 %v291
    %949 = vmatprep.subr.mxu0 %v294
    %950 = vmatpush1.msra.mxu0 %v293
    %951 = vmatprep.subr.mxu0 %v296
    %952 = vmatpush1.msra.mxu0 %v295
    %953 = vmatprep.subr.mxu0 %v298
    %954 = vmatpush1.msra.mxu0 %v297
    %955 = vmatprep.subr.mxu0 %v300
    %956 = vmatpush1.msra.mxu0 %v299
    %957 = vmatprep.subr.mxu0 %v302
    %958 = vmatpush1.msra.mxu0 %v301
    %959 = vmatprep.subr.mxu0 %v304
    %960 = vmatpush1.msra.mxu0 %v303
    %961 = vmatprep.subr.mxu0 0.0
    %962 = vmatpush1.msra.mxu0 0.0
    %963 = vmatprep.subr.mxu0 0.0
    %964 = vmatpush1.msra.mxu0 0.0
    %965 = vmatprep.subr.mxu0 0.0
    %966 = vmatpush1.msra.mxu0 0.0
    %967 = vmatprep.subr.mxu0 0.0
    %968 = vmatpush1.msra.mxu0 0.0
    %969 = vmatprep.subr.mxu0 0.0
    %970 = vmatpush1.msra.mxu0 0.0
    %971 = vmatprep.subr.mxu0 0.0
    %972 = vmatpush1.msra.mxu0 0.0
    %973 = vmatprep.subr.mxu0 0.0
    %974 = vmatpush1.msra.mxu0 0.0
    %975 = vmatprep.subr.mxu0 0.0
    %976 = vmatpush1.msra.mxu0 0.0
    %977 = vmatprep.subr.mxu0 0.0
    %978 = vmatpush1.msra.mxu0 0.0
    %979 = vmatprep.subr.mxu0 0.0
    %980 = vmatpush1.msra.mxu0 0.0
    %981 = vmatprep.subr.mxu0 0.0
    %982 = vmatpush1.msra.mxu0 0.0
    %983 = vmatprep.subr.mxu0 0.0
    %984 = vmatpush1.msra.mxu0 0.0
    %985 = vmatprep.subr.mxu0 0.0
    %986 = vmatpush1.msra.mxu0 0.0
    %987 = vmatprep.subr.mxu0 0.0
    %988 = vmatpush1.msra.mxu0 0.0
    %989 = vmatprep.subr.mxu0 0.0
    %990 = vmatpush1.msra.mxu0 0.0
    %991 = vmatprep.subr.mxu0 0.0
    %992 = vmatpush1.msra.mxu0 0.0
    %993 = vmatprep.mubr.f32.mxu0 0.0
    %994 = vmatmul.mubr.f32.gmra.mrb[0].mxu0 %v921
    %v995 = vpop.f32.mrb[0].mxu0
    %v996 = vadd.f32 0.0, %v995
    %v997 = vpop.f32.mrb[0].mxu0
    %v998 = vadd.f32 0.0, %v997
    %999 = vmatprep.mubr.f32.mxu0 0.0
    %1000 = vmatmul.mubr.f32.gmra.mrb[0].mxu0 %v922
    %v1001 = vpop.f32.mrb[0].mxu0
    %v1002 = vadd.f32 0.0, %v1001
    %v1003 = vpop.f32.mrb[0].mxu0
    %v1004 = vadd.f32 0.0, %v1003
    %1005 = vmatprep.mubr.f32.mxu0 0.0
    %1006 = vmatmul.mubr.f32.gmra.mrb[0].mxu0 %v923
    %v1007 = vpop.f32.mrb[0].mxu0
    %v1008 = vadd.f32 0.0, %v1007
    %v1009 = vpop.f32.mrb[0].mxu0
    %v1010 = vadd.f32 0.0, %v1009
    %1011 = vmatprep.mubr.f32.mxu0 0.0
    %1012 = vmatmul.mubr.f32.gmra.mrb[0].mxu0 %v924
    %v1013 = vpop.f32.mrb[0].mxu0
    %v1014 = vadd.f32 0.0, %v1013
    %v1015 = vpop.f32.mrb[0].mxu0
    %v1016 = vadd.f32 0.0, %v1015
    %1017 = vmatprep.mubr.f32.mxu0 0.0
    %1018 = vmatmul.mubr.f32.gmra.mrb[0].mxu0 %v925
    %v1019 = vpop.f32.mrb[0].mxu0
    %v1020 = vadd.f32 0.0, %v1019
    %v1021 = vpop.f32.mrb[0].mxu0
    %v1022 = vadd.f32 0.0, %v1021
    %1023 = vmatprep.mubr.f32.mxu0 0.0
    %1024 = vmatmul.mubr.f32.gmra.mrb[0].mxu0 %v926
    %v1025 = vpop.f32.mrb[0].mxu0
    %v1026 = vadd.f32 0.0, %v1025
    %v1027 = vpop.f32.mrb[0].mxu0
    %v1028 = vadd.f32 0.0, %v1027
    %1029 = vmatprep.mubr.f32.mxu0 0.0
    %1030 = vmatmul.mubr.f32.gmra.mrb[0].mxu0 %v927
    %v1031 = vpop.f32.mrb[0].mxu0
    %v1032 = vadd.f32 0.0, %v1031
    %v1033 = vpop.f32.mrb[0].mxu0
    %v1034 = vadd.f32 0.0, %v1033
    %1035 = vmatprep.mubr.f32.mxu0 0.0
    %1036 = vmatmul.mubr.f32.gmra.mrb[0].mxu0 %v928
    %v1037 = vpop.f32.mrb[0].mxu0
    %v1038 = vadd.f32 0.0, %v1037
    %v1039 = vpop.f32.mrb[0].mxu0
    %v1040 = vadd.f32 0.0, %v1039
    %1041 = vdwg.mxu0
    %s1042 = scalar_lea.vmem %s2, 768
    %v1043 = vld [vmem:[%s1042] sm:$0xff]
    %v1044 = vld [vmem:[%s1042 + $0x8] sm:$0xff]
    %v1045 = vld [vmem:[%s1042 + $0x10] sm:$0xff]
    %v1046 = vld [vmem:[%s1042 + $0x18] sm:$0xff]
    %v1047 = vld [vmem:[%s1042 + $0x20] sm:$0xff]
    %v1048 = vld [vmem:[%s1042 + $0x28] sm:$0xff]
    %v1049 = vld [vmem:[%s1042 + $0x30] sm:$0xff]
    %v1050 = vld [vmem:[%s1042 + $0x38] sm:$0xff]
    %v1051 = vld [vmem:[%s1042 + $0x40] sm:$0xff]
    %v1052 = vld [vmem:[%s1042 + $0x48] sm:$0xff]
    %v1053 = vld [vmem:[%s1042 + $0x50] sm:$0xff]
    %v1054 = vld [vmem:[%s1042 + $0x58] sm:$0xff]
    %v1055 = vld [vmem:[%s1042 + $0x60] sm:$0xff]
    %v1056 = vld [vmem:[%s1042 + $0x68] sm:$0xff]
    %v1057 = vld [vmem:[%s1042 + $0x70] sm:$0xff]
    %v1058 = vld [vmem:[%s1042 + $0x78] sm:$0xff]
    %v1059 = vld [vmem:[%s1042 + $0x80] sm:$0xff]
    %v1060 = vld [vmem:[%s1042 + $0x88] sm:$0xff]
    %v1061 = vld [vmem:[%s1042 + $0x90] sm:$0xff]
    %v1062 = vld [vmem:[%s1042 + $0x98] sm:$0xff]
    %v1063 = vld [vmem:[%s1042 + $0xa0] sm:$0xff]
    %v1064 = vld [vmem:[%s1042 + $0xa8] sm:$0xff]
    %v1065 = vld [vmem:[%s1042 + $0xb0] sm:$0xff]
    %v1066 = vld [vmem:[%s1042 + $0xb8] sm:$0xff]
    %v1067 = vld [vmem:[%s1042 + $0xc0] sm:$0xff]
    %v1068 = vld [vmem:[%s1042 + $0xc8] sm:$0xff]
    %v1069 = vld [vmem:[%s1042 + $0xd0] sm:$0xff]
    %v1070 = vld [vmem:[%s1042 + $0xd8] sm:$0xff]
    %v1071 = vld [vmem:[%s1042 + $0xe0] sm:$0xff]
    %v1072 = vld [vmem:[%s1042 + $0xe8] sm:$0xff]
    %v1073 = vld [vmem:[%s1042 + $0xf0] sm:$0xff]
    %v1074 = vld [vmem:[%s1042 + $0xf8] sm:$0xff]
    %v1075 = vld [vmem:[%s1042 + $0x100] sm:$0xff]
    %v1076 = vld [vmem:[%s1042 + $0x108] sm:$0xff]
    %v1077 = vld [vmem:[%s1042 + $0x110] sm:$0xff]
    %v1078 = vld [vmem:[%s1042 + $0x118] sm:$0xff]
    %v1079 = vld [vmem:[%s1042 + $0x120] sm:$0xff]
    %v1080 = vld [vmem:[%s1042 + $0x128] sm:$0xff]
    %v1081 = vld [vmem:[%s1042 + $0x130] sm:$0xff]
    %v1082 = vld [vmem:[%s1042 + $0x138] sm:$0xff]
    %v1083 = vld [vmem:[%s1042 + $0x140] sm:$0xff]
    %v1084 = vld [vmem:[%s1042 + $0x148] sm:$0xff]
    %v1085 = vld [vmem:[%s1042 + $0x150] sm:$0xff]
    %v1086 = vld [vmem:[%s1042 + $0x158] sm:$0xff]
    %v1087 = vld [vmem:[%s1042 + $0x160] sm:$0xff]
    %v1088 = vld [vmem:[%s1042 + $0x168] sm:$0xff]
    %v1089 = vld [vmem:[%s1042 + $0x170] sm:$0xff]
    %v1090 = vld [vmem:[%s1042 + $0x178] sm:$0xff]
    %v1092 = vsel %vm645, %v998, 0
    %v1095 = vsel %vm645, %v1004, 0
    %v1098 = vsel %vm645, %v1010, 0
    %v1101 = vsel %vm645, %v1016, 0
    %v1104 = vsel %vm645, %v1022, 0
    %v1107 = vsel %vm645, %v1028, 0
    %v1110 = vsel %vm645, %v1034, 0
    %v1113 = vsel %vm645, %v1040, 0
    %1115 = vmatprep.subr.mxu0 %v1044
    %1116 = vmatpush1.msra.mxu0 %v1043
    %1117 = vmatprep.subr.mxu0 %v1046
    %1118 = vmatpush1.msra.mxu0 %v1045
    %1119 = vmatprep.subr.mxu0 %v1048
    %1120 = vmatpush1.msra.mxu0 %v1047
    %1121 = vmatprep.subr.mxu0 %v1050
    %1122 = vmatpush1.msra.mxu0 %v1049
    %1123 = vmatprep.subr.mxu0 %v1052
    %1124 = vmatpush1.msra.mxu0 %v1051
    %1125 = vmatprep.subr.mxu0 %v1054
    %1126 = vmatpush1.msra.mxu0 %v1053
    %1127 = vmatprep.subr.mxu0 %v1056
    %1128 = vmatpush1.msra.mxu0 %v1055
    %1129 = vmatprep.subr.mxu0 %v1058
    %1130 = vmatpush1.msra.mxu0 %v1057
    %1131 = vmatprep.subr.mxu0 %v1060
    %1132 = vmatpush1.msra.mxu0 %v1059
    %1133 = vmatprep.subr.mxu0 %v1062
    %1134 = vmatpush1.msra.mxu0 %v1061
    %1135 = vmatprep.subr.mxu0 %v1064
    %1136 = vmatpush1.msra.mxu0 %v1063
    %1137 = vmatprep.subr.mxu0 %v1066
    %1138 = vmatpush1.msra.mxu0 %v1065
    %1139 = vmatprep.subr.mxu0 %v1068
    %1140 = vmatpush1.msra.mxu0 %v1067
    %1141 = vmatprep.subr.mxu0 %v1070
    %1142 = vmatpush1.msra.mxu0 %v1069
    %1143 = vmatprep.subr.mxu0 %v1072
    %1144 = vmatpush1.msra.mxu0 %v1071
    %1145 = vmatprep.subr.mxu0 %v1074
    %1146 = vmatpush1.msra.mxu0 %v1073
    %1147 = vmatprep.subr.mxu0 %v1076
    %1148 = vmatpush1.msra.mxu0 %v1075
    %1149 = vmatprep.subr.mxu0 %v1078
    %1150 = vmatpush1.msra.mxu0 %v1077
    %1151 = vmatprep.subr.mxu0 %v1080
    %1152 = vmatpush1.msra.mxu0 %v1079
    %1153 = vmatprep.subr.mxu0 %v1082
    %1154 = vmatpush1.msra.mxu0 %v1081
    %1155 = vmatprep.subr.mxu0 %v1084
    %1156 = vmatpush1.msra.mxu0 %v1083
    %1157 = vmatprep.subr.mxu0 %v1086
    %1158 = vmatpush1.msra.mxu0 %v1085
    %1159 = vmatprep.subr.mxu0 %v1088
    %1160 = vmatpush1.msra.mxu0 %v1087
    %1161 = vmatprep.subr.mxu0 %v1090
    %1162 = vmatpush1.msra.mxu0 %v1089
    %1163 = vmatprep.subr.mxu0 0.0
    %1164 = vmatpush1.msra.mxu0 0.0
    %1165 = vmatprep.subr.mxu0 0.0
    %1166 = vmatpush1.msra.mxu0 0.0
    %1167 = vmatprep.subr.mxu0 0.0
    %1168 = vmatpush1.msra.mxu0 0.0
    %1169 = vmatprep.subr.mxu0 0.0
    %1170 = vmatpush1.msra.mxu0 0.0
    %1171 = vmatprep.subr.mxu0 0.0
    %1172 = vmatpush1.msra.mxu0 0.0
    %1173 = vmatprep.subr.mxu0 0.0
    %1174 = vmatpush1.msra.mxu0 0.0
    %1175 = vmatprep.subr.mxu0 0.0
    %1176 = vmatpush1.msra.mxu0 0.0
    %1177 = vmatprep.subr.mxu0 0.0
    %1178 = vmatpush1.msra.mxu0 0.0
    %1179 = vmatprep.mubr.f32.mxu0 %v1092
    %1180 = vmatmul.mubr.f32.gmra.mrb[0].mxu0 %v996
    %v1181 = vpop.f32.mrb[0].mxu0
    %v1182 = vadd.f32 0.0, %v1181
    %v1183 = vpop.f32.mrb[0].mxu0
    %v1184 = vadd.f32 0.0, %v1183
    %1185 = vmatprep.mubr.f32.mxu0 %v1095
    %1186 = vmatmul.mubr.f32.gmra.mrb[0].mxu0 %v1002
    %v1187 = vpop.f32.mrb[0].mxu0
    %v1188 = vadd.f32 0.0, %v1187
    %v1189 = vpop.f32.mrb[0].mxu0
    %v1190 = vadd.f32 0.0, %v1189
    %1191 = vmatprep.mubr.f32.mxu0 %v1098
    %1192 = vmatmul.mubr.f32.gmra.mrb[0].mxu0 %v1008
    %v1193 = vpop.f32.mrb[0].mxu0
    %v1194 = vadd.f32 0.0, %v1193
    %v1195 = vpop.f32.mrb[0].mxu0
    %v1196 = vadd.f32 0.0, %v1195
    %1197 = vmatprep.mubr.f32.mxu0 %v1101
    %1198 = vmatmul.mubr.f32.gmra.mrb[0].mxu0 %v1014
    %v1199 = vpop.f32.mrb[0].mxu0
    %v1200 = vadd.f32 0.0, %v1199
    %v1201 = vpop.f32.mrb[0].mxu0
    %v1202 = vadd.f32 0.0, %v1201
    %1203 = vmatprep.mubr.f32.mxu0 %v1104
    %1204 = vmatmul.mubr.f32.gmra.mrb[0].mxu0 %v1020
    %v1205 = vpop.f32.mrb[0].mxu0
    %v1206 = vadd.f32 0.0, %v1205
    %v1207 = vpop.f32.mrb[0].mxu0
    %v1208 = vadd.f32 0.0, %v1207
    %1209 = vmatprep.mubr.f32.mxu0 %v1107
    %1210 = vmatmul.mubr.f32.gmra.mrb[0].mxu0 %v1026
    %v1211 = vpop.f32.mrb[0].mxu0
    %v1212 = vadd.f32 0.0, %v1211
    %v1213 = vpop.f32.mrb[0].mxu0
    %v1214 = vadd.f32 0.0, %v1213
    %1215 = vmatprep.mubr.f32.mxu0 %v1110
    %1216 = vmatmul.mubr.f32.gmra.mrb[0].mxu0 %v1032
    %v1217 = vpop.f32.mrb[0].mxu0
    %v1218 = vadd.f32 0.0, %v1217
    %v1219 = vpop.f32.mrb[0].mxu0
    %v1220 = vadd.f32 0.0, %v1219
    %1221 = vmatprep.mubr.f32.mxu0 %v1113
    %1222 = vmatmul.mubr.f32.gmra.mrb[0].mxu0 %v1038
    %v1223 = vpop.f32.mrb[0].mxu0
    %v1224 = vadd.f32 0.0, %v1223
    %v1225 = vpop.f32.mrb[0].mxu0
    %v1226 = vadd.f32 0.0, %v1225
    %1227 = vdwg.mxu0
    %v1228 = vadd.f32 %v874, %v1182
    %v1229 = vadd.f32 %v876, %v1184
    %v1230 = vadd.f32 %v880, %v1188
    %v1231 = vadd.f32 %v882, %v1190
    %v1232 = vadd.f32 %v886, %v1194
    %v1233 = vadd.f32 %v888, %v1196
    %v1234 = vadd.f32 %v892, %v1200
    %v1235 = vadd.f32 %v894, %v1202
    %v1236 = vadd.f32 %v898, %v1206
    %v1237 = vadd.f32 %v900, %v1208
    %v1238 = vadd.f32 %v904, %v1212
    %v1239 = vadd.f32 %v906, %v1214
    %v1240 = vadd.f32 %v910, %v1218
    %v1241 = vadd.f32 %v912, %v1220
    %v1242 = vadd.f32 %v916, %v1224
    %v1243 = vadd.f32 %v918, %v1226
    %s1244 = scalar_lea.vmem [#allocation3], 192
    %v1245 = vld [vmem:[%s1244] sm:$0xff]
    %v1246 = vld [vmem:[%s1244 + $0x8] sm:$0xff]
    %v1247 = vld [vmem:[%s1244 + $0x10] sm:$0xff]
    %v1248 = vld [vmem:[%s1244 + $0x18] sm:$0xff]
    %v1249 = vld [vmem:[%s1244 + $0x20] sm:$0xff]
    %v1250 = vld [vmem:[%s1244 + $0x28] sm:$0xff]
    %v1251 = vld [vmem:[%s1244 + $0x30] sm:$0xff]
    %v1252 = vld [vmem:[%s1244 + $0x38] sm:$0xff]
    %1253 = vmatprep.subr.mxu0 %v274
    %1254 = vmatpush1.msra.mxu0 %v273
    %1255 = vmatprep.subr.mxu0 %v276
    %1256 = vmatpush1.msra.mxu0 %v275
    %1257 = vmatprep.subr.mxu0 %v278
    %1258 = vmatpush1.msra.mxu0 %v277
    %1259 = vmatprep.subr.mxu0 %v280
    %1260 = vmatpush1.msra.mxu0 %v279
    %1261 = vmatprep.subr.mxu0 %v282
    %1262 = vmatpush1.msra.mxu0 %v281
    %1263 = vmatprep.subr.mxu0 %v284
    %1264 = vmatpush1.msra.mxu0 %v283
    %1265 = vmatprep.subr.mxu0 %v286
    %1266 = vmatpush1.msra.mxu0 %v285
    %1267 = vmatprep.subr.mxu0 %v288
    %1268 = vmatpush1.msra.mxu0 %v287
    %1269 = vmatprep.subr.mxu0 %v290
    %1270 = vmatpush1.msra.mxu0 %v289
    %1271 = vmatprep.subr.mxu0 %v292
    %1272 = vmatpush1.msra.mxu0 %v291
    %1273 = vmatprep.subr.mxu0 %v294
    %1274 = vmatpush1.msra.mxu0 %v293
    %1275 = vmatprep.subr.mxu0 %v296
    %1276 = vmatpush1.msra.mxu0 %v295
    %1277 = vmatprep.subr.mxu0 %v298
    %1278 = vmatpush1.msra.mxu0 %v297
    %1279 = vmatprep.subr.mxu0 %v300
    %1280 = vmatpush1.msra.mxu0 %v299
    %1281 = vmatprep.subr.mxu0 %v302
    %1282 = vmatpush1.msra.mxu0 %v301
    %1283 = vmatprep.subr.mxu0 %v304
    %1284 = vmatpush1.msra.mxu0 %v303
    %1285 = vmatprep.subr.mxu0 0.0
    %1286 = vmatpush1.msra.mxu0 0.0
    %1287 = vmatprep.subr.mxu0 0.0
    %1288 = vmatpush1.msra.mxu0 0.0
    %1289 = vmatprep.subr.mxu0 0.0
    %1290 = vmatpush1.msra.mxu0 0.0
    %1291 = vmatprep.subr.mxu0 0.0
    %1292 = vmatpush1.msra.mxu0 0.0
    %1293 = vmatprep.subr.mxu0 0.0
    %1294 = vmatpush1.msra.mxu0 0.0
    %1295 = vmatprep.subr.mxu0 0.0
    %1296 = vmatpush1.msra.mxu0 0.0
    %1297 = vmatprep.subr.mxu0 0.0
    %1298 = vmatpush1.msra.mxu0 0.0
    %1299 = vmatprep.subr.mxu0 0.0
    %1300 = vmatpush1.msra.mxu0 0.0
    %1301 = vmatprep.subr.mxu0 0.0
    %1302 = vmatpush1.msra.mxu0 0.0
    %1303 = vmatprep.subr.mxu0 0.0
    %1304 = vmatpush1.msra.mxu0 0.0
    %1305 = vmatprep.subr.mxu0 0.0
    %1306 = vmatpush1.msra.mxu0 0.0
    %1307 = vmatprep.subr.mxu0 0.0
    %1308 = vmatpush1.msra.mxu0 0.0
    %1309 = vmatprep.subr.mxu0 0.0
    %1310 = vmatpush1.msra.mxu0 0.0
    %1311 = vmatprep.subr.mxu0 0.0
    %1312 = vmatpush1.msra.mxu0 0.0
    %1313 = vmatprep.subr.mxu0 0.0
    %1314 = vmatpush1.msra.mxu0 0.0
    %1315 = vmatprep.subr.mxu0 0.0
    %1316 = vmatpush1.msra.mxu0 0.0
    %1317 = vmatprep.mubr.f32.mxu0 0.0
    %1318 = vmatmul.mubr.f32.gmra.mrb[0].mxu0 %v1245
    %v1319 = vpop.f32.mrb[0].mxu0
    %v1320 = vadd.f32 0.0, %v1319
    %v1321 = vpop.f32.mrb[0].mxu0
    %v1322 = vadd.f32 0.0, %v1321
    %1323 = vmatprep.mubr.f32.mxu0 0.0
    %1324 = vmatmul.mubr.f32.gmra.mrb[0].mxu0 %v1246
    %v1325 = vpop.f32.mrb[0].mxu0
    %v1326 = vadd.f32 0.0, %v1325
    %v1327 = vpop.f32.mrb[0].mxu0
    %v1328 = vadd.f32 0.0, %v1327
    %1329 = vmatprep.mubr.f32.mxu0 0.0
    %1330 = vmatmul.mubr.f32.gmra.mrb[0].mxu0 %v1247
    %v1331 = vpop.f32.mrb[0].mxu0
    %v1332 = vadd.f32 0.0, %v1331
    %v1333 = vpop.f32.mrb[0].mxu0
    %v1334 = vadd.f32 0.0, %v1333
    %1335 = vmatprep.mubr.f32.mxu0 0.0
    %1336 = vmatmul.mubr.f32.gmra.mrb[0].mxu0 %v1248
    %v1337 = vpop.f32.mrb[0].mxu0
    %v1338 = vadd.f32 0.0, %v1337
    %v1339 = vpop.f32.mrb[0].mxu0
    %v1340 = vadd.f32 0.0, %v1339
    %1341 = vmatprep.mubr.f32.mxu0 0.0
    %1342 = vmatmul.mubr.f32.gmra.mrb[0].mxu0 %v1249
    %v1343 = vpop.f32.mrb[0].mxu0
    %v1344 = vadd.f32 0.0, %v1343
    %v1345 = vpop.f32.mrb[0].mxu0
    %v1346 = vadd.f32 0.0, %v1345
    %1347 = vmatprep.mubr.f32.mxu0 0.0
    %1348 = vmatmul.mubr.f32.gmra.mrb[0].mxu0 %v1250
    %v1349 = vpop.f32.mrb[0].mxu0
    %v1350 = vadd.f32 0.0, %v1349
    %v1351 = vpop.f32.mrb[0].mxu0
    %v1352 = vadd.f32 0.0, %v1351
    %1353 = vmatprep.mubr.f32.mxu0 0.0
    %1354 = vmatmul.mubr.f32.gmra.mrb[0].mxu0 %v1251
    %v1355 = vpop.f32.mrb[0].mxu0
    %v1356 = vadd.f32 0.0, %v1355
    %v1357 = vpop.f32.mrb[0].mxu0
    %v1358 = vadd.f32 0.0, %v1357
    %1359 = vmatprep.mubr.f32.mxu0 0.0
    %1360 = vmatmul.mubr.f32.gmra.mrb[0].mxu0 %v1252
    %v1361 = vpop.f32.mrb[0].mxu0
    %v1362 = vadd.f32 0.0, %v1361
    %v1363 = vpop.f32.mrb[0].mxu0
    %v1364 = vadd.f32 0.0, %v1363
    %1365 = vdwg.mxu0
    %s1366 = scalar_lea.vmem %s2, 1152
    %v1367 = vld [vmem:[%s1366] sm:$0xff]
    %v1368 = vld [vmem:[%s1366 + $0x8] sm:$0xff]
    %v1369 = vld [vmem:[%s1366 + $0x10] sm:$0xff]
    %v1370 = vld [vmem:[%s1366 + $0x18] sm:$0xff]
    %v1371 = vld [vmem:[%s1366 + $0x20] sm:$0xff]
    %v1372 = vld [vmem:[%s1366 + $0x28] sm:$0xff]
    %v1373 = vld [vmem:[%s1366 + $0x30] sm:$0xff]
    %v1374 = vld [vmem:[%s1366 + $0x38] sm:$0xff]
    %v1375 = vld [vmem:[%s1366 + $0x40] sm:$0xff]
    %v1376 = vld [vmem:[%s1366 + $0x48] sm:$0xff]
    %v1377 = vld [vmem:[%s1366 + $0x50] sm:$0xff]
    %v1378 = vld [vmem:[%s1366 + $0x58] sm:$0xff]
    %v1379 = vld [vmem:[%s1366 + $0x60] sm:$0xff]
    %v1380 = vld [vmem:[%s1366 + $0x68] sm:$0xff]
    %v1381 = vld [vmem:[%s1366 + $0x70] sm:$0xff]
    %v1382 = vld [vmem:[%s1366 + $0x78] sm:$0xff]
    %v1383 = vld [vmem:[%s1366 + $0x80] sm:$0xff]
    %v1384 = vld [vmem:[%s1366 + $0x88] sm:$0xff]
    %v1385 = vld [vmem:[%s1366 + $0x90] sm:$0xff]
    %v1386 = vld [vmem:[%s1366 + $0x98] sm:$0xff]
    %v1387 = vld [vmem:[%s1366 + $0xa0] sm:$0xff]
    %v1388 = vld [vmem:[%s1366 + $0xa8] sm:$0xff]
    %v1389 = vld [vmem:[%s1366 + $0xb0] sm:$0xff]
    %v1390 = vld [vmem:[%s1366 + $0xb8] sm:$0xff]
    %v1391 = vld [vmem:[%s1366 + $0xc0] sm:$0xff]
    %v1392 = vld [vmem:[%s1366 + $0xc8] sm:$0xff]
    %v1393 = vld [vmem:[%s1366 + $0xd0] sm:$0xff]
    %v1394 = vld [vmem:[%s1366 + $0xd8] sm:$0xff]
    %v1395 = vld [vmem:[%s1366 + $0xe0] sm:$0xff]
    %v1396 = vld [vmem:[%s1366 + $0xe8] sm:$0xff]
    %v1397 = vld [vmem:[%s1366 + $0xf0] sm:$0xff]
    %v1398 = vld [vmem:[%s1366 + $0xf8] sm:$0xff]
    %v1399 = vld [vmem:[%s1366 + $0x100] sm:$0xff]
    %v1400 = vld [vmem:[%s1366 + $0x108] sm:$0xff]
    %v1401 = vld [vmem:[%s1366 + $0x110] sm:$0xff]
    %v1402 = vld [vmem:[%s1366 + $0x118] sm:$0xff]
    %v1403 = vld [vmem:[%s1366 + $0x120] sm:$0xff]
    %v1404 = vld [vmem:[%s1366 + $0x128] sm:$0xff]
    %v1405 = vld [vmem:[%s1366 + $0x130] sm:$0xff]
    %v1406 = vld [vmem:[%s1366 + $0x138] sm:$0xff]
    %v1407 = vld [vmem:[%s1366 + $0x140] sm:$0xff]
    %v1408 = vld [vmem:[%s1366 + $0x148] sm:$0xff]
    %v1409 = vld [vmem:[%s1366 + $0x150] sm:$0xff]
    %v1410 = vld [vmem:[%s1366 + $0x158] sm:$0xff]
    %v1411 = vld [vmem:[%s1366 + $0x160] sm:$0xff]
    %v1412 = vld [vmem:[%s1366 + $0x168] sm:$0xff]
    %v1413 = vld [vmem:[%s1366 + $0x170] sm:$0xff]
    %v1414 = vld [vmem:[%s1366 + $0x178] sm:$0xff]
    %v1416 = vsel %vm645, %v1322, 0
    %v1419 = vsel %vm645, %v1328, 0
    %v1422 = vsel %vm645, %v1334, 0
    %v1425 = vsel %vm645, %v1340, 0
    %v1428 = vsel %vm645, %v1346, 0
    %v1431 = vsel %vm645, %v1352, 0
    %v1434 = vsel %vm645, %v1358, 0
    %v1437 = vsel %vm645, %v1364, 0
    %1439 = vmatprep.subr.mxu0 %v1368
    %1440 = vmatpush1.msra.mxu0 %v1367
    %1441 = vmatprep.subr.mxu0 %v1370
    %1442 = vmatpush1.msra.mxu0 %v1369
    %1443 = vmatprep.subr.mxu0 %v1372
    %1444 = vmatpush1.msra.mxu0 %v1371
    %1445 = vmatprep.subr.mxu0 %v1374
    %1446 = vmatpush1.msra.mxu0 %v1373
    %1447 = vmatprep.subr.mxu0 %v1376
    %1448 = vmatpush1.msra.mxu0 %v1375
    %1449 = vmatprep.subr.mxu0 %v1378
    %1450 = vmatpush1.msra.mxu0 %v1377
    %1451 = vmatprep.subr.mxu0 %v1380
    %1452 = vmatpush1.msra.mxu0 %v1379
    %1453 = vmatprep.subr.mxu0 %v1382
    %1454 = vmatpush1.msra.mxu0 %v1381
    %1455 = vmatprep.subr.mxu0 %v1384
    %1456 = vmatpush1.msra.mxu0 %v1383
    %1457 = vmatprep.subr.mxu0 %v1386
    %1458 = vmatpush1.msra.mxu0 %v1385
    %1459 = vmatprep.subr.mxu0 %v1388
    %1460 = vmatpush1.msra.mxu0 %v1387
    %1461 = vmatprep.subr.mxu0 %v1390
    %1462 = vmatpush1.msra.mxu0 %v1389
    %1463 = vmatprep.subr.mxu0 %v1392
    %1464 = vmatpush1.msra.mxu0 %v1391
    %1465 = vmatprep.subr.mxu0 %v1394
    %1466 = vmatpush1.msra.mxu0 %v1393
    %1467 = vmatprep.subr.mxu0 %v1396
    %1468 = vmatpush1.msra.mxu0 %v1395
    %1469 = vmatprep.subr.mxu0 %v1398
    %1470 = vmatpush1.msra.mxu0 %v1397
    %1471 = vmatprep.subr.mxu0 %v1400
    %1472 = vmatpush1.msra.mxu0 %v1399
    %1473 = vmatprep.subr.mxu0 %v1402
    %1474 = vmatpush1.msra.mxu0 %v1401
    %1475 = vmatprep.subr.mxu0 %v1404
    %1476 = vmatpush1.msra.mxu0 %v1403
    %1477 = vmatprep.subr.mxu0 %v1406
    %1478 = vmatpush1.msra.mxu0 %v1405
    %1479 = vmatprep.subr.mxu0 %v1408
    %1480 = vmatpush1.msra.mxu0 %v1407
    %1481 = vmatprep.subr.mxu0 %v1410
    %1482 = vmatpush1.msra.mxu0 %v1409
    %1483 = vmatprep.subr.mxu0 %v1412
    %1484 = vmatpush1.msra.mxu0 %v1411
    %1485 = vmatprep.subr.mxu0 %v1414
    %1486 = vmatpush1.msra.mxu0 %v1413
    %1487 = vmatprep.subr.mxu0 0.0
    %1488 = vmatpush1.msra.mxu0 0.0
    %1489 = vmatprep.subr.mxu0 0.0
    %1490 = vmatpush1.msra.mxu0 0.0
    %1491 = vmatprep.subr.mxu0 0.0
    %1492 = vmatpush1.msra.mxu0 0.0
    %1493 = vmatprep.subr.mxu0 0.0
    %1494 = vmatpush1.msra.mxu0 0.0
    %1495 = vmatprep.subr.mxu0 0.0
    %1496 = vmatpush1.msra.mxu0 0.0
    %1497 = vmatprep.subr.mxu0 0.0
    %1498 = vmatpush1.msra.mxu0 0.0
    %1499 = vmatprep.subr.mxu0 0.0
    %1500 = vmatpush1.msra.mxu0 0.0
    %1501 = vmatprep.subr.mxu0 0.0
    %1502 = vmatpush1.msra.mxu0 0.0
    %1503 = vmatprep.mubr.f32.mxu0 %v1416
    %1504 = vmatmul.mubr.f32.gmra.mrb[0].mxu0 %v1320
    %v1505 = vpop.f32.mrb[0].mxu0
    %v1506 = vadd.f32 0.0, %v1505
    %v1507 = vpop.f32.mrb[0].mxu0
    %v1508 = vadd.f32 0.0, %v1507
    %1509 = vmatprep.mubr.f32.mxu0 %v1419
    %1510 = vmatmul.mubr.f32.gmra.mrb[0].mxu0 %v1326
    %v1511 = vpop.f32.mrb[0].mxu0
    %v1512 = vadd.f32 0.0, %v1511
    %v1513 = vpop.f32.mrb[0].mxu0
    %v1514 = vadd.f32 0.0, %v1513
    %1515 = vmatprep.mubr.f32.mxu0 %v1422
    %1516 = vmatmul.mubr.f32.gmra.mrb[0].mxu0 %v1332
    %v1517 = vpop.f32.mrb[0].mxu0
    %v1518 = vadd.f32 0.0, %v1517
    %v1519 = vpop.f32.mrb[0].mxu0
    %v1520 = vadd.f32 0.0, %v1519
    %1521 = vmatprep.mubr.f32.mxu0 %v1425
    %1522 = vmatmul.mubr.f32.gmra.mrb[0].mxu0 %v1338
    %v1523 = vpop.f32.mrb[0].mxu0
    %v1524 = vadd.f32 0.0, %v1523
    %v1525 = vpop.f32.mrb[0].mxu0
    %v1526 = vadd.f32 0.0, %v1525
    %1527 = vmatprep.mubr.f32.mxu0 %v1428
    %1528 = vmatmul.mubr.f32.gmra.mrb[0].mxu0 %v1344
    %v1529 = vpop.f32.mrb[0].mxu0
    %v1530 = vadd.f32 0.0, %v1529
    %v1531 = vpop.f32.mrb[0].mxu0
    %v1532 = vadd.f32 0.0, %v1531
    %1533 = vmatprep.mubr.f32.mxu0 %v1431
    %1534 = vmatmul.mubr.f32.gmra.mrb[0].mxu0 %v1350
    %v1535 = vpop.f32.mrb[0].mxu0
    %v1536 = vadd.f32 0.0, %v1535
    %v1537 = vpop.f32.mrb[0].mxu0
    %v1538 = vadd.f32 0.0, %v1537
    %1539 = vmatprep.mubr.f32.mxu0 %v1434
    %1540 = vmatmul.mubr.f32.gmra.mrb[0].mxu0 %v1356
    %v1541 = vpop.f32.mrb[0].mxu0
    %v1542 = vadd.f32 0.0, %v1541
    %v1543 = vpop.f32.mrb[0].mxu0
    %v1544 = vadd.f32 0.0, %v1543
    %1545 = vmatprep.mubr.f32.mxu0 %v1437
    %1546 = vmatmul.mubr.f32.gmra.mrb[0].mxu0 %v1362
    %v1547 = vpop.f32.mrb[0].mxu0
    %v1548 = vadd.f32 0.0, %v1547
    %v1549 = vpop.f32.mrb[0].mxu0
    %v1550 = vadd.f32 0.0, %v1549
    %1551 = vdwg.mxu0
    %v1552 = vadd.f32 %v1228, %v1506
    %v1553 = vadd.f32 %v1229, %v1508
    %v1554 = vadd.f32 %v1230, %v1512
    %v1555 = vadd.f32 %v1231, %v1514
    %v1556 = vadd.f32 %v1232, %v1518
    %v1557 = vadd.f32 %v1233, %v1520
    %v1558 = vadd.f32 %v1234, %v1524
    %v1559 = vadd.f32 %v1235, %v1526
    %v1560 = vadd.f32 %v1236, %v1530
    %v1561 = vadd.f32 %v1237, %v1532
    %v1562 = vadd.f32 %v1238, %v1536
    %v1563 = vadd.f32 %v1239, %v1538
    %v1564 = vadd.f32 %v1240, %v1542
    %v1565 = vadd.f32 %v1241, %v1544
    %v1566 = vadd.f32 %v1242, %v1548
    %v1567 = vadd.f32 %v1243, %v1550
    %v1568 = vld [vmem:[#allocation5] sm:$0x3]
    %v1570 = vlaneseq
    %v1571 = vshrl.u32 %v1570, 7
    %v1572 = vsub.s32 0, %v1571
    %v1573 = vrot.slane %v1568, %v1572
    %v1574 = vlaneseq
    %v1575 = vshrl.u32 %v1574, 7
    %v1576 = vsub.s32 1, %v1575
    %v1577 = vrot.slane %v1568, %v1576
    %v1580 = vadd.f32 %v1552, %v1573
    %v1581 = vadd.f32 %v1553, %v1577
    %v1582 = vadd.f32 %v1554, %v1573
    %v1583 = vadd.f32 %v1555, %v1577
    %v1584 = vadd.f32 %v1556, %v1573
    %v1585 = vadd.f32 %v1557, %v1577
    %v1586 = vadd.f32 %v1558, %v1573
    %v1587 = vadd.f32 %v1559, %v1577
    %v1588 = vadd.f32 %v1560, %v1573
    %v1589 = vadd.f32 %v1561, %v1577
    %v1590 = vadd.f32 %v1562, %v1573
    %v1591 = vadd.f32 %v1563, %v1577
    %v1592 = vadd.f32 %v1564, %v1573
    %v1593 = vadd.f32 %v1565, %v1577
    %v1594 = vadd.f32 %v1566, %v1573
    %v1595 = vadd.f32 %v1567, %v1577
    %vm1596 = vcmp.gt.f32.partialorder %v1580, 0.0
    %vm1597 = vcmp.gt.f32.partialorder %v1581, 0.0
    %vm1598 = vcmp.gt.f32.partialorder %v1582, 0.0
    %vm1599 = vcmp.gt.f32.partialorder %v1583, 0.0
    %vm1600 = vcmp.gt.f32.partialorder %v1584, 0.0
    %vm1601 = vcmp.gt.f32.partialorder %v1585, 0.0
    %vm1602 = vcmp.gt.f32.partialorder %v1586, 0.0
    %vm1603 = vcmp.gt.f32.partialorder %v1587, 0.0
    %vm1604 = vcmp.gt.f32.partialorder %v1588, 0.0
    %vm1605 = vcmp.gt.f32.partialorder %v1589, 0.0
    %vm1606 = vcmp.gt.f32.partialorder %v1590, 0.0
    %vm1607 = vcmp.gt.f32.partialorder %v1591, 0.0
    %vm1608 = vcmp.gt.f32.partialorder %v1592, 0.0
    %vm1609 = vcmp.gt.f32.partialorder %v1593, 0.0
    %vm1610 = vcmp.gt.f32.partialorder %v1594, 0.0
    %vm1611 = vcmp.gt.f32.partialorder %v1595, 0.0
    %v1612 = vmul.f32 %v1580, 0.2
    %v1613 = vmul.f32 %v1581, 0.2
    %v1614 = vmul.f32 %v1582, 0.2
    %v1615 = vmul.f32 %v1583, 0.2
    %v1616 = vmul.f32 %v1584, 0.2
    %v1617 = vmul.f32 %v1585, 0.2
    %v1618 = vmul.f32 %v1586, 0.2
    %v1619 = vmul.f32 %v1587, 0.2
    %v1620 = vmul.f32 %v1588, 0.2
    %v1621 = vmul.f32 %v1589, 0.2
    %v1622 = vmul.f32 %v1590, 0.2
    %v1623 = vmul.f32 %v1591, 0.2
    %v1624 = vmul.f32 %v1592, 0.2
    %v1625 = vmul.f32 %v1593, 0.2
    %v1626 = vmul.f32 %v1594, 0.2
    %v1627 = vmul.f32 %v1595, 0.2
    %v1628 = vsel %vm1596, %v1580, %v1612
    %v1629 = vsel %vm1597, %v1581, %v1613
    %v1630 = vsel %vm1598, %v1582, %v1614
    %v1631 = vsel %vm1599, %v1583, %v1615
    %v1632 = vsel %vm1600, %v1584, %v1616
    %v1633 = vsel %vm1601, %v1585, %v1617
    %v1634 = vsel %vm1602, %v1586, %v1618
    %v1635 = vsel %vm1603, %v1587, %v1619
    %v1636 = vsel %vm1604, %v1588, %v1620
    %v1637 = vsel %vm1605, %v1589, %v1621
    %v1638 = vsel %vm1606, %v1590, %v1622
    %v1639 = vsel %vm1607, %v1591, %v1623
    %v1640 = vsel %vm1608, %v1592, %v1624
    %v1641 = vsel %vm1609, %v1593, %v1625
    %v1642 = vsel %vm1610, %v1594, %v1626
    %v1643 = vsel %vm1611, %v1595, %v1627
    %v1644 = vld [vmem:[#allocation7] sm:$0xff]
    %v1645 = vld [vmem:[#allocation7 + $0x8] sm:$0xff]
    %v1647 = vsel %vm645, %v1644, 0
    %v1650 = vsel %vm645, %v1645, 0
    %1652 = vmatprep.subr.mxu0 %v1629
    %1653 = vmatpush1.msra.mxu0 %v1628
    %1654 = vmatprep.subr.mxu0 %v1631
    %1655 = vmatpush1.msra.mxu0 %v1630
    %1656 = vmatprep.subr.mxu0 %v1633
    %1657 = vmatpush1.msra.mxu0 %v1632
    %1658 = vmatprep.subr.mxu0 %v1635
    %1659 = vmatpush1.msra.mxu0 %v1634
    %1660 = vmatprep.subr.mxu0 %v1637
    %1661 = vmatpush1.msra.mxu0 %v1636
    %1662 = vmatprep.subr.mxu0 %v1639
    %1663 = vmatpush1.msra.mxu0 %v1638
    %1664 = vmatprep.subr.mxu0 %v1641
    %1665 = vmatpush1.msra.mxu0 %v1640
    %1666 = vmatprep.subr.mxu0 %v1643
    %1667 = vmatpush1.msra.mxu0 %v1642
    %1668 = vmatprep.subr.mxu0 0.0
    %1669 = vmatpush1.msra.mxu0 0.0
    %1670 = vmatprep.subr.mxu0 0.0
    %1671 = vmatpush1.msra.mxu0 0.0
    %1672 = vmatprep.subr.mxu0 0.0
    %1673 = vmatpush1.msra.mxu0 0.0
    %1674 = vmatprep.subr.mxu0 0.0
    %1675 = vmatpush1.msra.mxu0 0.0
    %1676 = vmatprep.subr.mxu0 0.0
    %1677 = vmatpush1.msra.mxu0 0.0
    %1678 = vmatprep.subr.mxu0 0.0
    %1679 = vmatpush1.msra.mxu0 0.0
    %1680 = vmatprep.subr.mxu0 0.0
    %1681 = vmatpush1.msra.mxu0 0.0
    %1682 = vmatprep.subr.mxu0 0.0
    %1683 = vmatpush1.msra.mxu0 0.0
    %1684 = vmatprep.subr.mxu0 0.0
    %1685 = vmatpush1.msra.mxu0 0.0
    %1686 = vmatprep.subr.mxu0 0.0
    %1687 = vmatpush1.msra.mxu0 0.0
    %1688 = vmatprep.subr.mxu0 0.0
    %1689 = vmatpush1.msra.mxu0 0.0
    %1690 = vmatprep.subr.mxu0 0.0
    %1691 = vmatpush1.msra.mxu0 0.0
    %1692 = vmatprep.subr.mxu0 0.0
    %1693 = vmatpush1.msra.mxu0 0.0
    %1694 = vmatprep.subr.mxu0 0.0
    %1695 = vmatpush1.msra.mxu0 0.0
    %1696 = vmatprep.subr.mxu0 0.0
    %1697 = vmatpush1.msra.mxu0 0.0
    %1698 = vmatprep.subr.mxu0 0.0
    %1699 = vmatpush1.msra.mxu0 0.0
    %1700 = vmatprep.subr.mxu0 0.0
    %1701 = vmatpush1.msra.mxu0 0.0
    %1702 = vmatprep.subr.mxu0 0.0
    %1703 = vmatpush1.msra.mxu0 0.0
    %1704 = vmatprep.subr.mxu0 0.0
    %1705 = vmatpush1.msra.mxu0 0.0
    %1706 = vmatprep.subr.mxu0 0.0
    %1707 = vmatpush1.msra.mxu0 0.0
    %1708 = vmatprep.subr.mxu0 0.0
    %1709 = vmatpush1.msra.mxu0 0.0
    %1710 = vmatprep.subr.mxu0 0.0
    %1711 = vmatpush1.msra.mxu0 0.0
    %1712 = vmatprep.subr.mxu0 0.0
    %1713 = vmatpush1.msra.mxu0 0.0
    %1714 = vmatprep.subr.mxu0 0.0
    %1715 = vmatpush1.msra.mxu0 0.0
    %1716 = vmatprep.mubr.f32.mxu0 0.0
    %1717 = vmatmul.mubr.f32.gmra.mrb[0].mxu0 %v1647
    %v1718 = vpop.f32.mrb[0].mxu0
    %v1719 = vadd.f32 0.0, %v1718
    %v1720 = vpop.f32.mrb[0].mxu0
    %v1721 = vadd.f32 0.0, %v1720
    %1722 = vmatprep.mubr.f32.mxu0 0.0
    %1723 = vmatmul.mubr.f32.gmra.mrb[0].mxu0 %v1650
    %v1724 = vpop.f32.mrb[0].mxu0
    %v1725 = vadd.f32 0.0, %v1724
    %v1726 = vpop.f32.mrb[0].mxu0
    %v1727 = vadd.f32 0.0, %v1726
    %1728 = vdwg.mxu0
    %v1729 = vld [vmem:[%s5] sm:$0xff]
    %v1730 = vld [vmem:[%s5 + $0x8] sm:$0xff]
    %v1731 = vld [vmem:[%s5 + $0x10] sm:$0xff]
    %v1732 = vld [vmem:[%s5 + $0x18] sm:$0xff]
    %v1733 = vld [vmem:[%s5 + $0x20] sm:$0xff]
    %v1734 = vld [vmem:[%s5 + $0x28] sm:$0xff]
    %v1735 = vld [vmem:[%s5 + $0x30] sm:$0xff]
    %v1736 = vld [vmem:[%s5 + $0x38] sm:$0xff]
    %v1737 = vld [vmem:[%s5 + $0x40] sm:$0xff]
    %v1738 = vld [vmem:[%s5 + $0x48] sm:$0xff]
    %v1739 = vld [vmem:[%s5 + $0x50] sm:$0xff]
    %v1740 = vld [vmem:[%s5 + $0x58] sm:$0xff]
    %v1741 = vld [vmem:[%s5 + $0x60] sm:$0xff]
    %v1742 = vld [vmem:[%s5 + $0x68] sm:$0xff]
    %v1743 = vld [vmem:[%s5 + $0x70] sm:$0xff]
    %v1744 = vld [vmem:[%s5 + $0x78] sm:$0xff]
    %v1745 = vld [vmem:[%s5 + $0x80] sm:$0xff]
    %v1746 = vld [vmem:[%s5 + $0x88] sm:$0xff]
    %v1747 = vld [vmem:[%s5 + $0x90] sm:$0xff]
    %v1748 = vld [vmem:[%s5 + $0x98] sm:$0xff]
    %v1749 = vld [vmem:[%s5 + $0xa0] sm:$0xff]
    %v1750 = vld [vmem:[%s5 + $0xa8] sm:$0xff]
    %v1751 = vld [vmem:[%s5 + $0xb0] sm:$0xff]
    %v1752 = vld [vmem:[%s5 + $0xb8] sm:$0xff]
    %v1753 = vld [vmem:[%s5 + $0xc0] sm:$0xff]
    %v1754 = vld [vmem:[%s5 + $0xc8] sm:$0xff]
    %v1755 = vld [vmem:[%s5 + $0xd0] sm:$0xff]
    %v1756 = vld [vmem:[%s5 + $0xd8] sm:$0xff]
    %v1757 = vld [vmem:[%s5 + $0xe0] sm:$0xff]
    %v1758 = vld [vmem:[%s5 + $0xe8] sm:$0xff]
    %v1759 = vld [vmem:[%s5 + $0xf0] sm:$0xff]
    %v1760 = vld [vmem:[%s5 + $0xf8] sm:$0xff]
    %s1761 = scalar_lea.vmem [#allocation7], 16
    %v1762 = vld [vmem:[%s1761] sm:$0xff]
    %v1763 = vld [vmem:[%s1761 + $0x8] sm:$0xff]
    %v1765 = vsel %vm645, %v1762, 0
    %v1768 = vsel %vm645, %v1763, 0
    %1770 = vmatprep.subr.mxu0 %v1629
    %1771 = vmatpush1.msra.mxu0 %v1628
    %1772 = vmatprep.subr.mxu0 %v1631
    %1773 = vmatpush1.msra.mxu0 %v1630
    %1774 = vmatprep.subr.mxu0 %v1633
    %1775 = vmatpush1.msra.mxu0 %v1632
    %1776 = vmatprep.subr.mxu0 %v1635
    %1777 = vmatpush1.msra.mxu0 %v1634
    %1778 = vmatprep.subr.mxu0 %v1637
    %1779 = vmatpush1.msra.mxu0 %v1636
    %1780 = vmatprep.subr.mxu0 %v1639
    %1781 = vmatpush1.msra.mxu0 %v1638
    %1782 = vmatprep.subr.mxu0 %v1641
    %1783 = vmatpush1.msra.mxu0 %v1640
    %1784 = vmatprep.subr.mxu0 %v1643
    %1785 = vmatpush1.msra.mxu0 %v1642
    %1786 = vmatprep.subr.mxu0 0.0
    %1787 = vmatpush1.msra.mxu0 0.0
    %1788 = vmatprep.subr.mxu0 0.0
    %1789 = vmatpush1.msra.mxu0 0.0
    %1790 = vmatprep.subr.mxu0 0.0
    %1791 = vmatpush1.msra.mxu0 0.0
    %1792 = vmatprep.subr.mxu0 0.0
    %1793 = vmatpush1.msra.mxu0 0.0
    %1794 = vmatprep.subr.mxu0 0.0
    %1795 = vmatpush1.msra.mxu0 0.0
    %1796 = vmatprep.subr.mxu0 0.0
    %1797 = vmatpush1.msra.mxu0 0.0
    %1798 = vmatprep.subr.mxu0 0.0
    %1799 = vmatpush1.msra.mxu0 0.0
    %1800 = vmatprep.subr.mxu0 0.0
    %1801 = vmatpush1.msra.mxu0 0.0
    %1802 = vmatprep.subr.mxu0 0.0
    %1803 = vmatpush1.msra.mxu0 0.0
    %1804 = vmatprep.subr.mxu0 0.0
    %1805 = vmatpush1.msra.mxu0 0.0
    %1806 = vmatprep.subr.mxu0 0.0
    %1807 = vmatpush1.msra.mxu0 0.0
    %1808 = vmatprep.subr.mxu0 0.0
    %1809 = vmatpush1.msra.mxu0 0.0
    %1810 = vmatprep.subr.mxu0 0.0
    %1811 = vmatpush1.msra.mxu0 0.0
    %1812 = vmatprep.subr.mxu0 0.0
    %1813 = vmatpush1.msra.mxu0 0.0
    %1814 = vmatprep.subr.mxu0 0.0
    %1815 = vmatpush1.msra.mxu0 0.0
    %1816 = vmatprep.subr.mxu0 0.0
    %1817 = vmatpush1.msra.mxu0 0.0
    %1818 = vmatprep.subr.mxu0 0.0
    %1819 = vmatpush1.msra.mxu0 0.0
    %1820 = vmatprep.subr.mxu0 0.0
    %1821 = vmatpush1.msra.mxu0 0.0
    %1822 = vmatprep.subr.mxu0 0.0
    %1823 = vmatpush1.msra.mxu0 0.0
    %1824 = vmatprep.subr.mxu0 0.0
    %1825 = vmatpush1.msra.mxu0 0.0
    %1826 = vmatprep.subr.mxu0 0.0
    %1827 = vmatpush1.msra.mxu0 0.0
    %1828 = vmatprep.subr.mxu0 0.0
    %1829 = vmatpush1.msra.mxu0 0.0
    %1830 = vmatprep.subr.mxu0 0.0
    %1831 = vmatpush1.msra.mxu0 0.0
    %1832 = vmatprep.subr.mxu0 0.0
    %1833 = vmatpush1.msra.mxu0 0.0
    %1834 = vmatprep.mubr.f32.mxu0 0.0
    %1835 = vmatmul.mubr.f32.gmra.mrb[0].mxu0 %v1765
    %v1836 = vpop.f32.mrb[0].mxu0
    %v1837 = vadd.f32 0.0, %v1836
    %v1838 = vpop.f32.mrb[0].mxu0
    %v1839 = vadd.f32 0.0, %v1838
    %1840 = vmatprep.mubr.f32.mxu0 0.0
    %1841 = vmatmul.mubr.f32.gmra.mrb[0].mxu0 %v1768
    %v1842 = vpop.f32.mrb[0].mxu0
    %v1843 = vadd.f32 0.0, %v1842
    %v1844 = vpop.f32.mrb[0].mxu0
    %v1845 = vadd.f32 0.0, %v1844
    %1846 = vdwg.mxu0
    %s1847 = scalar_lea.vmem %s5, 256
    %v1848 = vld [vmem:[%s1847] sm:$0xff]
    %v1849 = vld [vmem:[%s1847 + $0x8] sm:$0xff]
    %v1850 = vld [vmem:[%s1847 + $0x10] sm:$0xff]
    %v1851 = vld [vmem:[%s1847 + $0x18] sm:$0xff]
    %v1852 = vld [vmem:[%s1847 + $0x20] sm:$0xff]
    %v1853 = vld [vmem:[%s1847 + $0x28] sm:$0xff]
    %v1854 = vld [vmem:[%s1847 + $0x30] sm:$0xff]
    %v1855 = vld [vmem:[%s1847 + $0x38] sm:$0xff]
    %v1856 = vld [vmem:[%s1847 + $0x40] sm:$0xff]
    %v1857 = vld [vmem:[%s1847 + $0x48] sm:$0xff]
    %v1858 = vld [vmem:[%s1847 + $0x50] sm:$0xff]
    %v1859 = vld [vmem:[%s1847 + $0x58] sm:$0xff]
    %v1860 = vld [vmem:[%s1847 + $0x60] sm:$0xff]
    %v1861 = vld [vmem:[%s1847 + $0x68] sm:$0xff]
    %v1862 = vld [vmem:[%s1847 + $0x70] sm:$0xff]
    %v1863 = vld [vmem:[%s1847 + $0x78] sm:$0xff]
    %v1864 = vld [vmem:[%s1847 + $0x80] sm:$0xff]
    %v1865 = vld [vmem:[%s1847 + $0x88] sm:$0xff]
    %v1866 = vld [vmem:[%s1847 + $0x90] sm:$0xff]
    %v1867 = vld [vmem:[%s1847 + $0x98] sm:$0xff]
    %v1868 = vld [vmem:[%s1847 + $0xa0] sm:$0xff]
    %v1869 = vld [vmem:[%s1847 + $0xa8] sm:$0xff]
    %v1870 = vld [vmem:[%s1847 + $0xb0] sm:$0xff]
    %v1871 = vld [vmem:[%s1847 + $0xb8] sm:$0xff]
    %v1872 = vld [vmem:[%s1847 + $0xc0] sm:$0xff]
    %v1873 = vld [vmem:[%s1847 + $0xc8] sm:$0xff]
    %v1874 = vld [vmem:[%s1847 + $0xd0] sm:$0xff]
    %v1875 = vld [vmem:[%s1847 + $0xd8] sm:$0xff]
    %v1876 = vld [vmem:[%s1847 + $0xe0] sm:$0xff]
    %v1877 = vld [vmem:[%s1847 + $0xe8] sm:$0xff]
    %v1878 = vld [vmem:[%s1847 + $0xf0] sm:$0xff]
    %v1879 = vld [vmem:[%s1847 + $0xf8] sm:$0xff]
    %1880 = vmatprep.subr.mxu0 0.0
    %1881 = vmatpush1.msra.mxu0 %v1848
    %1882 = vmatprep.subr.mxu0 0.0
    %1883 = vmatpush1.msra.mxu0 %v1849
    %1884 = vmatprep.subr.mxu0 0.0
    %1885 = vmatpush1.msra.mxu0 %v1850
    %1886 = vmatprep.subr.mxu0 0.0
    %1887 = vmatpush1.msra.mxu0 %v1851
    %1888 = vmatprep.subr.mxu0 0.0
    %1889 = vmatpush1.msra.mxu0 %v1852
    %1890 = vmatprep.subr.mxu0 0.0
    %1891 = vmatpush1.msra.mxu0 %v1853
    %1892 = vmatprep.subr.mxu0 0.0
    %1893 = vmatpush1.msra.mxu0 %v1854
    %1894 = vmatprep.subr.mxu0 0.0
    %1895 = vmatpush1.msra.mxu0 %v1855
    %1896 = vmatprep.subr.mxu0 0.0
    %1897 = vmatpush1.msra.mxu0 %v1856
    %1898 = vmatprep.subr.mxu0 0.0
    %1899 = vmatpush1.msra.mxu0 %v1857
    %1900 = vmatprep.subr.mxu0 0.0
    %1901 = vmatpush1.msra.mxu0 %v1858
    %1902 = vmatprep.subr.mxu0 0.0
    %1903 = vmatpush1.msra.mxu0 %v1859
    %1904 = vmatprep.subr.mxu0 0.0
    %1905 = vmatpush1.msra.mxu0 %v1860
    %1906 = vmatprep.subr.mxu0 0.0
    %1907 = vmatpush1.msra.mxu0 %v1861
    %1908 = vmatprep.subr.mxu0 0.0
    %1909 = vmatpush1.msra.mxu0 %v1862
    %1910 = vmatprep.subr.mxu0 0.0
    %1911 = vmatpush1.msra.mxu0 %v1863
    %1912 = vmatprep.subr.mxu0 0.0
    %1913 = vmatpush1.msra.mxu0 %v1864
    %1914 = vmatprep.subr.mxu0 0.0
    %1915 = vmatpush1.msra.mxu0 %v1865
    %1916 = vmatprep.subr.mxu0 0.0
    %1917 = vmatpush1.msra.mxu0 %v1866
    %1918 = vmatprep.subr.mxu0 0.0
    %1919 = vmatpush1.msra.mxu0 %v1867
    %1920 = vmatprep.subr.mxu0 0.0
    %1921 = vmatpush1.msra.mxu0 %v1868
    %1922 = vmatprep.subr.mxu0 0.0
    %1923 = vmatpush1.msra.mxu0 %v1869
    %1924 = vmatprep.subr.mxu0 0.0
    %1925 = vmatpush1.msra.mxu0 %v1870
    %1926 = vmatprep.subr.mxu0 0.0
    %1927 = vmatpush1.msra.mxu0 %v1871
    %1928 = vmatprep.subr.mxu0 0.0
    %1929 = vmatpush1.msra.mxu0 %v1872
    %1930 = vmatprep.subr.mxu0 0.0
    %1931 = vmatpush1.msra.mxu0 %v1873
    %1932 = vmatprep.subr.mxu0 0.0
    %1933 = vmatpush1.msra.mxu0 %v1874
    %1934 = vmatprep.subr.mxu0 0.0
    %1935 = vmatpush1.msra.mxu0 %v1875
    %1936 = vmatprep.subr.mxu0 0.0
    %1937 = vmatpush1.msra.mxu0 %v1876
    %1938 = vmatprep.subr.mxu0 0.0
    %1939 = vmatpush1.msra.mxu0 %v1877
    %1940 = vmatprep.subr.mxu0 0.0
    %1941 = vmatpush1.msra.mxu0 %v1878
    %1942 = vmatprep.subr.mxu0 0.0
    %1943 = vmatpush1.msra.mxu0 %v1879
    %1944 = vmatprep.mubr.f32.mxu0 %v1839
    %1945 = vmatmul.mubr.f32.gmra.mrb[0].mxu0 %v1837
    %v1946 = vpop.f32.mrb[0].mxu0
    %v1947 = vadd.f32 0.0, %v1946
    %v1948 = vpop.f32.mrb[0].mxu0
    %1949 = vmatprep.mubr.f32.mxu0 %v1845
    %1950 = vmatmul.mubr.f32.gmra.mrb[0].mxu0 %v1843
    %v1951 = vpop.f32.mrb[0].mxu0
    %v1952 = vadd.f32 0.0, %v1951
    %v1953 = vpop.f32.mrb[0].mxu0
    %1954 = vdwg.mxu0
    %1955 = vmatprep.subr.mxu0 0.0
    %1956 = vmatpush1.msra.mxu0 %v1729
    %1957 = vmatprep.subr.mxu0 0.0
    %1958 = vmatpush1.msra.mxu0 %v1730
    %1959 = vmatprep.subr.mxu0 0.0
    %1960 = vmatpush1.msra.mxu0 %v1731
    %1961 = vmatprep.subr.mxu0 0.0
    %1962 = vmatpush1.msra.mxu0 %v1732
    %1963 = vmatprep.subr.mxu0 0.0
    %1964 = vmatpush1.msra.mxu0 %v1733
    %1965 = vmatprep.subr.mxu0 0.0
    %1966 = vmatpush1.msra.mxu0 %v1734
    %1967 = vmatprep.subr.mxu0 0.0
    %1968 = vmatpush1.msra.mxu0 %v1735
    %1969 = vmatprep.subr.mxu0 0.0
    %1970 = vmatpush1.msra.mxu0 %v1736
    %1971 = vmatprep.subr.mxu0 0.0
    %1972 = vmatpush1.msra.mxu0 %v1737
    %1973 = vmatprep.subr.mxu0 0.0
    %1974 = vmatpush1.msra.mxu0 %v1738
    %1975 = vmatprep.subr.mxu0 0.0
    %1976 = vmatpush1.msra.mxu0 %v1739
    %1977 = vmatprep.subr.mxu0 0.0
    %1978 = vmatpush1.msra.mxu0 %v1740
    %1979 = vmatprep.subr.mxu0 0.0
    %1980 = vmatpush1.msra.mxu0 %v1741
    %1981 = vmatprep.subr.mxu0 0.0
    %1982 = vmatpush1.msra.mxu0 %v1742
    %1983 = vmatprep.subr.mxu0 0.0
    %1984 = vmatpush1.msra.mxu0 %v1743
    %1985 = vmatprep.subr.mxu0 0.0
    %1986 = vmatpush1.msra.mxu0 %v1744
    %1987 = vmatprep.subr.mxu0 0.0
    %1988 = vmatpush1.msra.mxu0 %v1745
    %1989 = vmatprep.subr.mxu0 0.0
    %1990 = vmatpush1.msra.mxu0 %v1746
    %1991 = vmatprep.subr.mxu0 0.0
    %1992 = vmatpush1.msra.mxu0 %v1747
    %1993 = vmatprep.subr.mxu0 0.0
    %1994 = vmatpush1.msra.mxu0 %v1748
    %1995 = vmatprep.subr.mxu0 0.0
    %1996 = vmatpush1.msra.mxu0 %v1749
    %1997 = vmatprep.subr.mxu0 0.0
    %1998 = vmatpush1.msra.mxu0 %v1750
    %1999 = vmatprep.subr.mxu0 0.0
    %2000 = vmatpush1.msra.mxu0 %v1751
    %2001 = vmatprep.subr.mxu0 0.0
    %2002 = vmatpush1.msra.mxu0 %v1752
    %2003 = vmatprep.subr.mxu0 0.0
    %2004 = vmatpush1.msra.mxu0 %v1753
    %2005 = vmatprep.subr.mxu0 0.0
    %2006 = vmatpush1.msra.mxu0 %v1754
    %2007 = vmatprep.subr.mxu0 0.0
    %2008 = vmatpush1.msra.mxu0 %v1755
    %2009 = vmatprep.subr.mxu0 0.0
    %2010 = vmatpush1.msra.mxu0 %v1756
    %2011 = vmatprep.subr.mxu0 0.0
    %2012 = vmatpush1.msra.mxu0 %v1757
    %2013 = vmatprep.subr.mxu0 0.0
    %2014 = vmatpush1.msra.mxu0 %v1758
    %2015 = vmatprep.subr.mxu0 0.0
    %2016 = vmatpush1.msra.mxu0 %v1759
    %2017 = vmatprep.subr.mxu0 0.0
    %2018 = vmatpush1.msra.mxu0 %v1760
    %2019 = vmatprep.mubr.f32.mxu0 %v1721
    %2020 = vmatmul.mubr.f32.gmra.mrb[0].mxu0 %v1719
    %v2021 = vpop.f32.mrb[0].mxu0
    %v2022 = vadd.f32 %v1947, %v2021
    %v2023 = vpop.f32.mrb[0].mxu0
    %2024 = vmatprep.mubr.f32.mxu0 %v1727
    %2025 = vmatmul.mubr.f32.gmra.mrb[0].mxu0 %v1725
    %v2026 = vpop.f32.mrb[0].mxu0
    %v2027 = vadd.f32 %v1952, %v2026
    %v2028 = vpop.f32.mrb[0].mxu0
    %2029 = vdwg.mxu0
    %s2030 = scalar_lea.vmem [#allocation7], 32
    %v2031 = vld [vmem:[%s2030] sm:$0xff]
    %v2032 = vld [vmem:[%s2030 + $0x8] sm:$0xff]
    %v2034 = vsel %vm645, %v2031, 0
    %v2037 = vsel %vm645, %v2032, 0
    %2039 = vmatprep.subr.mxu0 %v1629
    %2040 = vmatpush1.msra.mxu0 %v1628
    %2041 = vmatprep.subr.mxu0 %v1631
    %2042 = vmatpush1.msra.mxu0 %v1630
    %2043 = vmatprep.subr.mxu0 %v1633
    %2044 = vmatpush1.msra.mxu0 %v1632
    %2045 = vmatprep.subr.mxu0 %v1635
    %2046 = vmatpush1.msra.mxu0 %v1634
    %2047 = vmatprep.subr.mxu0 %v1637
    %2048 = vmatpush1.msra.mxu0 %v1636
    %2049 = vmatprep.subr.mxu0 %v1639
    %2050 = vmatpush1.msra.mxu0 %v1638
    %2051 = vmatprep.subr.mxu0 %v1641
    %2052 = vmatpush1.msra.mxu0 %v1640
    %2053 = vmatprep.subr.mxu0 %v1643
    %2054 = vmatpush1.msra.mxu0 %v1642
    %2055 = vmatprep.subr.mxu0 0.0
    %2056 = vmatpush1.msra.mxu0 0.0
    %2057 = vmatprep.subr.mxu0 0.0
    %2058 = vmatpush1.msra.mxu0 0.0
    %2059 = vmatprep.subr.mxu0 0.0
    %2060 = vmatpush1.msra.mxu0 0.0
    %2061 = vmatprep.subr.mxu0 0.0
    %2062 = vmatpush1.msra.mxu0 0.0
    %2063 = vmatprep.subr.mxu0 0.0
    %2064 = vmatpush1.msra.mxu0 0.0
    %2065 = vmatprep.subr.mxu0 0.0
    %2066 = vmatpush1.msra.mxu0 0.0
    %2067 = vmatprep.subr.mxu0 0.0
    %2068 = vmatpush1.msra.mxu0 0.0
    %2069 = vmatprep.subr.mxu0 0.0
    %2070 = vmatpush1.msra.mxu0 0.0
    %2071 = vmatprep.subr.mxu0 0.0
    %2072 = vmatpush1.msra.mxu0 0.0
    %2073 = vmatprep.subr.mxu0 0.0
    %2074 = vmatpush1.msra.mxu0 0.0
    %2075 = vmatprep.subr.mxu0 0.0
    %2076 = vmatpush1.msra.mxu0 0.0
    %2077 = vmatprep.subr.mxu0 0.0
    %2078 = vmatpush1.msra.mxu0 0.0
    %2079 = vmatprep.subr.mxu0 0.0
    %2080 = vmatpush1.msra.mxu0 0.0
    %2081 = vmatprep.subr.mxu0 0.0
    %2082 = vmatpush1.msra.mxu0 0.0
    %2083 = vmatprep.subr.mxu0 0.0
    %2084 = vmatpush1.msra.mxu0 0.0
    %2085 = vmatprep.subr.mxu0 0.0
    %2086 = vmatpush1.msra.mxu0 0.0
    %2087 = vmatprep.subr.mxu0 0.0
    %2088 = vmatpush1.msra.mxu0 0.0
    %2089 = vmatprep.subr.mxu0 0.0
    %2090 = vmatpush1.msra.mxu0 0.0
    %2091 = vmatprep.subr.mxu0 0.0
    %2092 = vmatpush1.msra.mxu0 0.0
    %2093 = vmatprep.subr.mxu0 0.0
    %2094 = vmatpush1.msra.mxu0 0.0
    %2095 = vmatprep.subr.mxu0 0.0
    %2096 = vmatpush1.msra.mxu0 0.0
    %2097 = vmatprep.subr.mxu0 0.0
    %2098 = vmatpush1.msra.mxu0 0.0
    %2099 = vmatprep.subr.mxu0 0.0
    %2100 = vmatpush1.msra.mxu0 0.0
    %2101 = vmatprep.subr.mxu0 0.0
    %2102 = vmatpush1.msra.mxu0 0.0
    %2103 = vmatprep.mubr.f32.mxu0 0.0
    %2104 = vmatmul.mubr.f32.gmra.mrb[0].mxu0 %v2034
    %v2105 = vpop.f32.mrb[0].mxu0
    %v2106 = vadd.f32 0.0, %v2105
    %v2107 = vpop.f32.mrb[0].mxu0
    %v2108 = vadd.f32 0.0, %v2107
    %2109 = vmatprep.mubr.f32.mxu0 0.0
    %2110 = vmatmul.mubr.f32.gmra.mrb[0].mxu0 %v2037
    %v2111 = vpop.f32.mrb[0].mxu0
    %v2112 = vadd.f32 0.0, %v2111
    %v2113 = vpop.f32.mrb[0].mxu0
    %v2114 = vadd.f32 0.0, %v2113
    %2115 = vdwg.mxu0
    %s2116 = scalar_lea.vmem %s5, 512
    %v2117 = vld [vmem:[%s2116] sm:$0xff]
    %v2118 = vld [vmem:[%s2116 + $0x8] sm:$0xff]
    %v2119 = vld [vmem:[%s2116 + $0x10] sm:$0xff]
    %v2120 = vld [vmem:[%s2116 + $0x18] sm:$0xff]
    %v2121 = vld [vmem:[%s2116 + $0x20] sm:$0xff]
    %v2122 = vld [vmem:[%s2116 + $0x28] sm:$0xff]
    %v2123 = vld [vmem:[%s2116 + $0x30] sm:$0xff]
    %v2124 = vld [vmem:[%s2116 + $0x38] sm:$0xff]
    %v2125 = vld [vmem:[%s2116 + $0x40] sm:$0xff]
    %v2126 = vld [vmem:[%s2116 + $0x48] sm:$0xff]
    %v2127 = vld [vmem:[%s2116 + $0x50] sm:$0xff]
    %v2128 = vld [vmem:[%s2116 + $0x58] sm:$0xff]
    %v2129 = vld [vmem:[%s2116 + $0x60] sm:$0xff]
    %v2130 = vld [vmem:[%s2116 + $0x68] sm:$0xff]
    %v2131 = vld [vmem:[%s2116 + $0x70] sm:$0xff]
    %v2132 = vld [vmem:[%s2116 + $0x78] sm:$0xff]
    %v2133 = vld [vmem:[%s2116 + $0x80] sm:$0xff]
    %v2134 = vld [vmem:[%s2116 + $0x88] sm:$0xff]
    %v2135 = vld [vmem:[%s2116 + $0x90] sm:$0xff]
    %v2136 = vld [vmem:[%s2116 + $0x98] sm:$0xff]
    %v2137 = vld [vmem:[%s2116 + $0xa0] sm:$0xff]
    %v2138 = vld [vmem:[%s2116 + $0xa8] sm:$0xff]
    %v2139 = vld [vmem:[%s2116 + $0xb0] sm:$0xff]
    %v2140 = vld [vmem:[%s2116 + $0xb8] sm:$0xff]
    %v2141 = vld [vmem:[%s2116 + $0xc0] sm:$0xff]
    %v2142 = vld [vmem:[%s2116 + $0xc8] sm:$0xff]
    %v2143 = vld [vmem:[%s2116 + $0xd0] sm:$0xff]
    %v2144 = vld [vmem:[%s2116 + $0xd8] sm:$0xff]
    %v2145 = vld [vmem:[%s2116 + $0xe0] sm:$0xff]
    %v2146 = vld [vmem:[%s2116 + $0xe8] sm:$0xff]
    %v2147 = vld [vmem:[%s2116 + $0xf0] sm:$0xff]
    %v2148 = vld [vmem:[%s2116 + $0xf8] sm:$0xff]
    %2149 = vmatprep.subr.mxu0 0.0
    %2150 = vmatpush1.msra.mxu0 %v2117
    %2151 = vmatprep.subr.mxu0 0.0
    %2152 = vmatpush1.msra.mxu0 %v2118
    %2153 = vmatprep.subr.mxu0 0.0
    %2154 = vmatpush1.msra.mxu0 %v2119
    %2155 = vmatprep.subr.mxu0 0.0
    %2156 = vmatpush1.msra.mxu0 %v2120
    %2157 = vmatprep.subr.mxu0 0.0
    %2158 = vmatpush1.msra.mxu0 %v2121
    %2159 = vmatprep.subr.mxu0 0.0
    %2160 = vmatpush1.msra.mxu0 %v2122
    %2161 = vmatprep.subr.mxu0 0.0
    %2162 = vmatpush1.msra.mxu0 %v2123
    %2163 = vmatprep.subr.mxu0 0.0
    %2164 = vmatpush1.msra.mxu0 %v2124
    %2165 = vmatprep.subr.mxu0 0.0
    %2166 = vmatpush1.msra.mxu0 %v2125
    %2167 = vmatprep.subr.mxu0 0.0
    %2168 = vmatpush1.msra.mxu0 %v2126
    %2169 = vmatprep.subr.mxu0 0.0
    %2170 = vmatpush1.msra.mxu0 %v2127
    %2171 = vmatprep.subr.mxu0 0.0
    %2172 = vmatpush1.msra.mxu0 %v2128
    %2173 = vmatprep.subr.mxu0 0.0
    %2174 = vmatpush1.msra.mxu0 %v2129
    %2175 = vmatprep.subr.mxu0 0.0
    %2176 = vmatpush1.msra.mxu0 %v2130
    %2177 = vmatprep.subr.mxu0 0.0
    %2178 = vmatpush1.msra.mxu0 %v2131
    %2179 = vmatprep.subr.mxu0 0.0
    %2180 = vmatpush1.msra.mxu0 %v2132
    %2181 = vmatprep.subr.mxu0 0.0
    %2182 = vmatpush1.msra.mxu0 %v2133
    %2183 = vmatprep.subr.mxu0 0.0
    %2184 = vmatpush1.msra.mxu0 %v2134
    %2185 = vmatprep.subr.mxu0 0.0
    %2186 = vmatpush1.msra.mxu0 %v2135
    %2187 = vmatprep.subr.mxu0 0.0
    %2188 = vmatpush1.msra.mxu0 %v2136
    %2189 = vmatprep.subr.mxu0 0.0
    %2190 = vmatpush1.msra.mxu0 %v2137
    %2191 = vmatprep.subr.mxu0 0.0
    %2192 = vmatpush1.msra.mxu0 %v2138
    %2193 = vmatprep.subr.mxu0 0.0
    %2194 = vmatpush1.msra.mxu0 %v2139
    %2195 = vmatprep.subr.mxu0 0.0
    %2196 = vmatpush1.msra.mxu0 %v2140
    %2197 = vmatprep.subr.mxu0 0.0
    %2198 = vmatpush1.msra.mxu0 %v2141
    %2199 = vmatprep.subr.mxu0 0.0
    %2200 = vmatpush1.msra.mxu0 %v2142
    %2201 = vmatprep.subr.mxu0 0.0
    %2202 = vmatpush1.msra.mxu0 %v2143
    %2203 = vmatprep.subr.mxu0 0.0
    %2204 = vmatpush1.msra.mxu0 %v2144
    %2205 = vmatprep.subr.mxu0 0.0
    %2206 = vmatpush1.msra.mxu0 %v2145
    %2207 = vmatprep.subr.mxu0 0.0
    %2208 = vmatpush1.msra.mxu0 %v2146
    %2209 = vmatprep.subr.mxu0 0.0
    %2210 = vmatpush1.msra.mxu0 %v2147
    %2211 = vmatprep.subr.mxu0 0.0
    %2212 = vmatpush1.msra.mxu0 %v2148
    %2213 = vmatprep.mubr.f32.mxu0 %v2108
    %2214 = vmatmul.mubr.f32.gmra.mrb[0].mxu0 %v2106
    %v2215 = vpop.f32.mrb[0].mxu0
    %v2216 = vadd.f32 0.0, %v2215
    %v2217 = vpop.f32.mrb[0].mxu0
    %2218 = vmatprep.mubr.f32.mxu0 %v2114
    %2219 = vmatmul.mubr.f32.gmra.mrb[0].mxu0 %v2112
    %v2220 = vpop.f32.mrb[0].mxu0
    %v2221 = vadd.f32 0.0, %v2220
    %v2222 = vpop.f32.mrb[0].mxu0
    %2223 = vdwg.mxu0
    %v2224 = vadd.f32 %v2022, %v2216
    %v2225 = vadd.f32 %v2027, %v2221
    %s2226 = scalar_lea.vmem [#allocation7], 48
    %v2227 = vld [vmem:[%s2226] sm:$0xff]
    %v2228 = vld [vmem:[%s2226 + $0x8] sm:$0xff]
    %v2230 = vsel %vm645, %v2227, 0
    %v2233 = vsel %vm645, %v2228, 0
    %2235 = vmatprep.subr.mxu0 %v1629
    %2236 = vmatpush1.msra.mxu0 %v1628
    %2237 = vmatprep.subr.mxu0 %v1631
    %2238 = vmatpush1.msra.mxu0 %v1630
    %2239 = vmatprep.subr.mxu0 %v1633
    %2240 = vmatpush1.msra.mxu0 %v1632
    %2241 = vmatprep.subr.mxu0 %v1635
    %2242 = vmatpush1.msra.mxu0 %v1634
    %2243 = vmatprep.subr.mxu0 %v1637
    %2244 = vmatpush1.msra.mxu0 %v1636
    %2245 = vmatprep.subr.mxu0 %v1639
    %2246 = vmatpush1.msra.mxu0 %v1638
    %2247 = vmatprep.subr.mxu0 %v1641
    %2248 = vmatpush1.msra.mxu0 %v1640
    %2249 = vmatprep.subr.mxu0 %v1643
    %2250 = vmatpush1.msra.mxu0 %v1642
    %2251 = vmatprep.subr.mxu0 0.0
    %2252 = vmatpush1.msra.mxu0 0.0
    %2253 = vmatprep.subr.mxu0 0.0
    %2254 = vmatpush1.msra.mxu0 0.0
    %2255 = vmatprep.subr.mxu0 0.0
    %2256 = vmatpush1.msra.mxu0 0.0
    %2257 = vmatprep.subr.mxu0 0.0
    %2258 = vmatpush1.msra.mxu0 0.0
    %2259 = vmatprep.subr.mxu0 0.0
    %2260 = vmatpush1.msra.mxu0 0.0
    %2261 = vmatprep.subr.mxu0 0.0
    %2262 = vmatpush1.msra.mxu0 0.0
    %2263 = vmatprep.subr.mxu0 0.0
    %2264 = vmatpush1.msra.mxu0 0.0
    %2265 = vmatprep.subr.mxu0 0.0
    %2266 = vmatpush1.msra.mxu0 0.0
    %2267 = vmatprep.subr.mxu0 0.0
    %2268 = vmatpush1.msra.mxu0 0.0
    %2269 = vmatprep.subr.mxu0 0.0
    %2270 = vmatpush1.msra.mxu0 0.0
    %2271 = vmatprep.subr.mxu0 0.0
    %2272 = vmatpush1.msra.mxu0 0.0
    %2273 = vmatprep.subr.mxu0 0.0
    %2274 = vmatpush1.msra.mxu0 0.0
    %2275 = vmatprep.subr.mxu0 0.0
    %2276 = vmatpush1.msra.mxu0 0.0
    %2277 = vmatprep.subr.mxu0 0.0
    %2278 = vmatpush1.msra.mxu0 0.0
    %2279 = vmatprep.subr.mxu0 0.0
    %2280 = vmatpush1.msra.mxu0 0.0
    %2281 = vmatprep.subr.mxu0 0.0
    %2282 = vmatpush1.msra.mxu0 0.0
    %2283 = vmatprep.subr.mxu0 0.0
    %2284 = vmatpush1.msra.mxu0 0.0
    %2285 = vmatprep.subr.mxu0 0.0
    %2286 = vmatpush1.msra.mxu0 0.0
    %2287 = vmatprep.subr.mxu0 0.0
    %2288 = vmatpush1.msra.mxu0 0.0
    %2289 = vmatprep.subr.mxu0 0.0
    %2290 = vmatpush1.msra.mxu0 0.0
    %2291 = vmatprep.subr.mxu0 0.0
    %2292 = vmatpush1.msra.mxu0 0.0
    %2293 = vmatprep.subr.mxu0 0.0
    %2294 = vmatpush1.msra.mxu0 0.0
    %2295 = vmatprep.subr.mxu0 0.0
    %2296 = vmatpush1.msra.mxu0 0.0
    %2297 = vmatprep.subr.mxu0 0.0
    %2298 = vmatpush1.msra.mxu0 0.0
    %2299 = vmatprep.mubr.f32.mxu0 0.0
    %2300 = vmatmul.mubr.f32.gmra.mrb[0].mxu0 %v2230
    %v2301 = vpop.f32.mrb[0].mxu0
    %v2302 = vadd.f32 0.0, %v2301
    %v2303 = vpop.f32.mrb[0].mxu0
    %v2304 = vadd.f32 0.0, %v2303
    %2305 = vmatprep.mubr.f32.mxu0 0.0
    %2306 = vmatmul.mubr.f32.gmra.mrb[0].mxu0 %v2233
    %v2307 = vpop.f32.mrb[0].mxu0
    %v2308 = vadd.f32 0.0, %v2307
    %v2309 = vpop.f32.mrb[0].mxu0
    %v2310 = vadd.f32 0.0, %v2309
    %2311 = vdwg.mxu0
    %s2312 = scalar_lea.vmem %s5, 768
    %v2313 = vld [vmem:[%s2312] sm:$0xff]
    %v2314 = vld [vmem:[%s2312 + $0x8] sm:$0xff]
    %v2315 = vld [vmem:[%s2312 + $0x10] sm:$0xff]
    %v2316 = vld [vmem:[%s2312 + $0x18] sm:$0xff]
    %v2317 = vld [vmem:[%s2312 + $0x20] sm:$0xff]
    %v2318 = vld [vmem:[%s2312 + $0x28] sm:$0xff]
    %v2319 = vld [vmem:[%s2312 + $0x30] sm:$0xff]
    %v2320 = vld [vmem:[%s2312 + $0x38] sm:$0xff]
    %v2321 = vld [vmem:[%s2312 + $0x40] sm:$0xff]
    %v2322 = vld [vmem:[%s2312 + $0x48] sm:$0xff]
    %v2323 = vld [vmem:[%s2312 + $0x50] sm:$0xff]
    %v2324 = vld [vmem:[%s2312 + $0x58] sm:$0xff]
    %v2325 = vld [vmem:[%s2312 + $0x60] sm:$0xff]
    %v2326 = vld [vmem:[%s2312 + $0x68] sm:$0xff]
    %v2327 = vld [vmem:[%s2312 + $0x70] sm:$0xff]
    %v2328 = vld [vmem:[%s2312 + $0x78] sm:$0xff]
    %v2329 = vld [vmem:[%s2312 + $0x80] sm:$0xff]
    %v2330 = vld [vmem:[%s2312 + $0x88] sm:$0xff]
    %v2331 = vld [vmem:[%s2312 + $0x90] sm:$0xff]
    %v2332 = vld [vmem:[%s2312 + $0x98] sm:$0xff]
    %v2333 = vld [vmem:[%s2312 + $0xa0] sm:$0xff]
    %v2334 = vld [vmem:[%s2312 + $0xa8] sm:$0xff]
    %v2335 = vld [vmem:[%s2312 + $0xb0] sm:$0xff]
    %v2336 = vld [vmem:[%s2312 + $0xb8] sm:$0xff]
    %v2337 = vld [vmem:[%s2312 + $0xc0] sm:$0xff]
    %v2338 = vld [vmem:[%s2312 + $0xc8] sm:$0xff]
    %v2339 = vld [vmem:[%s2312 + $0xd0] sm:$0xff]
    %v2340 = vld [vmem:[%s2312 + $0xd8] sm:$0xff]
    %v2341 = vld [vmem:[%s2312 + $0xe0] sm:$0xff]
    %v2342 = vld [vmem:[%s2312 + $0xe8] sm:$0xff]
    %v2343 = vld [vmem:[%s2312 + $0xf0] sm:$0xff]
    %v2344 = vld [vmem:[%s2312 + $0xf8] sm:$0xff]
    %2345 = vmatprep.subr.mxu0 0.0
    %2346 = vmatpush1.msra.mxu0 %v2313
    %2347 = vmatprep.subr.mxu0 0.0
    %2348 = vmatpush1.msra.mxu0 %v2314
    %2349 = vmatprep.subr.mxu0 0.0
    %2350 = vmatpush1.msra.mxu0 %v2315
    %2351 = vmatprep.subr.mxu0 0.0
    %2352 = vmatpush1.msra.mxu0 %v2316
    %2353 = vmatprep.subr.mxu0 0.0
    %2354 = vmatpush1.msra.mxu0 %v2317
    %2355 = vmatprep.subr.mxu0 0.0
    %2356 = vmatpush1.msra.mxu0 %v2318
    %2357 = vmatprep.subr.mxu0 0.0
    %2358 = vmatpush1.msra.mxu0 %v2319
    %2359 = vmatprep.subr.mxu0 0.0
    %2360 = vmatpush1.msra.mxu0 %v2320
    %2361 = vmatprep.subr.mxu0 0.0
    %2362 = vmatpush1.msra.mxu0 %v2321
    %2363 = vmatprep.subr.mxu0 0.0
    %2364 = vmatpush1.msra.mxu0 %v2322
    %2365 = vmatprep.subr.mxu0 0.0
    %2366 = vmatpush1.msra.mxu0 %v2323
    %2367 = vmatprep.subr.mxu0 0.0
    %2368 = vmatpush1.msra.mxu0 %v2324
    %2369 = vmatprep.subr.mxu0 0.0
    %2370 = vmatpush1.msra.mxu0 %v2325
    %2371 = vmatprep.subr.mxu0 0.0
    %2372 = vmatpush1.msra.mxu0 %v2326
    %2373 = vmatprep.subr.mxu0 0.0
    %2374 = vmatpush1.msra.mxu0 %v2327
    %2375 = vmatprep.subr.mxu0 0.0
    %2376 = vmatpush1.msra.mxu0 %v2328
    %2377 = vmatprep.subr.mxu0 0.0
    %2378 = vmatpush1.msra.mxu0 %v2329
    %2379 = vmatprep.subr.mxu0 0.0
    %2380 = vmatpush1.msra.mxu0 %v2330
    %2381 = vmatprep.subr.mxu0 0.0
    %2382 = vmatpush1.msra.mxu0 %v2331
    %2383 = vmatprep.subr.mxu0 0.0
    %2384 = vmatpush1.msra.mxu0 %v2332
    %2385 = vmatprep.subr.mxu0 0.0
    %2386 = vmatpush1.msra.mxu0 %v2333
    %2387 = vmatprep.subr.mxu0 0.0
    %2388 = vmatpush1.msra.mxu0 %v2334
    %2389 = vmatprep.subr.mxu0 0.0
    %2390 = vmatpush1.msra.mxu0 %v2335
    %2391 = vmatprep.subr.mxu0 0.0
    %2392 = vmatpush1.msra.mxu0 %v2336
    %2393 = vmatprep.subr.mxu0 0.0
    %2394 = vmatpush1.msra.mxu0 %v2337
    %2395 = vmatprep.subr.mxu0 0.0
    %2396 = vmatpush1.msra.mxu0 %v2338
    %2397 = vmatprep.subr.mxu0 0.0
    %2398 = vmatpush1.msra.mxu0 %v2339
    %2399 = vmatprep.subr.mxu0 0.0
    %2400 = vmatpush1.msra.mxu0 %v2340
    %2401 = vmatprep.subr.mxu0 0.0
    %2402 = vmatpush1.msra.mxu0 %v2341
    %2403 = vmatprep.subr.mxu0 0.0
    %2404 = vmatpush1.msra.mxu0 %v2342
    %2405 = vmatprep.subr.mxu0 0.0
    %2406 = vmatpush1.msra.mxu0 %v2343
    %2407 = vmatprep.subr.mxu0 0.0
    %2408 = vmatpush1.msra.mxu0 %v2344
    %2409 = vmatprep.mubr.f32.mxu0 %v2304
    %2410 = vmatmul.mubr.f32.gmra.mrb[0].mxu0 %v2302
    %v2411 = vpop.f32.mrb[0].mxu0
    %v2412 = vadd.f32 0.0, %v2411
    %v2413 = vpop.f32.mrb[0].mxu0
    %2414 = vmatprep.mubr.f32.mxu0 %v2310
    %2415 = vmatmul.mubr.f32.gmra.mrb[0].mxu0 %v2308
    %v2416 = vpop.f32.mrb[0].mxu0
    %v2417 = vadd.f32 0.0, %v2416
    %v2418 = vpop.f32.mrb[0].mxu0
    %2419 = vdwg.mxu0
    %v2420 = vadd.f32 %v2224, %v2412
    %v2421 = vadd.f32 %v2225, %v2417
    %v2422 = vld [vmem:[%s6] sm:$0xff]
    %v2423 = vld [vmem:[%s6 + $0x8] sm:$0xff]
    %v2424 = vld [vmem:[%s6 + $0x10] sm:$0xff]
    %v2425 = vld [vmem:[%s6 + $0x18] sm:$0xff]
    %v2426 = vld [vmem:[%s6 + $0x20] sm:$0xff]
    %v2427 = vld [vmem:[%s6 + $0x28] sm:$0xff]
    %v2428 = vld [vmem:[%s6 + $0x30] sm:$0xff]
    %v2429 = vld [vmem:[%s6 + $0x38] sm:$0xff]
    %v2430 = vld [vmem:[%s6 + $0x40] sm:$0xff]
    %v2431 = vld [vmem:[%s6 + $0x48] sm:$0xff]
    %v2432 = vld [vmem:[%s6 + $0x50] sm:$0xff]
    %v2433 = vld [vmem:[%s6 + $0x58] sm:$0xff]
    %v2434 = vld [vmem:[%s6 + $0x60] sm:$0xff]
    %v2435 = vld [vmem:[%s6 + $0x68] sm:$0xff]
    %v2436 = vld [vmem:[%s6 + $0x70] sm:$0xff]
    %v2437 = vld [vmem:[%s6 + $0x78] sm:$0xff]
    %v2438 = vld [vmem:[#allocation8] sm:$0xff]
    %v2439 = vld [vmem:[#allocation8 + $0x8] sm:$0xff]
    %v2440 = vld [vmem:[%s8] sm:$0x1]
    %v2441 = vld [vmem:[#allocation10] sm:$0x1]
    %v2442 = vadd.f32 %v2420, %v2421
    %v2443 = vrot.slane %v2442, 4
    %v2444 = vadd.f32 %v2442, %v2443
    %v2445 = vrot.slane %v2444, 2
    %v2446 = vadd.f32 %v2444, %v2445
    %v2447 = vrot.slane %v2446, 1
    %v2448 = vadd.f32 %v2446, %v2447
    %v2449 = vmul.f32 %v2420, %v2420
    %v2450 = vmul.f32 %v2421, %v2421
    %v2451 = vadd.f32 %v2449, %v2450
    %v2452 = vrot.slane %v2451, 4
    %v2453 = vadd.f32 %v2451, %v2452
    %v2454 = vrot.slane %v2453, 2
    %v2455 = vadd.f32 %v2453, %v2454
    %v2456 = vrot.slane %v2455, 1
    %v2457 = vadd.f32 %v2455, %v2456
    %2458 = vmatprep.subr.mxu0 0.0
    %2459 = vmatpush1.msra.mxu0 %v2422
    %2460 = vmatprep.subr.mxu0 0.0
    %2461 = vmatpush1.msra.mxu0 %v2423
    %2462 = vmatprep.subr.mxu0 0.0
    %2463 = vmatpush1.msra.mxu0 %v2424
    %2464 = vmatprep.subr.mxu0 0.0
    %2465 = vmatpush1.msra.mxu0 %v2425
    %2466 = vmatprep.subr.mxu0 0.0
    %2467 = vmatpush1.msra.mxu0 %v2426
    %2468 = vmatprep.subr.mxu0 0.0
    %2469 = vmatpush1.msra.mxu0 %v2427
    %2470 = vmatprep.subr.mxu0 0.0
    %2471 = vmatpush1.msra.mxu0 %v2428
    %2472 = vmatprep.subr.mxu0 0.0
    %2473 = vmatpush1.msra.mxu0 %v2429
    %2474 = vmatprep.subr.mxu0 0.0
    %2475 = vmatpush1.msra.mxu0 %v2430
    %2476 = vmatprep.subr.mxu0 0.0
    %2477 = vmatpush1.msra.mxu0 %v2431
    %2478 = vmatprep.subr.mxu0 0.0
    %2479 = vmatpush1.msra.mxu0 %v2432
    %2480 = vmatprep.subr.mxu0 0.0
    %2481 = vmatpush1.msra.mxu0 %v2433
    %2482 = vmatprep.subr.mxu0 0.0
    %2483 = vmatpush1.msra.mxu0 %v2434
    %2484 = vmatprep.subr.mxu0 0.0
    %2485 = vmatpush1.msra.mxu0 %v2435
    %2486 = vmatprep.subr.mxu0 0.0
    %2487 = vmatpush1.msra.mxu0 %v2436
    %2488 = vmatprep.subr.mxu0 0.0
    %2489 = vmatpush1.msra.mxu0 %v2437
    %2490 = vmatprep.subr.mxu0 0.0
    %2491 = vmatpush1.msra.mxu0 0.0
    %2492 = vmatprep.subr.mxu0 0.0
    %2493 = vmatpush1.msra.mxu0 0.0
    %2494 = vmatprep.subr.mxu0 0.0
    %2495 = vmatpush1.msra.mxu0 0.0
    %2496 = vmatprep.subr.mxu0 0.0
    %2497 = vmatpush1.msra.mxu0 0.0
    %2498 = vmatprep.subr.mxu0 0.0
    %2499 = vmatpush1.msra.mxu0 0.0
    %2500 = vmatprep.subr.mxu0 0.0
    %2501 = vmatpush1.msra.mxu0 0.0
    %2502 = vmatprep.subr.mxu0 0.0
    %2503 = vmatpush1.msra.mxu0 0.0
    %2504 = vmatprep.subr.mxu0 0.0
    %2505 = vmatpush1.msra.mxu0 0.0
    %2506 = vmatprep.subr.mxu0 0.0
    %2507 = vmatpush1.msra.mxu0 0.0
    %2508 = vmatprep.subr.mxu0 0.0
    %2509 = vmatpush1.msra.mxu0 0.0
    %2510 = vmatprep.subr.mxu0 0.0
    %2511 = vmatpush1.msra.mxu0 0.0
    %2512 = vmatprep.subr.mxu0 0.0
    %2513 = vmatpush1.msra.mxu0 0.0
    %2514 = vmatprep.subr.mxu0 0.0
    %2515 = vmatpush1.msra.mxu0 0.0
    %2516 = vmatprep.subr.mxu0 0.0
    %2517 = vmatpush1.msra.mxu0 0.0
    %2518 = vmatprep.subr.mxu0 0.0
    %2519 = vmatpush1.msra.mxu0 0.0
    %2520 = vmatprep.subr.mxu0 0.0
    %2521 = vmatpush1.msra.mxu0 0.0
    %2522 = vmatprep.mubr.f32.mxu0 0.0
    %2523 = vmatmul.mubr.f32.gmra.mrb[0].mxu0 %v2448
    %v2524 = vpop.f32.mrb[0].mxu0
    %v2525 = vadd.f32 0.0, %v2524
    %v2526 = vpop.f32.mrb[0].mxu0
    %2527 = vdwg.mxu0
    %v2528 = vmul.f32 %v2525, 0.0078125
    %2529 = vmatprep.subr.mxu0 0.0
    %2530 = vmatpush1.msra.mxu0 %v2422
    %2531 = vmatprep.subr.mxu0 0.0
    %2532 = vmatpush1.msra.mxu0 %v2423
    %2533 = vmatprep.subr.mxu0 0.0
    %2534 = vmatpush1.msra.mxu0 %v2424
    %2535 = vmatprep.subr.mxu0 0.0
    %2536 = vmatpush1.msra.mxu0 %v2425
    %2537 = vmatprep.subr.mxu0 0.0
    %2538 = vmatpush1.msra.mxu0 %v2426
    %2539 = vmatprep.subr.mxu0 0.0
    %2540 = vmatpush1.msra.mxu0 %v2427
    %2541 = vmatprep.subr.mxu0 0.0
    %2542 = vmatpush1.msra.mxu0 %v2428
    %2543 = vmatprep.subr.mxu0 0.0
    %2544 = vmatpush1.msra.mxu0 %v2429
    %2545 = vmatprep.subr.mxu0 0.0
    %2546 = vmatpush1.msra.mxu0 %v2430
    %2547 = vmatprep.subr.mxu0 0.0
    %2548 = vmatpush1.msra.mxu0 %v2431
    %2549 = vmatprep.subr.mxu0 0.0
    %2550 = vmatpush1.msra.mxu0 %v2432
    %2551 = vmatprep.subr.mxu0 0.0
    %2552 = vmatpush1.msra.mxu0 %v2433
    %2553 = vmatprep.subr.mxu0 0.0
    %2554 = vmatpush1.msra.mxu0 %v2434
    %2555 = vmatprep.subr.mxu0 0.0
    %2556 = vmatpush1.msra.mxu0 %v2435
    %2557 = vmatprep.subr.mxu0 0.0
    %2558 = vmatpush1.msra.mxu0 %v2436
    %2559 = vmatprep.subr.mxu0 0.0
    %2560 = vmatpush1.msra.mxu0 %v2437
    %2561 = vmatprep.subr.mxu0 0.0
    %2562 = vmatpush1.msra.mxu0 0.0
    %2563 = vmatprep.subr.mxu0 0.0
    %2564 = vmatpush1.msra.mxu0 0.0
    %2565 = vmatprep.subr.mxu0 0.0
    %2566 = vmatpush1.msra.mxu0 0.0
    %2567 = vmatprep.subr.mxu0 0.0
    %2568 = vmatpush1.msra.mxu0 0.0
    %2569 = vmatprep.subr.mxu0 0.0
    %2570 = vmatpush1.msra.mxu0 0.0
    %2571 = vmatprep.subr.mxu0 0.0
    %2572 = vmatpush1.msra.mxu0 0.0
    %2573 = vmatprep.subr.mxu0 0.0
    %2574 = vmatpush1.msra.mxu0 0.0
    %2575 = vmatprep.subr.mxu0 0.0
    %2576 = vmatpush1.msra.mxu0 0.0
    %2577 = vmatprep.subr.mxu0 0.0
    %2578 = vmatpush1.msra.mxu0 0.0
    %2579 = vmatprep.subr.mxu0 0.0
    %2580 = vmatpush1.msra.mxu0 0.0
    %2581 = vmatprep.subr.mxu0 0.0
    %2582 = vmatpush1.msra.mxu0 0.0
    %2583 = vmatprep.subr.mxu0 0.0
    %2584 = vmatpush1.msra.mxu0 0.0
    %2585 = vmatprep.subr.mxu0 0.0
    %2586 = vmatpush1.msra.mxu0 0.0
    %2587 = vmatprep.subr.mxu0 0.0
    %2588 = vmatpush1.msra.mxu0 0.0
    %2589 = vmatprep.subr.mxu0 0.0
    %2590 = vmatpush1.msra.mxu0 0.0
    %2591 = vmatprep.subr.mxu0 0.0
    %2592 = vmatpush1.msra.mxu0 0.0
    %2593 = vmatprep.mubr.f32.mxu0 0.0
    %2594 = vmatmul.mubr.f32.gmra.mrb[0].mxu0 %v2457
    %v2595 = vpop.f32.mrb[0].mxu0
    %v2596 = vadd.f32 0.0, %v2595
    %v2597 = vpop.f32.mrb[0].mxu0
    %2598 = vdwg.mxu0
    %v2599 = vmul.f32 %v2596, 0.0078125
    %v2600 = vmul.f32 %v2528, %v2528
    %v2601 = vsub.f32 %v2599, %v2600
    %v2602 = vmax.f32 %v2601, 0.0
    %v2603 = vadd.f32 %v2602, 1e-05
    %v2604 = vrsqrt.pop %v2603
    %v2605 = vmul.f32 %v2440, %v2604
    %v2606 = vmul.f32 %v2528, %v2605
    %v2607 = vsub.f32 %v2441, %v2606
    %vm2608 = vcmask 130048
    %v2610 = vsel %vm2608, %v2605, 0
    %2612 = vmatprep.subr.mxu0 0.0
    %2613 = vmatpush1.msra.mxu0 %v2438
    %2614 = vmatprep.subr.mxu0 0.0
    %2615 = vmatpush1.msra.mxu0 %v2439
    %2616 = vmatprep.subr.mxu0 0.0
    %2617 = vmatpush1.msra.mxu0 0.0
    %2618 = vmatprep.subr.mxu0 0.0
    %2619 = vmatpush1.msra.mxu0 0.0
    %2620 = vmatprep.subr.mxu0 0.0
    %2621 = vmatpush1.msra.mxu0 0.0
    %2622 = vmatprep.subr.mxu0 0.0
    %2623 = vmatpush1.msra.mxu0 0.0
    %2624 = vmatprep.subr.mxu0 0.0
    %2625 = vmatpush1.msra.mxu0 0.0
    %2626 = vmatprep.subr.mxu0 0.0
    %2627 = vmatpush1.msra.mxu0 0.0
    %2628 = vmatprep.subr.mxu0 0.0
    %2629 = vmatpush1.msra.mxu0 0.0
    %2630 = vmatprep.subr.mxu0 0.0
    %2631 = vmatpush1.msra.mxu0 0.0
    %2632 = vmatprep.subr.mxu0 0.0
    %2633 = vmatpush1.msra.mxu0 0.0
    %2634 = vmatprep.subr.mxu0 0.0
    %2635 = vmatpush1.msra.mxu0 0.0
    %2636 = vmatprep.subr.mxu0 0.0
    %2637 = vmatpush1.msra.mxu0 0.0
    %2638 = vmatprep.subr.mxu0 0.0
    %2639 = vmatpush1.msra.mxu0 0.0
    %2640 = vmatprep.subr.mxu0 0.0
    %2641 = vmatpush1.msra.mxu0 0.0
    %2642 = vmatprep.subr.mxu0 0.0
    %2643 = vmatpush1.msra.mxu0 0.0
    %2644 = vmatprep.subr.mxu0 0.0
    %2645 = vmatpush1.msra.mxu0 0.0
    %2646 = vmatprep.subr.mxu0 0.0
    %2647 = vmatpush1.msra.mxu0 0.0
    %2648 = vmatprep.subr.mxu0 0.0
    %2649 = vmatpush1.msra.mxu0 0.0
    %2650 = vmatprep.subr.mxu0 0.0
    %2651 = vmatpush1.msra.mxu0 0.0
    %2652 = vmatprep.subr.mxu0 0.0
    %2653 = vmatpush1.msra.mxu0 0.0
    %2654 = vmatprep.subr.mxu0 0.0
    %2655 = vmatpush1.msra.mxu0 0.0
    %2656 = vmatprep.subr.mxu0 0.0
    %2657 = vmatpush1.msra.mxu0 0.0
    %2658 = vmatprep.subr.mxu0 0.0
    %2659 = vmatpush1.msra.mxu0 0.0
    %2660 = vmatprep.subr.mxu0 0.0
    %2661 = vmatpush1.msra.mxu0 0.0
    %2662 = vmatprep.subr.mxu0 0.0
    %2663 = vmatpush1.msra.mxu0 0.0
    %2664 = vmatprep.subr.mxu0 0.0
    %2665 = vmatpush1.msra.mxu0 0.0
    %2666 = vmatprep.subr.mxu0 0.0
    %2667 = vmatpush1.msra.mxu0 0.0
    %2668 = vmatprep.subr.mxu0 0.0
    %2669 = vmatpush1.msra.mxu0 0.0
    %2670 = vmatprep.subr.mxu0 0.0
    %2671 = vmatpush1.msra.mxu0 0.0
    %2672 = vmatprep.subr.mxu0 0.0
    %2673 = vmatpush1.msra.mxu0 0.0
    %2674 = vmatprep.subr.mxu0 0.0
    %2675 = vmatpush1.msra.mxu0 0.0
    %2676 = vmatprep.mubr.f32.mxu0 0.0
    %2677 = vmatmul.mubr.f32.gmra.mrb[0].mxu0 %v2610
    %v2678 = vpop.f32.mrb[0].mxu0
    %v2679 = vadd.f32 0.0, %v2678
    %v2680 = vpop.f32.mrb[0].mxu0
    %2681 = vdwg.mxu0
    %v2683 = vsel %vm2608, %v2607, 0
    %2685 = vmatprep.subr.mxu0 0.0
    %2686 = vmatpush1.msra.mxu0 %v2438
    %2687 = vmatprep.subr.mxu0 0.0
    %2688 = vmatpush1.msra.mxu0 %v2439
    %2689 = vmatprep.subr.mxu0 0.0
    %2690 = vmatpush1.msra.mxu0 0.0
    %2691 = vmatprep.subr.mxu0 0.0
    %2692 = vmatpush1.msra.mxu0 0.0
    %2693 = vmatprep.subr.mxu0 0.0
    %2694 = vmatpush1.msra.mxu0 0.0
    %2695 = vmatprep.subr.mxu0 0.0
    %2696 = vmatpush1.msra.mxu0 0.0
    %2697 = vmatprep.subr.mxu0 0.0
    %2698 = vmatpush1.msra.mxu0 0.0
    %2699 = vmatprep.subr.mxu0 0.0
    %2700 = vmatpush1.msra.mxu0 0.0
    %2701 = vmatprep.subr.mxu0 0.0
    %2702 = vmatpush1.msra.mxu0 0.0
    %2703 = vmatprep.subr.mxu0 0.0
    %2704 = vmatpush1.msra.mxu0 0.0
    %2705 = vmatprep.subr.mxu0 0.0
    %2706 = vmatpush1.msra.mxu0 0.0
    %2707 = vmatprep.subr.mxu0 0.0
    %2708 = vmatpush1.msra.mxu0 0.0
    %2709 = vmatprep.subr.mxu0 0.0
    %2710 = vmatpush1.msra.mxu0 0.0
    %2711 = vmatprep.subr.mxu0 0.0
    %2712 = vmatpush1.msra.mxu0 0.0
    %2713 = vmatprep.subr.mxu0 0.0
    %2714 = vmatpush1.msra.mxu0 0.0
    %2715 = vmatprep.subr.mxu0 0.0
    %2716 = vmatpush1.msra.mxu0 0.0
    %2717 = vmatprep.subr.mxu0 0.0
    %2718 = vmatpush1.msra.mxu0 0.0
    %2719 = vmatprep.subr.mxu0 0.0
    %2720 = vmatpush1.msra.mxu0 0.0
    %2721 = vmatprep.subr.mxu0 0.0
    %2722 = vmatpush1.msra.mxu0 0.0
    %2723 = vmatprep.subr.mxu0 0.0
    %2724 = vmatpush1.msra.mxu0 0.0
    %2725 = vmatprep.subr.mxu0 0.0
    %2726 = vmatpush1.msra.mxu0 0.0
    %2727 = vmatprep.subr.mxu0 0.0
    %2728 = vmatpush1.msra.mxu0 0.0
    %2729 = vmatprep.subr.mxu0 0.0
    %2730 = vmatpush1.msra.mxu0 0.0
    %2731 = vmatprep.subr.mxu0 0.0
    %2732 = vmatpush1.msra.mxu0 0.0
    %2733 = vmatprep.subr.mxu0 0.0
    %2734 = vmatpush1.msra.mxu0 0.0
    %2735 = vmatprep.subr.mxu0 0.0
    %2736 = vmatpush1.msra.mxu0 0.0
    %2737 = vmatprep.subr.mxu0 0.0
    %2738 = vmatpush1.msra.mxu0 0.0
    %2739 = vmatprep.subr.mxu0 0.0
    %2740 = vmatpush1.msra.mxu0 0.0
    %2741 = vmatprep.subr.mxu0 0.0
    %2742 = vmatpush1.msra.mxu0 0.0
    %2743 = vmatprep.subr.mxu0 0.0
    %2744 = vmatpush1.msra.mxu0 0.0
    %2745 = vmatprep.subr.mxu0 0.0
    %2746 = vmatpush1.msra.mxu0 0.0
    %2747 = vmatprep.subr.mxu0 0.0
    %2748 = vmatpush1.msra.mxu0 0.0
    %2749 = vmatprep.mubr.f32.mxu0 0.0
    %2750 = vmatmul.mubr.f32.gmra.mrb[0].mxu0 %v2683
    %v2751 = vpop.f32.mrb[0].mxu0
    %v2752 = vadd.f32 0.0, %v2751
    %v2753 = vpop.f32.mrb[0].mxu0
    %2754 = vdwg.mxu0
    %v2755 = vlaneseq
    %v2756 = vshrl.u32 %v2755, 7
    %v2757 = vsub.s32 0, %v2756
    %v2758 = vrot.slane %v2679, %v2757
    %v2759 = vmul.f32 %v2420, %v2758
    %v2760 = vmul.f32 %v2421, %v2758
    %v2761 = vlaneseq
    %v2762 = vshrl.u32 %v2761, 7
    %v2763 = vsub.s32 0, %v2762
    %v2764 = vrot.slane %v2752, %v2763
    %v2765 = vadd.f32 %v2759, %v2764
    %v2766 = vadd.f32 %v2760, %v2764
    %vm2767 = vcmp.gt.f32.partialorder %v2765, 0.0
    %vm2768 = vcmp.gt.f32.partialorder %v2766, 0.0
    %v2769 = vmul.f32 %v2765, 0.2
    %v2770 = vmul.f32 %v2766, 0.2
    %v2771 = vsel %vm2767, %v2765, %v2769
    %v2772 = vsel %vm2768, %v2766, %v2770
    %v2773 = vld [vmem:[#allocation11] sm:$0xff]
    %v2775 = vsel %vm2608, %v2773, 0
    %2777 = vmatprep.subr.mxu0 0.0
    %2778 = vmatpush1.msra.mxu0 %v2771
    %2779 = vmatprep.subr.mxu0 0.0
    %2780 = vmatpush1.msra.mxu0 %v2772
    %2781 = vmatprep.subr.mxu0 0.0
    %2782 = vmatpush1.msra.mxu0 0.0
    %2783 = vmatprep.subr.mxu0 0.0
    %2784 = vmatpush1.msra.mxu0 0.0
    %2785 = vmatprep.subr.mxu0 0.0
    %2786 = vmatpush1.msra.mxu0 0.0
    %2787 = vmatprep.subr.mxu0 0.0
    %2788 = vmatpush1.msra.mxu0 0.0
    %2789 = vmatprep.subr.mxu0 0.0
    %2790 = vmatpush1.msra.mxu0 0.0
    %2791 = vmatprep.subr.mxu0 0.0
    %2792 = vmatpush1.msra.mxu0 0.0
    %2793 = vmatprep.subr.mxu0 0.0
    %2794 = vmatpush1.msra.mxu0 0.0
    %2795 = vmatprep.subr.mxu0 0.0
    %2796 = vmatpush1.msra.mxu0 0.0
    %2797 = vmatprep.subr.mxu0 0.0
    %2798 = vmatpush1.msra.mxu0 0.0
    %2799 = vmatprep.subr.mxu0 0.0
    %2800 = vmatpush1.msra.mxu0 0.0
    %2801 = vmatprep.subr.mxu0 0.0
    %2802 = vmatpush1.msra.mxu0 0.0
    %2803 = vmatprep.subr.mxu0 0.0
    %2804 = vmatpush1.msra.mxu0 0.0
    %2805 = vmatprep.subr.mxu0 0.0
    %2806 = vmatpush1.msra.mxu0 0.0
    %2807 = vmatprep.subr.mxu0 0.0
    %2808 = vmatpush1.msra.mxu0 0.0
    %2809 = vmatprep.subr.mxu0 0.0
    %2810 = vmatpush1.msra.mxu0 0.0
    %2811 = vmatprep.subr.mxu0 0.0
    %2812 = vmatpush1.msra.mxu0 0.0
    %2813 = vmatprep.subr.mxu0 0.0
    %2814 = vmatpush1.msra.mxu0 0.0
    %2815 = vmatprep.subr.mxu0 0.0
    %2816 = vmatpush1.msra.mxu0 0.0
    %2817 = vmatprep.subr.mxu0 0.0
    %2818 = vmatpush1.msra.mxu0 0.0
    %2819 = vmatprep.subr.mxu0 0.0
    %2820 = vmatpush1.msra.mxu0 0.0
    %2821 = vmatprep.subr.mxu0 0.0
    %2822 = vmatpush1.msra.mxu0 0.0
    %2823 = vmatprep.subr.mxu0 0.0
    %2824 = vmatpush1.msra.mxu0 0.0
    %2825 = vmatprep.subr.mxu0 0.0
    %2826 = vmatpush1.msra.mxu0 0.0
    %2827 = vmatprep.subr.mxu0 0.0
    %2828 = vmatpush1.msra.mxu0 0.0
    %2829 = vmatprep.subr.mxu0 0.0
    %2830 = vmatpush1.msra.mxu0 0.0
    %2831 = vmatprep.subr.mxu0 0.0
    %2832 = vmatpush1.msra.mxu0 0.0
    %2833 = vmatprep.subr.mxu0 0.0
    %2834 = vmatpush1.msra.mxu0 0.0
    %2835 = vmatprep.subr.mxu0 0.0
    %2836 = vmatpush1.msra.mxu0 0.0
    %2837 = vmatprep.subr.mxu0 0.0
    %2838 = vmatpush1.msra.mxu0 0.0
    %2839 = vmatprep.subr.mxu0 0.0
    %2840 = vmatpush1.msra.mxu0 0.0
    %2841 = vmatprep.mubr.f32.mxu0 0.0
    %2842 = vmatmul.mubr.f32.gmra.mrb[0].mxu0 %v2775
    %v2843 = vpop.f32.mrb[0].mxu0
    %v2844 = vadd.f32 0.0, %v2843
    %v2845 = vpop.f32.mrb[0].mxu0
    %2846 = vdwg.mxu0
    %v2847 = vld [vmem:[#allocation13] sm:$0xff]
    %v2848 = vld [vmem:[#allocation13 + $0x8] sm:$0xff]
    %v2849 = vld [vmem:[#allocation13 + $0x10] sm:$0xff]
    %v2850 = vld [vmem:[#allocation13 + $0x18] sm:$0xff]
    %v2851 = vld [vmem:[#allocation13 + $0x20] sm:$0xff]
    %v2852 = vld [vmem:[#allocation13 + $0x28] sm:$0xff]
    %v2853 = vld [vmem:[#allocation13 + $0x30] sm:$0xff]
    %v2854 = vld [vmem:[#allocation13 + $0x38] sm:$0xff]
    %v2855 = vld [vmem:[#allocation13 + $0x40] sm:$0xff]
    %v2856 = vld [vmem:[#allocation13 + $0x48] sm:$0xff]
    %v2857 = vld [vmem:[#allocation13 + $0x50] sm:$0xff]
    %v2858 = vld [vmem:[#allocation13 + $0x58] sm:$0xff]
    %v2859 = vld [vmem:[#allocation13 + $0x60] sm:$0xff]
    %v2860 = vld [vmem:[#allocation13 + $0x68] sm:$0xff]
    %v2861 = vld [vmem:[#allocation13 + $0x70] sm:$0xff]
    %v2862 = vld [vmem:[#allocation13 + $0x78] sm:$0xff]
    %s2863 = scalar_lea.vmem [#allocation11], 8
    %v2864 = vld [vmem:[%s2863] sm:$0xff]
    %v2866 = vsel %vm2608, %v2864, 0
    %2868 = vmatprep.subr.mxu0 0.0
    %2869 = vmatpush1.msra.mxu0 %v2771
    %2870 = vmatprep.subr.mxu0 0.0
    %2871 = vmatpush1.msra.mxu0 %v2772
    %2872 = vmatprep.subr.mxu0 0.0
    %2873 = vmatpush1.msra.mxu0 0.0
    %2874 = vmatprep.subr.mxu0 0.0
    %2875 = vmatpush1.msra.mxu0 0.0
    %2876 = vmatprep.subr.mxu0 0.0
    %2877 = vmatpush1.msra.mxu0 0.0
    %2878 = vmatprep.subr.mxu0 0.0
    %2879 = vmatpush1.msra.mxu0 0.0
    %2880 = vmatprep.subr.mxu0 0.0
    %2881 = vmatpush1.msra.mxu0 0.0
    %2882 = vmatprep.subr.mxu0 0.0
    %2883 = vmatpush1.msra.mxu0 0.0
    %2884 = vmatprep.subr.mxu0 0.0
    %2885 = vmatpush1.msra.mxu0 0.0
    %2886 = vmatprep.subr.mxu0 0.0
    %2887 = vmatpush1.msra.mxu0 0.0
    %2888 = vmatprep.subr.mxu0 0.0
    %2889 = vmatpush1.msra.mxu0 0.0
    %2890 = vmatprep.subr.mxu0 0.0
    %2891 = vmatpush1.msra.mxu0 0.0
    %2892 = vmatprep.subr.mxu0 0.0
    %2893 = vmatpush1.msra.mxu0 0.0
    %2894 = vmatprep.subr.mxu0 0.0
    %2895 = vmatpush1.msra.mxu0 0.0
    %2896 = vmatprep.subr.mxu0 0.0
    %2897 = vmatpush1.msra.mxu0 0.0
    %2898 = vmatprep.subr.mxu0 0.0
    %2899 = vmatpush1.msra.mxu0 0.0
    %2900 = vmatprep.subr.mxu0 0.0
    %2901 = vmatpush1.msra.mxu0 0.0
    %2902 = vmatprep.subr.mxu0 0.0
    %2903 = vmatpush1.msra.mxu0 0.0
    %2904 = vmatprep.subr.mxu0 0.0
    %2905 = vmatpush1.msra.mxu0 0.0
    %2906 = vmatprep.subr.mxu0 0.0
    %2907 = vmatpush1.msra.mxu0 0.0
    %2908 = vmatprep.subr.mxu0 0.0
    %2909 = vmatpush1.msra.mxu0 0.0
    %2910 = vmatprep.subr.mxu0 0.0
    %2911 = vmatpush1.msra.mxu0 0.0
    %2912 = vmatprep.subr.mxu0 0.0
    %2913 = vmatpush1.msra.mxu0 0.0
    %2914 = vmatprep.subr.mxu0 0.0
    %2915 = vmatpush1.msra.mxu0 0.0
    %2916 = vmatprep.subr.mxu0 0.0
    %2917 = vmatpush1.msra.mxu0 0.0
    %2918 = vmatprep.subr.mxu0 0.0
    %2919 = vmatpush1.msra.mxu0 0.0
    %2920 = vmatprep.subr.mxu0 0.0
    %2921 = vmatpush1.msra.mxu0 0.0
    %2922 = vmatprep.subr.mxu0 0.0
    %2923 = vmatpush1.msra.mxu0 0.0
    %2924 = vmatprep.subr.mxu0 0.0
    %2925 = vmatpush1.msra.mxu0 0.0
    %2926 = vmatprep.subr.mxu0 0.0
    %2927 = vmatpush1.msra.mxu0 0.0
    %2928 = vmatprep.subr.mxu0 0.0
    %2929 = vmatpush1.msra.mxu0 0.0
    %2930 = vmatprep.subr.mxu0 0.0
    %2931 = vmatpush1.msra.mxu0 0.0
    %2932 = vmatprep.mubr.f32.mxu0 0.0
    %2933 = vmatmul.mubr.f32.gmra.mrb[0].mxu0 %v2866
    %v2934 = vpop.f32.mrb[0].mxu0
    %v2935 = vadd.f32 0.0, %v2934
    %v2936 = vpop.f32.mrb[0].mxu0
    %2937 = vdwg.mxu0
    %s2938 = scalar_lea.vmem [#allocation13], 128
    %v2939 = vld [vmem:[%s2938] sm:$0xff]
    %v2940 = vld [vmem:[%s2938 + $0x8] sm:$0xff]
    %v2941 = vld [vmem:[%s2938 + $0x10] sm:$0xff]
    %v2942 = vld [vmem:[%s2938 + $0x18] sm:$0xff]
    %v2943 = vld [vmem:[%s2938 + $0x20] sm:$0xff]
    %v2944 = vld [vmem:[%s2938 + $0x28] sm:$0xff]
    %v2945 = vld [vmem:[%s2938 + $0x30] sm:$0xff]
    %v2946 = vld [vmem:[%s2938 + $0x38] sm:$0xff]
    %v2947 = vld [vmem:[%s2938 + $0x40] sm:$0xff]
    %v2948 = vld [vmem:[%s2938 + $0x48] sm:$0xff]
    %v2949 = vld [vmem:[%s2938 + $0x50] sm:$0xff]
    %v2950 = vld [vmem:[%s2938 + $0x58] sm:$0xff]
    %v2951 = vld [vmem:[%s2938 + $0x60] sm:$0xff]
    %v2952 = vld [vmem:[%s2938 + $0x68] sm:$0xff]
    %v2953 = vld [vmem:[%s2938 + $0x70] sm:$0xff]
    %v2954 = vld [vmem:[%s2938 + $0x78] sm:$0xff]
    %2955 = vmatprep.subr.mxu0 0.0
    %2956 = vmatpush1.msra.mxu0 %v2939
    %2957 = vmatprep.subr.mxu0 0.0
    %2958 = vmatpush1.msra.mxu0 %v2940
    %2959 = vmatprep.subr.mxu0 0.0
    %2960 = vmatpush1.msra.mxu0 %v2941
    %2961 = vmatprep.subr.mxu0 0.0
    %2962 = vmatpush1.msra.mxu0 %v2942
    %2963 = vmatprep.subr.mxu0 0.0
    %2964 = vmatpush1.msra.mxu0 %v2943
    %2965 = vmatprep.subr.mxu0 0.0
    %2966 = vmatpush1.msra.mxu0 %v2944
    %2967 = vmatprep.subr.mxu0 0.0
    %2968 = vmatpush1.msra.mxu0 %v2945
    %2969 = vmatprep.subr.mxu0 0.0
    %2970 = vmatpush1.msra.mxu0 %v2946
    %2971 = vmatprep.subr.mxu0 0.0
    %2972 = vmatpush1.msra.mxu0 %v2947
    %2973 = vmatprep.subr.mxu0 0.0
    %2974 = vmatpush1.msra.mxu0 %v2948
    %2975 = vmatprep.subr.mxu0 0.0
    %2976 = vmatpush1.msra.mxu0 %v2949
    %2977 = vmatprep.subr.mxu0 0.0
    %2978 = vmatpush1.msra.mxu0 %v2950
    %2979 = vmatprep.subr.mxu0 0.0
    %2980 = vmatpush1.msra.mxu0 %v2951
    %2981 = vmatprep.subr.mxu0 0.0
    %2982 = vmatpush1.msra.mxu0 %v2952
    %2983 = vmatprep.subr.mxu0 0.0
    %2984 = vmatpush1.msra.mxu0 %v2953
    %2985 = vmatprep.subr.mxu0 0.0
    %2986 = vmatpush1.msra.mxu0 %v2954
    %2987 = vmatprep.subr.mxu0 0.0
    %2988 = vmatpush1.msra.mxu0 0.0
    %2989 = vmatprep.subr.mxu0 0.0
    %2990 = vmatpush1.msra.mxu0 0.0
    %2991 = vmatprep.subr.mxu0 0.0
    %2992 = vmatpush1.msra.mxu0 0.0
    %2993 = vmatprep.subr.mxu0 0.0
    %2994 = vmatpush1.msra.mxu0 0.0
    %2995 = vmatprep.subr.mxu0 0.0
    %2996 = vmatpush1.msra.mxu0 0.0
    %2997 = vmatprep.subr.mxu0 0.0
    %2998 = vmatpush1.msra.mxu0 0.0
    %2999 = vmatprep.subr.mxu0 0.0
    %3000 = vmatpush1.msra.mxu0 0.0
    %3001 = vmatprep.subr.mxu0 0.0
    %3002 = vmatpush1.msra.mxu0 0.0
    %3003 = vmatprep.subr.mxu0 0.0
    %3004 = vmatpush1.msra.mxu0 0.0
    %3005 = vmatprep.subr.mxu0 0.0
    %3006 = vmatpush1.msra.mxu0 0.0
    %3007 = vmatprep.subr.mxu0 0.0
    %3008 = vmatpush1.msra.mxu0 0.0
    %3009 = vmatprep.subr.mxu0 0.0
    %3010 = vmatpush1.msra.mxu0 0.0
    %3011 = vmatprep.subr.mxu0 0.0
    %3012 = vmatpush1.msra.mxu0 0.0
    %3013 = vmatprep.subr.mxu0 0.0
    %3014 = vmatpush1.msra.mxu0 0.0
    %3015 = vmatprep.subr.mxu0 0.0
    %3016 = vmatpush1.msra.mxu0 0.0
    %3017 = vmatprep.subr.mxu0 0.0
    %3018 = vmatpush1.msra.mxu0 0.0
    %3019 = vmatprep.mubr.f32.mxu0 0.0
    %3020 = vmatmul.mubr.f32.gmra.mrb[0].mxu0 %v2935
    %v3021 = vpop.f32.mrb[0].mxu0
    %v3022 = vadd.f32 0.0, %v3021
    %v3023 = vpop.f32.mrb[0].mxu0
    %3024 = vdwg.mxu0
    %3025 = vmatprep.subr.mxu0 0.0
    %3026 = vmatpush1.msra.mxu0 %v2847
    %3027 = vmatprep.subr.mxu0 0.0
    %3028 = vmatpush1.msra.mxu0 %v2848
    %3029 = vmatprep.subr.mxu0 0.0
    %3030 = vmatpush1.msra.mxu0 %v2849
    %3031 = vmatprep.subr.mxu0 0.0
    %3032 = vmatpush1.msra.mxu0 %v2850
    %3033 = vmatprep.subr.mxu0 0.0
    %3034 = vmatpush1.msra.mxu0 %v2851
    %3035 = vmatprep.subr.mxu0 0.0
    %3036 = vmatpush1.msra.mxu0 %v2852
    %3037 = vmatprep.subr.mxu0 0.0
    %3038 = vmatpush1.msra.mxu0 %v2853
    %3039 = vmatprep.subr.mxu0 0.0
    %3040 = vmatpush1.msra.mxu0 %v2854
    %3041 = vmatprep.subr.mxu0 0.0
    %3042 = vmatpush1.msra.mxu0 %v2855
    %3043 = vmatprep.subr.mxu0 0.0
    %3044 = vmatpush1.msra.mxu0 %v2856
    %3045 = vmatprep.subr.mxu0 0.0
    %3046 = vmatpush1.msra.mxu0 %v2857
    %3047 = vmatprep.subr.mxu0 0.0
    %3048 = vmatpush1.msra.mxu0 %v2858
    %3049 = vmatprep.subr.mxu0 0.0
    %3050 = vmatpush1.msra.mxu0 %v2859
    %3051 = vmatprep.subr.mxu0 0.0
    %3052 = vmatpush1.msra.mxu0 %v2860
    %3053 = vmatprep.subr.mxu0 0.0
    %3054 = vmatpush1.msra.mxu0 %v2861
    %3055 = vmatprep.subr.mxu0 0.0
    %3056 = vmatpush1.msra.mxu0 %v2862
    %3057 = vmatprep.subr.mxu0 0.0
    %3058 = vmatpush1.msra.mxu0 0.0
    %3059 = vmatprep.subr.mxu0 0.0
    %3060 = vmatpush1.msra.mxu0 0.0
    %3061 = vmatprep.subr.mxu0 0.0
    %3062 = vmatpush1.msra.mxu0 0.0
    %3063 = vmatprep.subr.mxu0 0.0
    %3064 = vmatpush1.msra.mxu0 0.0
    %3065 = vmatprep.subr.mxu0 0.0
    %3066 = vmatpush1.msra.mxu0 0.0
    %3067 = vmatprep.subr.mxu0 0.0
    %3068 = vmatpush1.msra.mxu0 0.0
    %3069 = vmatprep.subr.mxu0 0.0
    %3070 = vmatpush1.msra.mxu0 0.0
    %3071 = vmatprep.subr.mxu0 0.0
    %3072 = vmatpush1.msra.mxu0 0.0
    %3073 = vmatprep.subr.mxu0 0.0
    %3074 = vmatpush1.msra.mxu0 0.0
    %3075 = vmatprep.subr.mxu0 0.0
    %3076 = vmatpush1.msra.mxu0 0.0
    %3077 = vmatprep.subr.mxu0 0.0
    %3078 = vmatpush1.msra.mxu0 0.0
    %3079 = vmatprep.subr.mxu0 0.0
    %3080 = vmatpush1.msra.mxu0 0.0
    %3081 = vmatprep.subr.mxu0 0.0
    %3082 = vmatpush1.msra.mxu0 0.0
    %3083 = vmatprep.subr.mxu0 0.0
    %3084 = vmatpush1.msra.mxu0 0.0
    %3085 = vmatprep.subr.mxu0 0.0
    %3086 = vmatpush1.msra.mxu0 0.0
    %3087 = vmatprep.subr.mxu0 0.0
    %3088 = vmatpush1.msra.mxu0 0.0
    %3089 = vmatprep.mubr.f32.mxu0 0.0
    %3090 = vmatmul.mubr.f32.gmra.mrb[0].mxu0 %v2844
    %v3091 = vpop.f32.mrb[0].mxu0
    %v3092 = vadd.f32 %v3022, %v3091
    %v3093 = vpop.f32.mrb[0].mxu0
    %3094 = vdwg.mxu0
    %s3095 = scalar_lea.vmem [#allocation11], 16
    %v3096 = vld [vmem:[%s3095] sm:$0xff]
    %v3098 = vsel %vm2608, %v3096, 0
    %3100 = vmatprep.subr.mxu0 0.0
    %3101 = vmatpush1.msra.mxu0 %v2771
    %3102 = vmatprep.subr.mxu0 0.0
    %3103 = vmatpush1.msra.mxu0 %v2772
    %3104 = vmatprep.subr.mxu0 0.0
    %3105 = vmatpush1.msra.mxu0 0.0
    %3106 = vmatprep.subr.mxu0 0.0
    %3107 = vmatpush1.msra.mxu0 0.0
    %3108 = vmatprep.subr.mxu0 0.0
    %3109 = vmatpush1.msra.mxu0 0.0
    %3110 = vmatprep.subr.mxu0 0.0
    %3111 = vmatpush1.msra.mxu0 0.0
    %3112 = vmatprep.subr.mxu0 0.0
    %3113 = vmatpush1.msra.mxu0 0.0
    %3114 = vmatprep.subr.mxu0 0.0
    %3115 = vmatpush1.msra.mxu0 0.0
    %3116 = vmatprep.subr.mxu0 0.0
    %3117 = vmatpush1.msra.mxu0 0.0
    %3118 = vmatprep.subr.mxu0 0.0
    %3119 = vmatpush1.msra.mxu0 0.0
    %3120 = vmatprep.subr.mxu0 0.0
    %3121 = vmatpush1.msra.mxu0 0.0
    %3122 = vmatprep.subr.mxu0 0.0
    %3123 = vmatpush1.msra.mxu0 0.0
    %3124 = vmatprep.subr.mxu0 0.0
    %3125 = vmatpush1.msra.mxu0 0.0
    %3126 = vmatprep.subr.mxu0 0.0
    %3127 = vmatpush1.msra.mxu0 0.0
    %3128 = vmatprep.subr.mxu0 0.0
    %3129 = vmatpush1.msra.mxu0 0.0
    %3130 = vmatprep.subr.mxu0 0.0
    %3131 = vmatpush1.msra.mxu0 0.0
    %3132 = vmatprep.subr.mxu0 0.0
    %3133 = vmatpush1.msra.mxu0 0.0
    %3134 = vmatprep.subr.mxu0 0.0
    %3135 = vmatpush1.msra.mxu0 0.0
    %3136 = vmatprep.subr.mxu0 0.0
    %3137 = vmatpush1.msra.mxu0 0.0
    %3138 = vmatprep.subr.mxu0 0.0
    %3139 = vmatpush1.msra.mxu0 0.0
    %3140 = vmatprep.subr.mxu0 0.0
    %3141 = vmatpush1.msra.mxu0 0.0
    %3142 = vmatprep.subr.mxu0 0.0
    %3143 = vmatpush1.msra.mxu0 0.0
    %3144 = vmatprep.subr.mxu0 0.0
    %3145 = vmatpush1.msra.mxu0 0.0
    %3146 = vmatprep.subr.mxu0 0.0
    %3147 = vmatpush1.msra.mxu0 0.0
    %3148 = vmatprep.subr.mxu0 0.0
    %3149 = vmatpush1.msra.mxu0 0.0
    %3150 = vmatprep.subr.mxu0 0.0
    %3151 = vmatpush1.msra.mxu0 0.0
    %3152 = vmatprep.subr.mxu0 0.0
    %3153 = vmatpush1.msra.mxu0 0.0
    %3154 = vmatprep.subr.mxu0 0.0
    %3155 = vmatpush1.msra.mxu0 0.0
    %3156 = vmatprep.subr.mxu0 0.0
    %3157 = vmatpush1.msra.mxu0 0.0
    %3158 = vmatprep.subr.mxu0 0.0
    %3159 = vmatpush1.msra.mxu0 0.0
    %3160 = vmatprep.subr.mxu0 0.0
    %3161 = vmatpush1.msra.mxu0 0.0
    %3162 = vmatprep.subr.mxu0 0.0
    %3163 = vmatpush1.msra.mxu0 0.0
    %3164 = vmatprep.mubr.f32.mxu0 0.0
    %3165 = vmatmul.mubr.f32.gmra.mrb[0].mxu0 %v3098
    %v3166 = vpop.f32.mrb[0].mxu0
    %v3167 = vadd.f32 0.0, %v3166
    %v3168 = vpop.f32.mrb[0].mxu0
    %3169 = vdwg.mxu0
    %s3170 = scalar_lea.vmem [#allocation13], 256
    %v3171 = vld [vmem:[%s3170] sm:$0xff]
    %v3172 = vld [vmem:[%s3170 + $0x8] sm:$0xff]
    %v3173 = vld [vmem:[%s3170 + $0x10] sm:$0xff]
    %v3174 = vld [vmem:[%s3170 + $0x18] sm:$0xff]
    %v3175 = vld [vmem:[%s3170 + $0x20] sm:$0xff]
    %v3176 = vld [vmem:[%s3170 + $0x28] sm:$0xff]
    %v3177 = vld [vmem:[%s3170 + $0x30] sm:$0xff]
    %v3178 = vld [vmem:[%s3170 + $0x38] sm:$0xff]
    %v3179 = vld [vmem:[%s3170 + $0x40] sm:$0xff]
    %v3180 = vld [vmem:[%s3170 + $0x48] sm:$0xff]
    %v3181 = vld [vmem:[%s3170 + $0x50] sm:$0xff]
    %v3182 = vld [vmem:[%s3170 + $0x58] sm:$0xff]
    %v3183 = vld [vmem:[%s3170 + $0x60] sm:$0xff]
    %v3184 = vld [vmem:[%s3170 + $0x68] sm:$0xff]
    %v3185 = vld [vmem:[%s3170 + $0x70] sm:$0xff]
    %v3186 = vld [vmem:[%s3170 + $0x78] sm:$0xff]
    %3187 = vmatprep.subr.mxu0 0.0
    %3188 = vmatpush1.msra.mxu0 %v3171
    %3189 = vmatprep.subr.mxu0 0.0
    %3190 = vmatpush1.msra.mxu0 %v3172
    %3191 = vmatprep.subr.mxu0 0.0
    %3192 = vmatpush1.msra.mxu0 %v3173
    %3193 = vmatprep.subr.mxu0 0.0
    %3194 = vmatpush1.msra.mxu0 %v3174
    %3195 = vmatprep.subr.mxu0 0.0
    %3196 = vmatpush1.msra.mxu0 %v3175
    %3197 = vmatprep.subr.mxu0 0.0
    %3198 = vmatpush1.msra.mxu0 %v3176
    %3199 = vmatprep.subr.mxu0 0.0
    %3200 = vmatpush1.msra.mxu0 %v3177
    %3201 = vmatprep.subr.mxu0 0.0
    %3202 = vmatpush1.msra.mxu0 %v3178
    %3203 = vmatprep.subr.mxu0 0.0
    %3204 = vmatpush1.msra.mxu0 %v3179
    %3205 = vmatprep.subr.mxu0 0.0
    %3206 = vmatpush1.msra.mxu0 %v3180
    %3207 = vmatprep.subr.mxu0 0.0
    %3208 = vmatpush1.msra.mxu0 %v3181
    %3209 = vmatprep.subr.mxu0 0.0
    %3210 = vmatpush1.msra.mxu0 %v3182
    %3211 = vmatprep.subr.mxu0 0.0
    %3212 = vmatpush1.msra.mxu0 %v3183
    %3213 = vmatprep.subr.mxu0 0.0
    %3214 = vmatpush1.msra.mxu0 %v3184
    %3215 = vmatprep.subr.mxu0 0.0
    %3216 = vmatpush1.msra.mxu0 %v3185
    %3217 = vmatprep.subr.mxu0 0.0
    %3218 = vmatpush1.msra.mxu0 %v3186
    %3219 = vmatprep.subr.mxu0 0.0
    %3220 = vmatpush1.msra.mxu0 0.0
    %3221 = vmatprep.subr.mxu0 0.0
    %3222 = vmatpush1.msra.mxu0 0.0
    %3223 = vmatprep.subr.mxu0 0.0
    %3224 = vmatpush1.msra.mxu0 0.0
    %3225 = vmatprep.subr.mxu0 0.0
    %3226 = vmatpush1.msra.mxu0 0.0
    %3227 = vmatprep.subr.mxu0 0.0
    %3228 = vmatpush1.msra.mxu0 0.0
    %3229 = vmatprep.subr.mxu0 0.0
    %3230 = vmatpush1.msra.mxu0 0.0
    %3231 = vmatprep.subr.mxu0 0.0
    %3232 = vmatpush1.msra.mxu0 0.0
    %3233 = vmatprep.subr.mxu0 0.0
    %3234 = vmatpush1.msra.mxu0 0.0
    %3235 = vmatprep.subr.mxu0 0.0
    %3236 = vmatpush1.msra.mxu0 0.0
    %3237 = vmatprep.subr.mxu0 0.0
    %3238 = vmatpush1.msra.mxu0 0.0
    %3239 = vmatprep.subr.mxu0 0.0
    %3240 = vmatpush1.msra.mxu0 0.0
    %3241 = vmatprep.subr.mxu0 0.0
    %3242 = vmatpush1.msra.mxu0 0.0
    %3243 = vmatprep.subr.mxu0 0.0
    %3244 = vmatpush1.msra.mxu0 0.0
    %3245 = vmatprep.subr.mxu0 0.0
    %3246 = vmatpush1.msra.mxu0 0.0
    %3247 = vmatprep.subr.mxu0 0.0
    %3248 = vmatpush1.msra.mxu0 0.0
    %3249 = vmatprep.subr.mxu0 0.0
    %3250 = vmatpush1.msra.mxu0 0.0
    %3251 = vmatprep.mubr.f32.mxu0 0.0
    %3252 = vmatmul.mubr.f32.gmra.mrb[0].mxu0 %v3167
    %v3253 = vpop.f32.mrb[0].mxu0
    %v3254 = vadd.f32 0.0, %v3253
    %v3255 = vpop.f32.mrb[0].mxu0
    %3256 = vdwg.mxu0
    %v3257 = vadd.f32 %v3092, %v3254
    %s3258 = scalar_lea.vmem [#allocation11], 24
    %v3259 = vld [vmem:[%s3258] sm:$0xff]
    %v3261 = vsel %vm2608, %v3259, 0
    %3263 = vmatprep.subr.mxu0 0.0
    %3264 = vmatpush1.msra.mxu0 %v2771
    %3265 = vmatprep.subr.mxu0 0.0
    %3266 = vmatpush1.msra.mxu0 %v2772
    %3267 = vmatprep.subr.mxu0 0.0
    %3268 = vmatpush1.msra.mxu0 0.0
    %3269 = vmatprep.subr.mxu0 0.0
    %3270 = vmatpush1.msra.mxu0 0.0
    %3271 = vmatprep.subr.mxu0 0.0
    %3272 = vmatpush1.msra.mxu0 0.0
    %3273 = vmatprep.subr.mxu0 0.0
    %3274 = vmatpush1.msra.mxu0 0.0
    %3275 = vmatprep.subr.mxu0 0.0
    %3276 = vmatpush1.msra.mxu0 0.0
    %3277 = vmatprep.subr.mxu0 0.0
    %3278 = vmatpush1.msra.mxu0 0.0
    %3279 = vmatprep.subr.mxu0 0.0
    %3280 = vmatpush1.msra.mxu0 0.0
    %3281 = vmatprep.subr.mxu0 0.0
    %3282 = vmatpush1.msra.mxu0 0.0
    %3283 = vmatprep.subr.mxu0 0.0
    %3284 = vmatpush1.msra.mxu0 0.0
    %3285 = vmatprep.subr.mxu0 0.0
    %3286 = vmatpush1.msra.mxu0 0.0
    %3287 = vmatprep.subr.mxu0 0.0
    %3288 = vmatpush1.msra.mxu0 0.0
    %3289 = vmatprep.subr.mxu0 0.0
    %3290 = vmatpush1.msra.mxu0 0.0
    %3291 = vmatprep.subr.mxu0 0.0
    %3292 = vmatpush1.msra.mxu0 0.0
    %3293 = vmatprep.subr.mxu0 0.0
    %3294 = vmatpush1.msra.mxu0 0.0
    %3295 = vmatprep.subr.mxu0 0.0
    %3296 = vmatpush1.msra.mxu0 0.0
    %3297 = vmatprep.subr.mxu0 0.0
    %3298 = vmatpush1.msra.mxu0 0.0
    %3299 = vmatprep.subr.mxu0 0.0
    %3300 = vmatpush1.msra.mxu0 0.0
    %3301 = vmatprep.subr.mxu0 0.0
    %3302 = vmatpush1.msra.mxu0 0.0
    %3303 = vmatprep.subr.mxu0 0.0
    %3304 = vmatpush1.msra.mxu0 0.0
    %3305 = vmatprep.subr.mxu0 0.0
    %3306 = vmatpush1.msra.mxu0 0.0
    %3307 = vmatprep.subr.mxu0 0.0
    %3308 = vmatpush1.msra.mxu0 0.0
    %3309 = vmatprep.subr.mxu0 0.0
    %3310 = vmatpush1.msra.mxu0 0.0
    %3311 = vmatprep.subr.mxu0 0.0
    %3312 = vmatpush1.msra.mxu0 0.0
    %3313 = vmatprep.subr.mxu0 0.0
    %3314 = vmatpush1.msra.mxu0 0.0
    %3315 = vmatprep.subr.mxu0 0.0
    %3316 = vmatpush1.msra.mxu0 0.0
    %3317 = vmatprep.subr.mxu0 0.0
    %3318 = vmatpush1.msra.mxu0 0.0
    %3319 = vmatprep.subr.mxu0 0.0
    %3320 = vmatpush1.msra.mxu0 0.0
    %3321 = vmatprep.subr.mxu0 0.0
    %3322 = vmatpush1.msra.mxu0 0.0
    %3323 = vmatprep.subr.mxu0 0.0
    %3324 = vmatpush1.msra.mxu0 0.0
    %3325 = vmatprep.subr.mxu0 0.0
    %3326 = vmatpush1.msra.mxu0 0.0
    %3327 = vmatprep.mubr.f32.mxu0 0.0
    %3328 = vmatmul.mubr.f32.gmra.mrb[0].mxu0 %v3261
    %v3329 = vpop.f32.mrb[0].mxu0
    %v3330 = vadd.f32 0.0, %v3329
    %v3331 = vpop.f32.mrb[0].mxu0
    %3332 = vdwg.mxu0
    %s3333 = scalar_lea.vmem [#allocation13], 384
    %v3334 = vld [vmem:[%s3333] sm:$0xff]
    %v3335 = vld [vmem:[%s3333 + $0x8] sm:$0xff]
    %v3336 = vld [vmem:[%s3333 + $0x10] sm:$0xff]
    %v3337 = vld [vmem:[%s3333 + $0x18] sm:$0xff]
    %v3338 = vld [vmem:[%s3333 + $0x20] sm:$0xff]
    %v3339 = vld [vmem:[%s3333 + $0x28] sm:$0xff]
    %v3340 = vld [vmem:[%s3333 + $0x30] sm:$0xff]
    %v3341 = vld [vmem:[%s3333 + $0x38] sm:$0xff]
    %v3342 = vld [vmem:[%s3333 + $0x40] sm:$0xff]
    %v3343 = vld [vmem:[%s3333 + $0x48] sm:$0xff]
    %v3344 = vld [vmem:[%s3333 + $0x50] sm:$0xff]
    %v3345 = vld [vmem:[%s3333 + $0x58] sm:$0xff]
    %v3346 = vld [vmem:[%s3333 + $0x60] sm:$0xff]
    %v3347 = vld [vmem:[%s3333 + $0x68] sm:$0xff]
    %v3348 = vld [vmem:[%s3333 + $0x70] sm:$0xff]
    %v3349 = vld [vmem:[%s3333 + $0x78] sm:$0xff]
    %3350 = vmatprep.subr.mxu0 0.0
    %3351 = vmatpush1.msra.mxu0 %v3334
    %3352 = vmatprep.subr.mxu0 0.0
    %3353 = vmatpush1.msra.mxu0 %v3335
    %3354 = vmatprep.subr.mxu0 0.0
    %3355 = vmatpush1.msra.mxu0 %v3336
    %3356 = vmatprep.subr.mxu0 0.0
    %3357 = vmatpush1.msra.mxu0 %v3337
    %3358 = vmatprep.subr.mxu0 0.0
    %3359 = vmatpush1.msra.mxu0 %v3338
    %3360 = vmatprep.subr.mxu0 0.0
    %3361 = vmatpush1.msra.mxu0 %v3339
    %3362 = vmatprep.subr.mxu0 0.0
    %3363 = vmatpush1.msra.mxu0 %v3340
    %3364 = vmatprep.subr.mxu0 0.0
    %3365 = vmatpush1.msra.mxu0 %v3341
    %3366 = vmatprep.subr.mxu0 0.0
    %3367 = vmatpush1.msra.mxu0 %v3342
    %3368 = vmatprep.subr.mxu0 0.0
    %3369 = vmatpush1.msra.mxu0 %v3343
    %3370 = vmatprep.subr.mxu0 0.0
    %3371 = vmatpush1.msra.mxu0 %v3344
    %3372 = vmatprep.subr.mxu0 0.0
    %3373 = vmatpush1.msra.mxu0 %v3345
    %3374 = vmatprep.subr.mxu0 0.0
    %3375 = vmatpush1.msra.mxu0 %v3346
    %3376 = vmatprep.subr.mxu0 0.0
    %3377 = vmatpush1.msra.mxu0 %v3347
    %3378 = vmatprep.subr.mxu0 0.0
    %3379 = vmatpush1.msra.mxu0 %v3348
    %3380 = vmatprep.subr.mxu0 0.0
    %3381 = vmatpush1.msra.mxu0 %v3349
    %3382 = vmatprep.subr.mxu0 0.0
    %3383 = vmatpush1.msra.mxu0 0.0
    %3384 = vmatprep.subr.mxu0 0.0
    %3385 = vmatpush1.msra.mxu0 0.0
    %3386 = vmatprep.subr.mxu0 0.0
    %3387 = vmatpush1.msra.mxu0 0.0
    %3388 = vmatprep.subr.mxu0 0.0
    %3389 = vmatpush1.msra.mxu0 0.0
    %3390 = vmatprep.subr.mxu0 0.0
    %3391 = vmatpush1.msra.mxu0 0.0
    %3392 = vmatprep.subr.mxu0 0.0
    %3393 = vmatpush1.msra.mxu0 0.0
    %3394 = vmatprep.subr.mxu0 0.0
    %3395 = vmatpush1.msra.mxu0 0.0
    %3396 = vmatprep.subr.mxu0 0.0
    %3397 = vmatpush1.msra.mxu0 0.0
    %3398 = vmatprep.subr.mxu0 0.0
    %3399 = vmatpush1.msra.mxu0 0.0
    %3400 = vmatprep.subr.mxu0 0.0
    %3401 = vmatpush1.msra.mxu0 0.0
    %3402 = vmatprep.subr.mxu0 0.0
    %3403 = vmatpush1.msra.mxu0 0.0
    %3404 = vmatprep.subr.mxu0 0.0
    %3405 = vmatpush1.msra.mxu0 0.0
    %3406 = vmatprep.subr.mxu0 0.0
    %3407 = vmatpush1.msra.mxu0 0.0
    %3408 = vmatprep.subr.mxu0 0.0
    %3409 = vmatpush1.msra.mxu0 0.0
    %3410 = vmatprep.subr.mxu0 0.0
    %3411 = vmatpush1.msra.mxu0 0.0
    %3412 = vmatprep.subr.mxu0 0.0
    %3413 = vmatpush1.msra.mxu0 0.0
    %3414 = vmatprep.mubr.f32.mxu0 0.0
    %3415 = vmatmul.mubr.f32.gmra.mrb[0].mxu0 %v3330
    %v3416 = vpop.f32.mrb[0].mxu0
    %v3417 = vadd.f32 0.0, %v3416
    %v3418 = vpop.f32.mrb[0].mxu0
    %3419 = vdwg.mxu0
    %v3420 = vadd.f32 %v3257, %v3417
    %v3421 = vld [vmem:[%s12] sm:$0xff]
    %v3422 = vld [vmem:[%s12 + $0x8] sm:$0xff]
    %v3423 = vld [vmem:[%s12 + $0x10] sm:$0xff]
    %v3424 = vld [vmem:[%s12 + $0x18] sm:$0xff]
    %v3425 = vld [vmem:[%s12 + $0x20] sm:$0xff]
    %v3426 = vld [vmem:[%s12 + $0x28] sm:$0xff]
    %v3427 = vld [vmem:[%s12 + $0x30] sm:$0xff]
    %v3428 = vld [vmem:[%s12 + $0x38] sm:$0xff]
    %v3429 = vld [vmem:[%s12 + $0x40] sm:$0xff]
    %v3430 = vld [vmem:[%s12 + $0x48] sm:$0xff]
    %v3431 = vld [vmem:[%s12 + $0x50] sm:$0xff]
    %v3432 = vld [vmem:[%s12 + $0x58] sm:$0xff]
    %v3433 = vld [vmem:[%s12 + $0x60] sm:$0xff]
    %v3434 = vld [vmem:[%s12 + $0x68] sm:$0xff]
    %v3435 = vld [vmem:[%s12 + $0x70] sm:$0xff]
    %v3436 = vld [vmem:[%s12 + $0x78] sm:$0xff]
    %v3437 = vld [vmem:[#allocation14] sm:$0xff]
    %v3438 = vld [vmem:[#allocation14 + $0x8] sm:$0xff]
    %v3439 = vld [vmem:[#allocation14 + $0x10] sm:$0xff]
    %v3440 = vld [vmem:[#allocation14 + $0x18] sm:$0xff]
    %v3441 = vld [vmem:[#allocation16] sm:$0x1]
    %v3442 = vld [vmem:[#allocation17] sm:$0x1]
    %v3443 = vrot.slane %v3420, 4
    %v3444 = vadd.f32 %v3420, %v3443
    %v3445 = vrot.slane %v3444, 2
    %v3446 = vadd.f32 %v3444, %v3445
    %v3447 = vrot.slane %v3446, 1
    %v3448 = vadd.f32 %v3446, %v3447
    %v3449 = vmul.f32 %v3420, %v3420
    %v3450 = vrot.slane %v3449, 4
    %v3451 = vadd.f32 %v3449, %v3450
    %v3452 = vrot.slane %v3451, 2
    %v3453 = vadd.f32 %v3451, %v3452
    %v3454 = vrot.slane %v3453, 1
    %v3455 = vadd.f32 %v3453, %v3454
    %3456 = vmatprep.subr.mxu0 0.0
    %3457 = vmatpush1.msra.mxu0 %v3421
    %3458 = vmatprep.subr.mxu0 0.0
    %3459 = vmatpush1.msra.mxu0 %v3422
    %3460 = vmatprep.subr.mxu0 0.0
    %3461 = vmatpush1.msra.mxu0 %v3423
    %3462 = vmatprep.subr.mxu0 0.0
    %3463 = vmatpush1.msra.mxu0 %v3424
    %3464 = vmatprep.subr.mxu0 0.0
    %3465 = vmatpush1.msra.mxu0 %v3425
    %3466 = vmatprep.subr.mxu0 0.0
    %3467 = vmatpush1.msra.mxu0 %v3426
    %3468 = vmatprep.subr.mxu0 0.0
    %3469 = vmatpush1.msra.mxu0 %v3427
    %3470 = vmatprep.subr.mxu0 0.0
    %3471 = vmatpush1.msra.mxu0 %v3428
    %3472 = vmatprep.subr.mxu0 0.0
    %3473 = vmatpush1.msra.mxu0 %v3429
    %3474 = vmatprep.subr.mxu0 0.0
    %3475 = vmatpush1.msra.mxu0 %v3430
    %3476 = vmatprep.subr.mxu0 0.0
    %3477 = vmatpush1.msra.mxu0 %v3431
    %3478 = vmatprep.subr.mxu0 0.0
    %3479 = vmatpush1.msra.mxu0 %v3432
    %3480 = vmatprep.subr.mxu0 0.0
    %3481 = vmatpush1.msra.mxu0 %v3433
    %3482 = vmatprep.subr.mxu0 0.0
    %3483 = vmatpush1.msra.mxu0 %v3434
    %3484 = vmatprep.subr.mxu0 0.0
    %3485 = vmatpush1.msra.mxu0 %v3435
    %3486 = vmatprep.subr.mxu0 0.0
    %3487 = vmatpush1.msra.mxu0 %v3436
    %3488 = vmatprep.subr.mxu0 0.0
    %3489 = vmatpush1.msra.mxu0 0.0
    %3490 = vmatprep.subr.mxu0 0.0
    %3491 = vmatpush1.msra.mxu0 0.0
    %3492 = vmatprep.subr.mxu0 0.0
    %3493 = vmatpush1.msra.mxu0 0.0
    %3494 = vmatprep.subr.mxu0 0.0
    %3495 = vmatpush1.msra.mxu0 0.0
    %3496 = vmatprep.subr.mxu0 0.0
    %3497 = vmatpush1.msra.mxu0 0.0
    %3498 = vmatprep.subr.mxu0 0.0
    %3499 = vmatpush1.msra.mxu0 0.0
    %3500 = vmatprep.subr.mxu0 0.0
    %3501 = vmatpush1.msra.mxu0 0.0
    %3502 = vmatprep.subr.mxu0 0.0
    %3503 = vmatpush1.msra.mxu0 0.0
    %3504 = vmatprep.subr.mxu0 0.0
    %3505 = vmatpush1.msra.mxu0 0.0
    %3506 = vmatprep.subr.mxu0 0.0
    %3507 = vmatpush1.msra.mxu0 0.0
    %3508 = vmatprep.subr.mxu0 0.0
    %3509 = vmatpush1.msra.mxu0 0.0
    %3510 = vmatprep.subr.mxu0 0.0
    %3511 = vmatpush1.msra.mxu0 0.0
    %3512 = vmatprep.subr.mxu0 0.0
    %3513 = vmatpush1.msra.mxu0 0.0
    %3514 = vmatprep.subr.mxu0 0.0
    %3515 = vmatpush1.msra.mxu0 0.0
    %3516 = vmatprep.subr.mxu0 0.0
    %3517 = vmatpush1.msra.mxu0 0.0
    %3518 = vmatprep.subr.mxu0 0.0
    %3519 = vmatpush1.msra.mxu0 0.0
    %3520 = vmatprep.mubr.f32.mxu0 0.0
    %3521 = vmatmul.mubr.f32.gmra.mrb[0].mxu0 %v3448
    %v3522 = vpop.f32.mrb[0].mxu0
    %v3523 = vadd.f32 0.0, %v3522
    %v3524 = vpop.f32.mrb[0].mxu0
    %3525 = vdwg.mxu0
    %v3526 = vmul.f32 %v3523, 0.03125
    %3527 = vmatprep.subr.mxu0 0.0
    %3528 = vmatpush1.msra.mxu0 %v3421
    %3529 = vmatprep.subr.mxu0 0.0
    %3530 = vmatpush1.msra.mxu0 %v3422
    %3531 = vmatprep.subr.mxu0 0.0
    %3532 = vmatpush1.msra.mxu0 %v3423
    %3533 = vmatprep.subr.mxu0 0.0
    %3534 = vmatpush1.msra.mxu0 %v3424
    %3535 = vmatprep.subr.mxu0 0.0
    %3536 = vmatpush1.msra.mxu0 %v3425
    %3537 = vmatprep.subr.mxu0 0.0
    %3538 = vmatpush1.msra.mxu0 %v3426
    %3539 = vmatprep.subr.mxu0 0.0
    %3540 = vmatpush1.msra.mxu0 %v3427
    %3541 = vmatprep.subr.mxu0 0.0
    %3542 = vmatpush1.msra.mxu0 %v3428
    %3543 = vmatprep.subr.mxu0 0.0
    %3544 = vmatpush1.msra.mxu0 %v3429
    %3545 = vmatprep.subr.mxu0 0.0
    %3546 = vmatpush1.msra.mxu0 %v3430
    %3547 = vmatprep.subr.mxu0 0.0
    %3548 = vmatpush1.msra.mxu0 %v3431
    %3549 = vmatprep.subr.mxu0 0.0
    %3550 = vmatpush1.msra.mxu0 %v3432
    %3551 = vmatprep.subr.mxu0 0.0
    %3552 = vmatpush1.msra.mxu0 %v3433
    %3553 = vmatprep.subr.mxu0 0.0
    %3554 = vmatpush1.msra.mxu0 %v3434
    %3555 = vmatprep.subr.mxu0 0.0
    %3556 = vmatpush1.msra.mxu0 %v3435
    %3557 = vmatprep.subr.mxu0 0.0
    %3558 = vmatpush1.msra.mxu0 %v3436
    %3559 = vmatprep.subr.mxu0 0.0
    %3560 = vmatpush1.msra.mxu0 0.0
    %3561 = vmatprep.subr.mxu0 0.0
    %3562 = vmatpush1.msra.mxu0 0.0
    %3563 = vmatprep.subr.mxu0 0.0
    %3564 = vmatpush1.msra.mxu0 0.0
    %3565 = vmatprep.subr.mxu0 0.0
    %3566 = vmatpush1.msra.mxu0 0.0
    %3567 = vmatprep.subr.mxu0 0.0
    %3568 = vmatpush1.msra.mxu0 0.0
    %3569 = vmatprep.subr.mxu0 0.0
    %3570 = vmatpush1.msra.mxu0 0.0
    %3571 = vmatprep.subr.mxu0 0.0
    %3572 = vmatpush1.msra.mxu0 0.0
    %3573 = vmatprep.subr.mxu0 0.0
    %3574 = vmatpush1.msra.mxu0 0.0
    %3575 = vmatprep.subr.mxu0 0.0
    %3576 = vmatpush1.msra.mxu0 0.0
    %3577 = vmatprep.subr.mxu0 0.0
    %3578 = vmatpush1.msra.mxu0 0.0
    %3579 = vmatprep.subr.mxu0 0.0
    %3580 = vmatpush1.msra.mxu0 0.0
    %3581 = vmatprep.subr.mxu0 0.0
    %3582 = vmatpush1.msra.mxu0 0.0
    %3583 = vmatprep.subr.mxu0 0.0
    %3584 = vmatpush1.msra.mxu0 0.0
    %3585 = vmatprep.subr.mxu0 0.0
    %3586 = vmatpush1.msra.mxu0 0.0
    %3587 = vmatprep.subr.mxu0 0.0
    %3588 = vmatpush1.msra.mxu0 0.0
    %3589 = vmatprep.subr.mxu0 0.0
    %3590 = vmatpush1.msra.mxu0 0.0
    %3591 = vmatprep.mubr.f32.mxu0 0.0
    %3592 = vmatmul.mubr.f32.gmra.mrb[0].mxu0 %v3455
    %v3593 = vpop.f32.mrb[0].mxu0
    %v3594 = vadd.f32 0.0, %v3593
    %v3595 = vpop.f32.mrb[0].mxu0
    %3596 = vdwg.mxu0
    %v3597 = vmul.f32 %v3594, 0.03125
    %v3598 = vmul.f32 %v3526, %v3526
    %v3599 = vsub.f32 %v3597, %v3598
    %v3600 = vmax.f32 %v3599, 0.0
    %v3601 = vadd.f32 %v3600, 1e-05
    %v3602 = vrsqrt.pop %v3601
    %v3603 = vmul.f32 %v3441, %v3602
    %v3604 = vmul.f32 %v3526, %v3603
    %v3605 = vsub.f32 %v3442, %v3604
    %vm3606 = vcmask 261120
    %v3608 = vsel %vm3606, %v3603, 0
    %3610 = vmatprep.subr.mxu0 0.0
    %3611 = vmatpush1.msra.mxu0 %v3437
    %3612 = vmatprep.subr.mxu0 0.0
    %3613 = vmatpush1.msra.mxu0 %v3438
    %3614 = vmatprep.subr.mxu0 0.0
    %3615 = vmatpush1.msra.mxu0 %v3439
    %3616 = vmatprep.subr.mxu0 0.0
    %3617 = vmatpush1.msra.mxu0 %v3440
    %3618 = vmatprep.subr.mxu0 0.0
    %3619 = vmatpush1.msra.mxu0 0.0
    %3620 = vmatprep.subr.mxu0 0.0
    %3621 = vmatpush1.msra.mxu0 0.0
    %3622 = vmatprep.subr.mxu0 0.0
    %3623 = vmatpush1.msra.mxu0 0.0
    %3624 = vmatprep.subr.mxu0 0.0
    %3625 = vmatpush1.msra.mxu0 0.0
    %3626 = vmatprep.subr.mxu0 0.0
    %3627 = vmatpush1.msra.mxu0 0.0
    %3628 = vmatprep.subr.mxu0 0.0
    %3629 = vmatpush1.msra.mxu0 0.0
    %3630 = vmatprep.subr.mxu0 0.0
    %3631 = vmatpush1.msra.mxu0 0.0
    %3632 = vmatprep.subr.mxu0 0.0
    %3633 = vmatpush1.msra.mxu0 0.0
    %3634 = vmatprep.subr.mxu0 0.0
    %3635 = vmatpush1.msra.mxu0 0.0
    %3636 = vmatprep.subr.mxu0 0.0
    %3637 = vmatpush1.msra.mxu0 0.0
    %3638 = vmatprep.subr.mxu0 0.0
    %3639 = vmatpush1.msra.mxu0 0.0
    %3640 = vmatprep.subr.mxu0 0.0
    %3641 = vmatpush1.msra.mxu0 0.0
    %3642 = vmatprep.subr.mxu0 0.0
    %3643 = vmatpush1.msra.mxu0 0.0
    %3644 = vmatprep.subr.mxu0 0.0
    %3645 = vmatpush1.msra.mxu0 0.0
    %3646 = vmatprep.subr.mxu0 0.0
    %3647 = vmatpush1.msra.mxu0 0.0
    %3648 = vmatprep.subr.mxu0 0.0
    %3649 = vmatpush1.msra.mxu0 0.0
    %3650 = vmatprep.subr.mxu0 0.0
    %3651 = vmatpush1.msra.mxu0 0.0
    %3652 = vmatprep.subr.mxu0 0.0
    %3653 = vmatpush1.msra.mxu0 0.0
    %3654 = vmatprep.subr.mxu0 0.0
    %3655 = vmatpush1.msra.mxu0 0.0
    %3656 = vmatprep.subr.mxu0 0.0
    %3657 = vmatpush1.msra.mxu0 0.0
    %3658 = vmatprep.subr.mxu0 0.0
    %3659 = vmatpush1.msra.mxu0 0.0
    %3660 = vmatprep.subr.mxu0 0.0
    %3661 = vmatpush1.msra.mxu0 0.0
    %3662 = vmatprep.subr.mxu0 0.0
    %3663 = vmatpush1.msra.mxu0 0.0
    %3664 = vmatprep.subr.mxu0 0.0
    %3665 = vmatpush1.msra.mxu0 0.0
    %3666 = vmatprep.subr.mxu0 0.0
    %3667 = vmatpush1.msra.mxu0 0.0
    %3668 = vmatprep.subr.mxu0 0.0
    %3669 = vmatpush1.msra.mxu0 0.0
    %3670 = vmatprep.subr.mxu0 0.0
    %3671 = vmatpush1.msra.mxu0 0.0
    %3672 = vmatprep.subr.mxu0 0.0
    %3673 = vmatpush1.msra.mxu0 0.0
    %3674 = vmatprep.mubr.f32.mxu0 0.0
    %3675 = vmatmul.mubr.f32.gmra.mrb[0].mxu0 %v3608
    %v3676 = vpop.f32.mrb[0].mxu0
    %v3677 = vadd.f32 0.0, %v3676
    %v3678 = vpop.f32.mrb[0].mxu0
    %3679 = vdwg.mxu0
    %v3681 = vsel %vm3606, %v3605, 0
    %3683 = vmatprep.subr.mxu0 0.0
    %3684 = vmatpush1.msra.mxu0 %v3437
    %3685 = vmatprep.subr.mxu0 0.0
    %3686 = vmatpush1.msra.mxu0 %v3438
    %3687 = vmatprep.subr.mxu0 0.0
    %3688 = vmatpush1.msra.mxu0 %v3439
    %3689 = vmatprep.subr.mxu0 0.0
    %3690 = vmatpush1.msra.mxu0 %v3440
    %3691 = vmatprep.subr.mxu0 0.0
    %3692 = vmatpush1.msra.mxu0 0.0
    %3693 = vmatprep.subr.mxu0 0.0
    %3694 = vmatpush1.msra.mxu0 0.0
    %3695 = vmatprep.subr.mxu0 0.0
    %3696 = vmatpush1.msra.mxu0 0.0
    %3697 = vmatprep.subr.mxu0 0.0
    %3698 = vmatpush1.msra.mxu0 0.0
    %3699 = vmatprep.subr.mxu0 0.0
    %3700 = vmatpush1.msra.mxu0 0.0
    %3701 = vmatprep.subr.mxu0 0.0
    %3702 = vmatpush1.msra.mxu0 0.0
    %3703 = vmatprep.subr.mxu0 0.0
    %3704 = vmatpush1.msra.mxu0 0.0
    %3705 = vmatprep.subr.mxu0 0.0
    %3706 = vmatpush1.msra.mxu0 0.0
    %3707 = vmatprep.subr.mxu0 0.0
    %3708 = vmatpush1.msra.mxu0 0.0
    %3709 = vmatprep.subr.mxu0 0.0
    %3710 = vmatpush1.msra.mxu0 0.0
    %3711 = vmatprep.subr.mxu0 0.0
    %3712 = vmatpush1.msra.mxu0 0.0
    %3713 = vmatprep.subr.mxu0 0.0
    %3714 = vmatpush1.msra.mxu0 0.0
    %3715 = vmatprep.subr.mxu0 0.0
    %3716 = vmatpush1.msra.mxu0 0.0
    %3717 = vmatprep.subr.mxu0 0.0
    %3718 = vmatpush1.msra.mxu0 0.0
    %3719 = vmatprep.subr.mxu0 0.0
    %3720 = vmatpush1.msra.mxu0 0.0
    %3721 = vmatprep.subr.mxu0 0.0
    %3722 = vmatpush1.msra.mxu0 0.0
    %3723 = vmatprep.subr.mxu0 0.0
    %3724 = vmatpush1.msra.mxu0 0.0
    %3725 = vmatprep.subr.mxu0 0.0
    %3726 = vmatpush1.msra.mxu0 0.0
    %3727 = vmatprep.subr.mxu0 0.0
    %3728 = vmatpush1.msra.mxu0 0.0
    %3729 = vmatprep.subr.mxu0 0.0
    %3730 = vmatpush1.msra.mxu0 0.0
    %3731 = vmatprep.subr.mxu0 0.0
    %3732 = vmatpush1.msra.mxu0 0.0
    %3733 = vmatprep.subr.mxu0 0.0
    %3734 = vmatpush1.msra.mxu0 0.0
    %3735 = vmatprep.subr.mxu0 0.0
    %3736 = vmatpush1.msra.mxu0 0.0
    %3737 = vmatprep.subr.mxu0 0.0
    %3738 = vmatpush1.msra.mxu0 0.0
    %3739 = vmatprep.subr.mxu0 0.0
    %3740 = vmatpush1.msra.mxu0 0.0
    %3741 = vmatprep.subr.mxu0 0.0
    %3742 = vmatpush1.msra.mxu0 0.0
    %3743 = vmatprep.subr.mxu0 0.0
    %3744 = vmatpush1.msra.mxu0 0.0
    %3745 = vmatprep.subr.mxu0 0.0
    %3746 = vmatpush1.msra.mxu0 0.0
    %3747 = vmatprep.mubr.f32.mxu0 0.0
    %3748 = vmatmul.mubr.f32.gmra.mrb[0].mxu0 %v3681
    %v3749 = vpop.f32.mrb[0].mxu0
    %v3750 = vadd.f32 0.0, %v3749
    %v3751 = vpop.f32.mrb[0].mxu0
    %3752 = vdwg.mxu0
    %v3753 = vlaneseq
    %v3754 = vshrl.u32 %v3753, 7
    %v3755 = vsub.s32 0, %v3754
    %v3756 = vrot.slane %v3677, %v3755
    %v3757 = vmul.f32 %v3420, %v3756
    %v3758 = vlaneseq
    %v3759 = vshrl.u32 %v3758, 7
    %v3760 = vsub.s32 0, %v3759
    %v3761 = vrot.slane %v3750, %v3760
    %v3762 = vadd.f32 %v3757, %v3761
    %vm3763 = vcmp.gt.f32.partialorder %v3762, 0.0
    %v3764 = vmul.f32 %v3762, 0.2
    %v3765 = vsel %vm3763, %v3762, %v3764
    %v3766 = vld [vmem:[#allocation19] sm:$0xf]
    %vm3767 = vcmask 64512
    %v3769 = vsel %vm3767, %v3766, 0
    %3771 = vmatprep.subr.mxu0 0.0
    %3772 = vmatpush1.msra.mxu0 %v3765
    %3773 = vmatprep.subr.mxu0 0.0
    %3774 = vmatpush1.msra.mxu0 0.0
    %3775 = vmatprep.subr.mxu0 0.0
    %3776 = vmatpush1.msra.mxu0 0.0
    %3777 = vmatprep.subr.mxu0 0.0
    %3778 = vmatpush1.msra.mxu0 0.0
    %3779 = vmatprep.subr.mxu0 0.0
    %3780 = vmatpush1.msra.mxu0 0.0
    %3781 = vmatprep.subr.mxu0 0.0
    %3782 = vmatpush1.msra.mxu0 0.0
    %3783 = vmatprep.subr.mxu0 0.0
    %3784 = vmatpush1.msra.mxu0 0.0
    %3785 = vmatprep.subr.mxu0 0.0
    %3786 = vmatpush1.msra.mxu0 0.0
    %3787 = vmatprep.subr.mxu0 0.0
    %3788 = vmatpush1.msra.mxu0 0.0
    %3789 = vmatprep.subr.mxu0 0.0
    %3790 = vmatpush1.msra.mxu0 0.0
    %3791 = vmatprep.subr.mxu0 0.0
    %3792 = vmatpush1.msra.mxu0 0.0
    %3793 = vmatprep.subr.mxu0 0.0
    %3794 = vmatpush1.msra.mxu0 0.0
    %3795 = vmatprep.subr.mxu0 0.0
    %3796 = vmatpush1.msra.mxu0 0.0
    %3797 = vmatprep.subr.mxu0 0.0
    %3798 = vmatpush1.msra.mxu0 0.0
    %3799 = vmatprep.subr.mxu0 0.0
    %3800 = vmatpush1.msra.mxu0 0.0
    %3801 = vmatprep.subr.mxu0 0.0
    %3802 = vmatpush1.msra.mxu0 0.0
    %3803 = vmatprep.subr.mxu0 0.0
    %3804 = vmatpush1.msra.mxu0 0.0
    %3805 = vmatprep.subr.mxu0 0.0
    %3806 = vmatpush1.msra.mxu0 0.0
    %3807 = vmatprep.subr.mxu0 0.0
    %3808 = vmatpush1.msra.mxu0 0.0
    %3809 = vmatprep.subr.mxu0 0.0
    %3810 = vmatpush1.msra.mxu0 0.0
    %3811 = vmatprep.subr.mxu0 0.0
    %3812 = vmatpush1.msra.mxu0 0.0
    %3813 = vmatprep.subr.mxu0 0.0
    %3814 = vmatpush1.msra.mxu0 0.0
    %3815 = vmatprep.subr.mxu0 0.0
    %3816 = vmatpush1.msra.mxu0 0.0
    %3817 = vmatprep.subr.mxu0 0.0
    %3818 = vmatpush1.msra.mxu0 0.0
    %3819 = vmatprep.subr.mxu0 0.0
    %3820 = vmatpush1.msra.mxu0 0.0
    %3821 = vmatprep.subr.mxu0 0.0
    %3822 = vmatpush1.msra.mxu0 0.0
    %3823 = vmatprep.subr.mxu0 0.0
    %3824 = vmatpush1.msra.mxu0 0.0
    %3825 = vmatprep.subr.mxu0 0.0
    %3826 = vmatpush1.msra.mxu0 0.0
    %3827 = vmatprep.subr.mxu0 0.0
    %3828 = vmatpush1.msra.mxu0 0.0
    %3829 = vmatprep.subr.mxu0 0.0
    %3830 = vmatpush1.msra.mxu0 0.0
    %3831 = vmatprep.subr.mxu0 0.0
    %3832 = vmatpush1.msra.mxu0 0.0
    %3833 = vmatprep.subr.mxu0 0.0
    %3834 = vmatpush1.msra.mxu0 0.0
    %3835 = vmatprep.mubr.f32.mxu0 0.0
    %3836 = vmatmul.mubr.f32.gmra.mrb[0].mxu0 %v3769
    %v3837 = vpop.f32.mrb[0].mxu0
    %v3838 = vadd.f32 0.0, %v3837
    %v3839 = vpop.f32.mrb[0].mxu0
    %3840 = vdwg.mxu0
    %v3841 = vld [vmem:[#allocation20] sm:$0xff]
    %v3842 = vld [vmem:[#allocation20 + $0x8] sm:$0xff]
    %v3843 = vld [vmem:[#allocation20 + $0x10] sm:$0xff]
    %v3844 = vld [vmem:[#allocation20 + $0x18] sm:$0xff]
    %v3845 = vld [vmem:[#allocation20 + $0x20] sm:$0xff]
    %v3846 = vld [vmem:[#allocation20 + $0x28] sm:$0xff]
    %v3847 = vld [vmem:[#allocation20 + $0x30] sm:$0xff]
    %v3848 = vld [vmem:[#allocation20 + $0x38] sm:$0xff]
    %v3849 = vld [vmem:[#allocation20 + $0x40] sm:$0xff]
    %v3850 = vld [vmem:[#allocation20 + $0x48] sm:$0xff]
    %v3851 = vld [vmem:[#allocation20 + $0x50] sm:$0xff]
    %v3852 = vld [vmem:[#allocation20 + $0x58] sm:$0xff]
    %v3853 = vld [vmem:[#allocation20 + $0x60] sm:$0xff]
    %v3854 = vld [vmem:[#allocation20 + $0x68] sm:$0xff]
    %v3855 = vld [vmem:[#allocation20 + $0x70] sm:$0xff]
    %v3856 = vld [vmem:[#allocation20 + $0x78] sm:$0xff]
    %s3857 = scalar_lea.vmem [#allocation19], 4
    %v3858 = vld [vmem:[%s3857] sm:$0xf]
    %v3860 = vsel %vm3767, %v3858, 0
    %3862 = vmatprep.subr.mxu0 0.0
    %3863 = vmatpush1.msra.mxu0 %v3765
    %3864 = vmatprep.subr.mxu0 0.0
    %3865 = vmatpush1.msra.mxu0 0.0
    %3866 = vmatprep.subr.mxu0 0.0
    %3867 = vmatpush1.msra.mxu0 0.0
    %3868 = vmatprep.subr.mxu0 0.0
    %3869 = vmatpush1.msra.mxu0 0.0
    %3870 = vmatprep.subr.mxu0 0.0
    %3871 = vmatpush1.msra.mxu0 0.0
    %3872 = vmatprep.subr.mxu0 0.0
    %3873 = vmatpush1.msra.mxu0 0.0
    %3874 = vmatprep.subr.mxu0 0.0
    %3875 = vmatpush1.msra.mxu0 0.0
    %3876 = vmatprep.subr.mxu0 0.0
    %3877 = vmatpush1.msra.mxu0 0.0
    %3878 = vmatprep.subr.mxu0 0.0
    %3879 = vmatpush1.msra.mxu0 0.0
    %3880 = vmatprep.subr.mxu0 0.0
    %3881 = vmatpush1.msra.mxu0 0.0
    %3882 = vmatprep.subr.mxu0 0.0
    %3883 = vmatpush1.msra.mxu0 0.0
    %3884 = vmatprep.subr.mxu0 0.0
    %3885 = vmatpush1.msra.mxu0 0.0
    %3886 = vmatprep.subr.mxu0 0.0
    %3887 = vmatpush1.msra.mxu0 0.0
    %3888 = vmatprep.subr.mxu0 0.0
    %3889 = vmatpush1.msra.mxu0 0.0
    %3890 = vmatprep.subr.mxu0 0.0
    %3891 = vmatpush1.msra.mxu0 0.0
    %3892 = vmatprep.subr.mxu0 0.0
    %3893 = vmatpush1.msra.mxu0 0.0
    %3894 = vmatprep.subr.mxu0 0.0
    %3895 = vmatpush1.msra.mxu0 0.0
    %3896 = vmatprep.subr.mxu0 0.0
    %3897 = vmatpush1.msra.mxu0 0.0
    %3898 = vmatprep.subr.mxu0 0.0
    %3899 = vmatpush1.msra.mxu0 0.0
    %3900 = vmatprep.subr.mxu0 0.0
    %3901 = vmatpush1.msra.mxu0 0.0
    %3902 = vmatprep.subr.mxu0 0.0
    %3903 = vmatpush1.msra.mxu0 0.0
    %3904 = vmatprep.subr.mxu0 0.0
    %3905 = vmatpush1.msra.mxu0 0.0
    %3906 = vmatprep.subr.mxu0 0.0
    %3907 = vmatpush1.msra.mxu0 0.0
    %3908 = vmatprep.subr.mxu0 0.0
    %3909 = vmatpush1.msra.mxu0 0.0
    %3910 = vmatprep.subr.mxu0 0.0
    %3911 = vmatpush1.msra.mxu0 0.0
    %3912 = vmatprep.subr.mxu0 0.0
    %3913 = vmatpush1.msra.mxu0 0.0
    %3914 = vmatprep.subr.mxu0 0.0
    %3915 = vmatpush1.msra.mxu0 0.0
    %3916 = vmatprep.subr.mxu0 0.0
    %3917 = vmatpush1.msra.mxu0 0.0
    %3918 = vmatprep.subr.mxu0 0.0
    %3919 = vmatpush1.msra.mxu0 0.0
    %3920 = vmatprep.subr.mxu0 0.0
    %3921 = vmatpush1.msra.mxu0 0.0
    %3922 = vmatprep.subr.mxu0 0.0
    %3923 = vmatpush1.msra.mxu0 0.0
    %3924 = vmatprep.subr.mxu0 0.0
    %3925 = vmatpush1.msra.mxu0 0.0
    %3926 = vmatprep.mubr.f32.mxu0 0.0
    %3927 = vmatmul.mubr.f32.gmra.mrb[0].mxu0 %v3860
    %v3928 = vpop.f32.mrb[0].mxu0
    %v3929 = vadd.f32 0.0, %v3928
    %v3930 = vpop.f32.mrb[0].mxu0
    %3931 = vdwg.mxu0
    %s3932 = scalar_lea.vmem [#allocation20], 128
    %v3933 = vld [vmem:[%s3932] sm:$0xff]
    %v3934 = vld [vmem:[%s3932 + $0x8] sm:$0xff]
    %v3935 = vld [vmem:[%s3932 + $0x10] sm:$0xff]
    %v3936 = vld [vmem:[%s3932 + $0x18] sm:$0xff]
    %v3937 = vld [vmem:[%s3932 + $0x20] sm:$0xff]
    %v3938 = vld [vmem:[%s3932 + $0x28] sm:$0xff]
    %v3939 = vld [vmem:[%s3932 + $0x30] sm:$0xff]
    %v3940 = vld [vmem:[%s3932 + $0x38] sm:$0xff]
    %v3941 = vld [vmem:[%s3932 + $0x40] sm:$0xff]
    %v3942 = vld [vmem:[%s3932 + $0x48] sm:$0xff]
    %v3943 = vld [vmem:[%s3932 + $0x50] sm:$0xff]
    %v3944 = vld [vmem:[%s3932 + $0x58] sm:$0xff]
    %v3945 = vld [vmem:[%s3932 + $0x60] sm:$0xff]
    %v3946 = vld [vmem:[%s3932 + $0x68] sm:$0xff]
    %v3947 = vld [vmem:[%s3932 + $0x70] sm:$0xff]
    %v3948 = vld [vmem:[%s3932 + $0x78] sm:$0xff]
    %3949 = vmatprep.subr.mxu0 0.0
    %3950 = vmatpush1.msra.mxu0 %v3933
    %3951 = vmatprep.subr.mxu0 0.0
    %3952 = vmatpush1.msra.mxu0 %v3934
    %3953 = vmatprep.subr.mxu0 0.0
    %3954 = vmatpush1.msra.mxu0 %v3935
    %3955 = vmatprep.subr.mxu0 0.0
    %3956 = vmatpush1.msra.mxu0 %v3936
    %3957 = vmatprep.subr.mxu0 0.0
    %3958 = vmatpush1.msra.mxu0 %v3937
    %3959 = vmatprep.subr.mxu0 0.0
    %3960 = vmatpush1.msra.mxu0 %v3938
    %3961 = vmatprep.subr.mxu0 0.0
    %3962 = vmatpush1.msra.mxu0 %v3939
    %3963 = vmatprep.subr.mxu0 0.0
    %3964 = vmatpush1.msra.mxu0 %v3940
    %3965 = vmatprep.subr.mxu0 0.0
    %3966 = vmatpush1.msra.mxu0 %v3941
    %3967 = vmatprep.subr.mxu0 0.0
    %3968 = vmatpush1.msra.mxu0 %v3942
    %3969 = vmatprep.subr.mxu0 0.0
    %3970 = vmatpush1.msra.mxu0 %v3943
    %3971 = vmatprep.subr.mxu0 0.0
    %3972 = vmatpush1.msra.mxu0 %v3944
    %3973 = vmatprep.subr.mxu0 0.0
    %3974 = vmatpush1.msra.mxu0 %v3945
    %3975 = vmatprep.subr.mxu0 0.0
    %3976 = vmatpush1.msra.mxu0 %v3946
    %3977 = vmatprep.subr.mxu0 0.0
    %3978 = vmatpush1.msra.mxu0 %v3947
    %3979 = vmatprep.subr.mxu0 0.0
    %3980 = vmatpush1.msra.mxu0 %v3948
    %3981 = vmatprep.subr.mxu0 0.0
    %3982 = vmatpush1.msra.mxu0 0.0
    %3983 = vmatprep.subr.mxu0 0.0
    %3984 = vmatpush1.msra.mxu0 0.0
    %3985 = vmatprep.subr.mxu0 0.0
    %3986 = vmatpush1.msra.mxu0 0.0
    %3987 = vmatprep.subr.mxu0 0.0
    %3988 = vmatpush1.msra.mxu0 0.0
    %3989 = vmatprep.subr.mxu0 0.0
    %3990 = vmatpush1.msra.mxu0 0.0
    %3991 = vmatprep.subr.mxu0 0.0
    %3992 = vmatpush1.msra.mxu0 0.0
    %3993 = vmatprep.subr.mxu0 0.0
    %3994 = vmatpush1.msra.mxu0 0.0
    %3995 = vmatprep.subr.mxu0 0.0
    %3996 = vmatpush1.msra.mxu0 0.0
    %3997 = vmatprep.subr.mxu0 0.0
    %3998 = vmatpush1.msra.mxu0 0.0
    %3999 = vmatprep.subr.mxu0 0.0
    %4000 = vmatpush1.msra.mxu0 0.0
    %4001 = vmatprep.subr.mxu0 0.0
    %4002 = vmatpush1.msra.mxu0 0.0
    %4003 = vmatprep.subr.mxu0 0.0
    %4004 = vmatpush1.msra.mxu0 0.0
    %4005 = vmatprep.subr.mxu0 0.0
    %4006 = vmatpush1.msra.mxu0 0.0
    %4007 = vmatprep.subr.mxu0 0.0
    %4008 = vmatpush1.msra.mxu0 0.0
    %4009 = vmatprep.subr.mxu0 0.0
    %4010 = vmatpush1.msra.mxu0 0.0
    %4011 = vmatprep.subr.mxu0 0.0
    %4012 = vmatpush1.msra.mxu0 0.0
    %4013 = vmatprep.mubr.f32.mxu0 0.0
    %4014 = vmatmul.mubr.f32.gmra.mrb[0].mxu0 %v3929
    %v4015 = vpop.f32.mrb[0].mxu0
    %v4016 = vadd.f32 0.0, %v4015
    %v4017 = vpop.f32.mrb[0].mxu0
    %4018 = vdwg.mxu0
    %4019 = vmatprep.subr.mxu0 0.0
    %4020 = vmatpush1.msra.mxu0 %v3841
    %4021 = vmatprep.subr.mxu0 0.0
    %4022 = vmatpush1.msra.mxu0 %v3842
    %4023 = vmatprep.subr.mxu0 0.0
    %4024 = vmatpush1.msra.mxu0 %v3843
    %4025 = vmatprep.subr.mxu0 0.0
    %4026 = vmatpush1.msra.mxu0 %v3844
    %4027 = vmatprep.subr.mxu0 0.0
    %4028 = vmatpush1.msra.mxu0 %v3845
    %4029 = vmatprep.subr.mxu0 0.0
    %4030 = vmatpush1.msra.mxu0 %v3846
    %4031 = vmatprep.subr.mxu0 0.0
    %4032 = vmatpush1.msra.mxu0 %v3847
    %4033 = vmatprep.subr.mxu0 0.0
    %4034 = vmatpush1.msra.mxu0 %v3848
    %4035 = vmatprep.subr.mxu0 0.0
    %4036 = vmatpush1.msra.mxu0 %v3849
    %4037 = vmatprep.subr.mxu0 0.0
    %4038 = vmatpush1.msra.mxu0 %v3850
    %4039 = vmatprep.subr.mxu0 0.0
    %4040 = vmatpush1.msra.mxu0 %v3851
    %4041 = vmatprep.subr.mxu0 0.0
    %4042 = vmatpush1.msra.mxu0 %v3852
    %4043 = vmatprep.subr.mxu0 0.0
    %4044 = vmatpush1.msra.mxu0 %v3853
    %4045 = vmatprep.subr.mxu0 0.0
    %4046 = vmatpush1.msra.mxu0 %v3854
    %4047 = vmatprep.subr.mxu0 0.0
    %4048 = vmatpush1.msra.mxu0 %v3855
    %4049 = vmatprep.subr.mxu0 0.0
    %4050 = vmatpush1.msra.mxu0 %v3856
    %4051 = vmatprep.subr.mxu0 0.0
    %4052 = vmatpush1.msra.mxu0 0.0
    %4053 = vmatprep.subr.mxu0 0.0
    %4054 = vmatpush1.msra.mxu0 0.0
    %4055 = vmatprep.subr.mxu0 0.0
    %4056 = vmatpush1.msra.mxu0 0.0
    %4057 = vmatprep.subr.mxu0 0.0
    %4058 = vmatpush1.msra.mxu0 0.0
    %4059 = vmatprep.subr.mxu0 0.0
    %4060 = vmatpush1.msra.mxu0 0.0
    %4061 = vmatprep.subr.mxu0 0.0
    %4062 = vmatpush1.msra.mxu0 0.0
    %4063 = vmatprep.subr.mxu0 0.0
    %4064 = vmatpush1.msra.mxu0 0.0
    %4065 = vmatprep.subr.mxu0 0.0
    %4066 = vmatpush1.msra.mxu0 0.0
    %4067 = vmatprep.subr.mxu0 0.0
    %4068 = vmatpush1.msra.mxu0 0.0
    %4069 = vmatprep.subr.mxu0 0.0
    %4070 = vmatpush1.msra.mxu0 0.0
    %4071 = vmatprep.subr.mxu0 0.0
    %4072 = vmatpush1.msra.mxu0 0.0
    %4073 = vmatprep.subr.mxu0 0.0
    %4074 = vmatpush1.msra.mxu0 0.0
    %4075 = vmatprep.subr.mxu0 0.0
    %4076 = vmatpush1.msra.mxu0 0.0
    %4077 = vmatprep.subr.mxu0 0.0
    %4078 = vmatpush1.msra.mxu0 0.0
    %4079 = vmatprep.subr.mxu0 0.0
    %4080 = vmatpush1.msra.mxu0 0.0
    %4081 = vmatprep.subr.mxu0 0.0
    %4082 = vmatpush1.msra.mxu0 0.0
    %4083 = vmatprep.mubr.f32.mxu0 0.0
    %4084 = vmatmul.mubr.f32.gmra.mrb[0].mxu0 %v3838
    %v4085 = vpop.f32.mrb[0].mxu0
    %v4086 = vadd.f32 %v4016, %v4085
    %v4087 = vpop.f32.mrb[0].mxu0
    %4088 = vdwg.mxu0
    %s4089 = scalar_lea.vmem [#allocation19], 8
    %v4090 = vld [vmem:[%s4089] sm:$0xf]
    %v4092 = vsel %vm3767, %v4090, 0
    %4094 = vmatprep.subr.mxu0 0.0
    %4095 = vmatpush1.msra.mxu0 %v3765
    %4096 = vmatprep.subr.mxu0 0.0
    %4097 = vmatpush1.msra.mxu0 0.0
    %4098 = vmatprep.subr.mxu0 0.0
    %4099 = vmatpush1.msra.mxu0 0.0
    %4100 = vmatprep.subr.mxu0 0.0
    %4101 = vmatpush1.msra.mxu0 0.0
    %4102 = vmatprep.subr.mxu0 0.0
    %4103 = vmatpush1.msra.mxu0 0.0
    %4104 = vmatprep.subr.mxu0 0.0
    %4105 = vmatpush1.msra.mxu0 0.0
    %4106 = vmatprep.subr.mxu0 0.0
    %4107 = vmatpush1.msra.mxu0 0.0
    %4108 = vmatprep.subr.mxu0 0.0
    %4109 = vmatpush1.msra.mxu0 0.0
    %4110 = vmatprep.subr.mxu0 0.0
    %4111 = vmatpush1.msra.mxu0 0.0
    %4112 = vmatprep.subr.mxu0 0.0
    %4113 = vmatpush1.msra.mxu0 0.0
    %4114 = vmatprep.subr.mxu0 0.0
    %4115 = vmatpush1.msra.mxu0 0.0
    %4116 = vmatprep.subr.mxu0 0.0
    %4117 = vmatpush1.msra.mxu0 0.0
    %4118 = vmatprep.subr.mxu0 0.0
    %4119 = vmatpush1.msra.mxu0 0.0
    %4120 = vmatprep.subr.mxu0 0.0
    %4121 = vmatpush1.msra.mxu0 0.0
    %4122 = vmatprep.subr.mxu0 0.0
    %4123 = vmatpush1.msra.mxu0 0.0
    %4124 = vmatprep.subr.mxu0 0.0
    %4125 = vmatpush1.msra.mxu0 0.0
    %4126 = vmatprep.subr.mxu0 0.0
    %4127 = vmatpush1.msra.mxu0 0.0
    %4128 = vmatprep.subr.mxu0 0.0
    %4129 = vmatpush1.msra.mxu0 0.0
    %4130 = vmatprep.subr.mxu0 0.0
    %4131 = vmatpush1.msra.mxu0 0.0
    %4132 = vmatprep.subr.mxu0 0.0
    %4133 = vmatpush1.msra.mxu0 0.0
    %4134 = vmatprep.subr.mxu0 0.0
    %4135 = vmatpush1.msra.mxu0 0.0
    %4136 = vmatprep.subr.mxu0 0.0
    %4137 = vmatpush1.msra.mxu0 0.0
    %4138 = vmatprep.subr.mxu0 0.0
    %4139 = vmatpush1.msra.mxu0 0.0
    %4140 = vmatprep.subr.mxu0 0.0
    %4141 = vmatpush1.msra.mxu0 0.0
    %4142 = vmatprep.subr.mxu0 0.0
    %4143 = vmatpush1.msra.mxu0 0.0
    %4144 = vmatprep.subr.mxu0 0.0
    %4145 = vmatpush1.msra.mxu0 0.0
    %4146 = vmatprep.subr.mxu0 0.0
    %4147 = vmatpush1.msra.mxu0 0.0
    %4148 = vmatprep.subr.mxu0 0.0
    %4149 = vmatpush1.msra.mxu0 0.0
    %4150 = vmatprep.subr.mxu0 0.0
    %4151 = vmatpush1.msra.mxu0 0.0
    %4152 = vmatprep.subr.mxu0 0.0
    %4153 = vmatpush1.msra.mxu0 0.0
    %4154 = vmatprep.subr.mxu0 0.0
    %4155 = vmatpush1.msra.mxu0 0.0
    %4156 = vmatprep.subr.mxu0 0.0
    %4157 = vmatpush1.msra.mxu0 0.0
    %4158 = vmatprep.mubr.f32.mxu0 0.0
    %4159 = vmatmul.mubr.f32.gmra.mrb[0].mxu0 %v4092
    %v4160 = vpop.f32.mrb[0].mxu0
    %v4161 = vadd.f32 0.0, %v4160
    %v4162 = vpop.f32.mrb[0].mxu0
    %4163 = vdwg.mxu0
    %s4164 = scalar_lea.vmem [#allocation20], 256
    %v4165 = vld [vmem:[%s4164] sm:$0xff]
    %v4166 = vld [vmem:[%s4164 + $0x8] sm:$0xff]
    %v4167 = vld [vmem:[%s4164 + $0x10] sm:$0xff]
    %v4168 = vld [vmem:[%s4164 + $0x18] sm:$0xff]
    %v4169 = vld [vmem:[%s4164 + $0x20] sm:$0xff]
    %v4170 = vld [vmem:[%s4164 + $0x28] sm:$0xff]
    %v4171 = vld [vmem:[%s4164 + $0x30] sm:$0xff]
    %v4172 = vld [vmem:[%s4164 + $0x38] sm:$0xff]
    %v4173 = vld [vmem:[%s4164 + $0x40] sm:$0xff]
    %v4174 = vld [vmem:[%s4164 + $0x48] sm:$0xff]
    %v4175 = vld [vmem:[%s4164 + $0x50] sm:$0xff]
    %v4176 = vld [vmem:[%s4164 + $0x58] sm:$0xff]
    %v4177 = vld [vmem:[%s4164 + $0x60] sm:$0xff]
    %v4178 = vld [vmem:[%s4164 + $0x68] sm:$0xff]
    %v4179 = vld [vmem:[%s4164 + $0x70] sm:$0xff]
    %v4180 = vld [vmem:[%s4164 + $0x78] sm:$0xff]
    %4181 = vmatprep.subr.mxu0 0.0
    %4182 = vmatpush1.msra.mxu0 %v4165
    %4183 = vmatprep.subr.mxu0 0.0
    %4184 = vmatpush1.msra.mxu0 %v4166
    %4185 = vmatprep.subr.mxu0 0.0
    %4186 = vmatpush1.msra.mxu0 %v4167
    %4187 = vmatprep.subr.mxu0 0.0
    %4188 = vmatpush1.msra.mxu0 %v4168
    %4189 = vmatprep.subr.mxu0 0.0
    %4190 = vmatpush1.msra.mxu0 %v4169
    %4191 = vmatprep.subr.mxu0 0.0
    %4192 = vmatpush1.msra.mxu0 %v4170
    %4193 = vmatprep.subr.mxu0 0.0
    %4194 = vmatpush1.msra.mxu0 %v4171
    %4195 = vmatprep.subr.mxu0 0.0
    %4196 = vmatpush1.msra.mxu0 %v4172
    %4197 = vmatprep.subr.mxu0 0.0
    %4198 = vmatpush1.msra.mxu0 %v4173
    %4199 = vmatprep.subr.mxu0 0.0
    %4200 = vmatpush1.msra.mxu0 %v4174
    %4201 = vmatprep.subr.mxu0 0.0
    %4202 = vmatpush1.msra.mxu0 %v4175
    %4203 = vmatprep.subr.mxu0 0.0
    %4204 = vmatpush1.msra.mxu0 %v4176
    %4205 = vmatprep.subr.mxu0 0.0
    %4206 = vmatpush1.msra.mxu0 %v4177
    %4207 = vmatprep.subr.mxu0 0.0
    %4208 = vmatpush1.msra.mxu0 %v4178
    %4209 = vmatprep.subr.mxu0 0.0
    %4210 = vmatpush1.msra.mxu0 %v4179
    %4211 = vmatprep.subr.mxu0 0.0
    %4212 = vmatpush1.msra.mxu0 %v4180
    %4213 = vmatprep.subr.mxu0 0.0
    %4214 = vmatpush1.msra.mxu0 0.0
    %4215 = vmatprep.subr.mxu0 0.0
    %4216 = vmatpush1.msra.mxu0 0.0
    %4217 = vmatprep.subr.mxu0 0.0
    %4218 = vmatpush1.msra.mxu0 0.0
    %4219 = vmatprep.subr.mxu0 0.0
    %4220 = vmatpush1.msra.mxu0 0.0
    %4221 = vmatprep.subr.mxu0 0.0
    %4222 = vmatpush1.msra.mxu0 0.0
    %4223 = vmatprep.subr.mxu0 0.0
    %4224 = vmatpush1.msra.mxu0 0.0
    %4225 = vmatprep.subr.mxu0 0.0
    %4226 = vmatpush1.msra.mxu0 0.0
    %4227 = vmatprep.subr.mxu0 0.0
    %4228 = vmatpush1.msra.mxu0 0.0
    %4229 = vmatprep.subr.mxu0 0.0
    %4230 = vmatpush1.msra.mxu0 0.0
    %4231 = vmatprep.subr.mxu0 0.0
    %4232 = vmatpush1.msra.mxu0 0.0
    %4233 = vmatprep.subr.mxu0 0.0
    %4234 = vmatpush1.msra.mxu0 0.0
    %4235 = vmatprep.subr.mxu0 0.0
    %4236 = vmatpush1.msra.mxu0 0.0
    %4237 = vmatprep.subr.mxu0 0.0
    %4238 = vmatpush1.msra.mxu0 0.0
    %4239 = vmatprep.subr.mxu0 0.0
    %4240 = vmatpush1.msra.mxu0 0.0
    %4241 = vmatprep.subr.mxu0 0.0
    %4242 = vmatpush1.msra.mxu0 0.0
    %4243 = vmatprep.subr.mxu0 0.0
    %4244 = vmatpush1.msra.mxu0 0.0
    %4245 = vmatprep.mubr.f32.mxu0 0.0
    %4246 = vmatmul.mubr.f32.gmra.mrb[0].mxu0 %v4161
    %v4247 = vpop.f32.mrb[0].mxu0
    %v4248 = vadd.f32 0.0, %v4247
    %v4249 = vpop.f32.mrb[0].mxu0
    %4250 = vdwg.mxu0
    %v4251 = vadd.f32 %v4086, %v4248
    %s4252 = scalar_lea.vmem [#allocation19], 12
    %v4253 = vld [vmem:[%s4252] sm:$0xf]
    %v4255 = vsel %vm3767, %v4253, 0
    %4257 = vmatprep.subr.mxu0 0.0
    %4258 = vmatpush1.msra.mxu0 %v3765
    %4259 = vmatprep.subr.mxu0 0.0
    %4260 = vmatpush1.msra.mxu0 0.0
    %4261 = vmatprep.subr.mxu0 0.0
    %4262 = vmatpush1.msra.mxu0 0.0
    %4263 = vmatprep.subr.mxu0 0.0
    %4264 = vmatpush1.msra.mxu0 0.0
    %4265 = vmatprep.subr.mxu0 0.0
    %4266 = vmatpush1.msra.mxu0 0.0
    %4267 = vmatprep.subr.mxu0 0.0
    %4268 = vmatpush1.msra.mxu0 0.0
    %4269 = vmatprep.subr.mxu0 0.0
    %4270 = vmatpush1.msra.mxu0 0.0
    %4271 = vmatprep.subr.mxu0 0.0
    %4272 = vmatpush1.msra.mxu0 0.0
    %4273 = vmatprep.subr.mxu0 0.0
    %4274 = vmatpush1.msra.mxu0 0.0
    %4275 = vmatprep.subr.mxu0 0.0
    %4276 = vmatpush1.msra.mxu0 0.0
    %4277 = vmatprep.subr.mxu0 0.0
    %4278 = vmatpush1.msra.mxu0 0.0
    %4279 = vmatprep.subr.mxu0 0.0
    %4280 = vmatpush1.msra.mxu0 0.0
    %4281 = vmatprep.subr.mxu0 0.0
    %4282 = vmatpush1.msra.mxu0 0.0
    %4283 = vmatprep.subr.mxu0 0.0
    %4284 = vmatpush1.msra.mxu0 0.0
    %4285 = vmatprep.subr.mxu0 0.0
    %4286 = vmatpush1.msra.mxu0 0.0
    %4287 = vmatprep.subr.mxu0 0.0
    %4288 = vmatpush1.msra.mxu0 0.0
    %4289 = vmatprep.subr.mxu0 0.0
    %4290 = vmatpush1.msra.mxu0 0.0
    %4291 = vmatprep.subr.mxu0 0.0
    %4292 = vmatpush1.msra.mxu0 0.0
    %4293 = vmatprep.subr.mxu0 0.0
    %4294 = vmatpush1.msra.mxu0 0.0
    %4295 = vmatprep.subr.mxu0 0.0
    %4296 = vmatpush1.msra.mxu0 0.0
    %4297 = vmatprep.subr.mxu0 0.0
    %4298 = vmatpush1.msra.mxu0 0.0
    %4299 = vmatprep.subr.mxu0 0.0
    %4300 = vmatpush1.msra.mxu0 0.0
    %4301 = vmatprep.subr.mxu0 0.0
    %4302 = vmatpush1.msra.mxu0 0.0
    %4303 = vmatprep.subr.mxu0 0.0
    %4304 = vmatpush1.msra.mxu0 0.0
    %4305 = vmatprep.subr.mxu0 0.0
    %4306 = vmatpush1.msra.mxu0 0.0
    %4307 = vmatprep.subr.mxu0 0.0
    %4308 = vmatpush1.msra.mxu0 0.0
    %4309 = vmatprep.subr.mxu0 0.0
    %4310 = vmatpush1.msra.mxu0 0.0
    %4311 = vmatprep.subr.mxu0 0.0
    %4312 = vmatpush1.msra.mxu0 0.0
    %4313 = vmatprep.subr.mxu0 0.0
    %4314 = vmatpush1.msra.mxu0 0.0
    %4315 = vmatprep.subr.mxu0 0.0
    %4316 = vmatpush1.msra.mxu0 0.0
    %4317 = vmatprep.subr.mxu0 0.0
    %4318 = vmatpush1.msra.mxu0 0.0
    %4319 = vmatprep.subr.mxu0 0.0
    %4320 = vmatpush1.msra.mxu0 0.0
    %4321 = vmatprep.mubr.f32.mxu0 0.0
    %4322 = vmatmul.mubr.f32.gmra.mrb[0].mxu0 %v4255
    %v4323 = vpop.f32.mrb[0].mxu0
    %v4324 = vadd.f32 0.0, %v4323
    %v4325 = vpop.f32.mrb[0].mxu0
    %4326 = vdwg.mxu0
    %s4327 = scalar_lea.vmem [#allocation20], 384
    %v4328 = vld [vmem:[%s4327] sm:$0xff]
    %v4329 = vld [vmem:[%s4327 + $0x8] sm:$0xff]
    %v4330 = vld [vmem:[%s4327 + $0x10] sm:$0xff]
    %v4331 = vld [vmem:[%s4327 + $0x18] sm:$0xff]
    %v4332 = vld [vmem:[%s4327 + $0x20] sm:$0xff]
    %v4333 = vld [vmem:[%s4327 + $0x28] sm:$0xff]
    %v4334 = vld [vmem:[%s4327 + $0x30] sm:$0xff]
    %v4335 = vld [vmem:[%s4327 + $0x38] sm:$0xff]
    %v4336 = vld [vmem:[%s4327 + $0x40] sm:$0xff]
    %v4337 = vld [vmem:[%s4327 + $0x48] sm:$0xff]
    %v4338 = vld [vmem:[%s4327 + $0x50] sm:$0xff]
    %v4339 = vld [vmem:[%s4327 + $0x58] sm:$0xff]
    %v4340 = vld [vmem:[%s4327 + $0x60] sm:$0xff]
    %v4341 = vld [vmem:[%s4327 + $0x68] sm:$0xff]
    %v4342 = vld [vmem:[%s4327 + $0x70] sm:$0xff]
    %v4343 = vld [vmem:[%s4327 + $0x78] sm:$0xff]
    %4344 = vmatprep.subr.mxu0 0.0
    %4345 = vmatpush1.msra.mxu0 %v4328
    %4346 = vmatprep.subr.mxu0 0.0
    %4347 = vmatpush1.msra.mxu0 %v4329
    %4348 = vmatprep.subr.mxu0 0.0
    %4349 = vmatpush1.msra.mxu0 %v4330
    %4350 = vmatprep.subr.mxu0 0.0
    %4351 = vmatpush1.msra.mxu0 %v4331
    %4352 = vmatprep.subr.mxu0 0.0
    %4353 = vmatpush1.msra.mxu0 %v4332
    %4354 = vmatprep.subr.mxu0 0.0
    %4355 = vmatpush1.msra.mxu0 %v4333
    %4356 = vmatprep.subr.mxu0 0.0
    %4357 = vmatpush1.msra.mxu0 %v4334
    %4358 = vmatprep.subr.mxu0 0.0
    %4359 = vmatpush1.msra.mxu0 %v4335
    %4360 = vmatprep.subr.mxu0 0.0
    %4361 = vmatpush1.msra.mxu0 %v4336
    %4362 = vmatprep.subr.mxu0 0.0
    %4363 = vmatpush1.msra.mxu0 %v4337
    %4364 = vmatprep.subr.mxu0 0.0
    %4365 = vmatpush1.msra.mxu0 %v4338
    %4366 = vmatprep.subr.mxu0 0.0
    %4367 = vmatpush1.msra.mxu0 %v4339
    %4368 = vmatprep.subr.mxu0 0.0
    %4369 = vmatpush1.msra.mxu0 %v4340
    %4370 = vmatprep.subr.mxu0 0.0
    %4371 = vmatpush1.msra.mxu0 %v4341
    %4372 = vmatprep.subr.mxu0 0.0
    %4373 = vmatpush1.msra.mxu0 %v4342
    %4374 = vmatprep.subr.mxu0 0.0
    %4375 = vmatpush1.msra.mxu0 %v4343
    %4376 = vmatprep.subr.mxu0 0.0
    %4377 = vmatpush1.msra.mxu0 0.0
    %4378 = vmatprep.subr.mxu0 0.0
    %4379 = vmatpush1.msra.mxu0 0.0
    %4380 = vmatprep.subr.mxu0 0.0
    %4381 = vmatpush1.msra.mxu0 0.0
    %4382 = vmatprep.subr.mxu0 0.0
    %4383 = vmatpush1.msra.mxu0 0.0
    %4384 = vmatprep.subr.mxu0 0.0
    %4385 = vmatpush1.msra.mxu0 0.0
    %4386 = vmatprep.subr.mxu0 0.0
    %4387 = vmatpush1.msra.mxu0 0.0
    %4388 = vmatprep.subr.mxu0 0.0
    %4389 = vmatpush1.msra.mxu0 0.0
    %4390 = vmatprep.subr.mxu0 0.0
    %4391 = vmatpush1.msra.mxu0 0.0
    %4392 = vmatprep.subr.mxu0 0.0
    %4393 = vmatpush1.msra.mxu0 0.0
    %4394 = vmatprep.subr.mxu0 0.0
    %4395 = vmatpush1.msra.mxu0 0.0
    %4396 = vmatprep.subr.mxu0 0.0
    %4397 = vmatpush1.msra.mxu0 0.0
    %4398 = vmatprep.subr.mxu0 0.0
    %4399 = vmatpush1.msra.mxu0 0.0
    %4400 = vmatprep.subr.mxu0 0.0
    %4401 = vmatpush1.msra.mxu0 0.0
    %4402 = vmatprep.subr.mxu0 0.0
    %4403 = vmatpush1.msra.mxu0 0.0
    %4404 = vmatprep.subr.mxu0 0.0
    %4405 = vmatpush1.msra.mxu0 0.0
    %4406 = vmatprep.subr.mxu0 0.0
    %4407 = vmatpush1.msra.mxu0 0.0
    %4408 = vmatprep.mubr.f32.mxu0 0.0
    %4409 = vmatmul.mubr.f32.gmra.mrb[0].mxu0 %v4324
    %v4410 = vpop.f32.mrb[0].mxu0
    %v4411 = vadd.f32 0.0, %v4410
    %v4412 = vpop.f32.mrb[0].mxu0
    %4413 = vdwg.mxu0
    %v4414 = vadd.f32 %v4251, %v4411
    %v4415 = vld [vmem:[%s18] sm:$0xff]
    %v4416 = vld [vmem:[%s18 + $0x8] sm:$0xff]
    %v4417 = vld [vmem:[%s18 + $0x10] sm:$0xff]
    %v4418 = vld [vmem:[%s18 + $0x18] sm:$0xff]
    %v4419 = vld [vmem:[%s18 + $0x20] sm:$0xff]
    %v4420 = vld [vmem:[%s18 + $0x28] sm:$0xff]
    %v4421 = vld [vmem:[%s18 + $0x30] sm:$0xff]
    %v4422 = vld [vmem:[%s18 + $0x38] sm:$0xff]
    %v4423 = vld [vmem:[%s18 + $0x40] sm:$0xff]
    %v4424 = vld [vmem:[%s18 + $0x48] sm:$0xff]
    %v4425 = vld [vmem:[%s18 + $0x50] sm:$0xff]
    %v4426 = vld [vmem:[%s18 + $0x58] sm:$0xff]
    %v4427 = vld [vmem:[%s18 + $0x60] sm:$0xff]
    %v4428 = vld [vmem:[%s18 + $0x68] sm:$0xff]
    %v4429 = vld [vmem:[%s18 + $0x70] sm:$0xff]
    %v4430 = vld [vmem:[%s18 + $0x78] sm:$0xff]
    %v4431 = vld [vmem:[#allocation22] sm:$0xff]
    %v4432 = vld [vmem:[#allocation22 + $0x8] sm:$0xff]
    %v4433 = vld [vmem:[#allocation22 + $0x10] sm:$0xff]
    %v4434 = vld [vmem:[#allocation22 + $0x18] sm:$0xff]
    %v4435 = vld [vmem:[#allocation22 + $0x20] sm:$0xff]
    %v4436 = vld [vmem:[#allocation22 + $0x28] sm:$0xff]
    %v4437 = vld [vmem:[#allocation22 + $0x30] sm:$0xff]
    %v4438 = vld [vmem:[#allocation22 + $0x38] sm:$0xff]
    %v4439 = vld [vmem:[#allocation23] sm:$0x1]
    %v4440 = vld [vmem:[#allocation25] sm:$0x1]
    %vm4441 = vcmask 1043456
    %v4442 = vsel %vm4441, %v4414, 0.0
    %v4443 = vrot.slane %v4442, 4
    %v4444 = vadd.f32 %v4442, %v4443
    %v4445 = vrot.slane %v4444, 2
    %v4446 = vadd.f32 %v4444, %v4445
    %v4447 = vrot.slane %v4446, 1
    %v4448 = vadd.f32 %v4446, %v4447
    %v4449 = vmul.f32 %v4414, %v4414
    %v4450 = vsel %vm4441, %v4449, 0.0
    %v4451 = vrot.slane %v4450, 4
    %v4452 = vadd.f32 %v4450, %v4451
    %v4453 = vrot.slane %v4452, 2
    %v4454 = vadd.f32 %v4452, %v4453
    %v4455 = vrot.slane %v4454, 1
    %v4456 = vadd.f32 %v4454, %v4455
    %4457 = vmatprep.subr.mxu0 0.0
    %4458 = vmatpush1.msra.mxu0 %v4415
    %4459 = vmatprep.subr.mxu0 0.0
    %4460 = vmatpush1.msra.mxu0 %v4416
    %4461 = vmatprep.subr.mxu0 0.0
    %4462 = vmatpush1.msra.mxu0 %v4417
    %4463 = vmatprep.subr.mxu0 0.0
    %4464 = vmatpush1.msra.mxu0 %v4418
    %4465 = vmatprep.subr.mxu0 0.0
    %4466 = vmatpush1.msra.mxu0 %v4419
    %4467 = vmatprep.subr.mxu0 0.0
    %4468 = vmatpush1.msra.mxu0 %v4420
    %4469 = vmatprep.subr.mxu0 0.0
    %4470 = vmatpush1.msra.mxu0 %v4421
    %4471 = vmatprep.subr.mxu0 0.0
    %4472 = vmatpush1.msra.mxu0 %v4422
    %4473 = vmatprep.subr.mxu0 0.0
    %4474 = vmatpush1.msra.mxu0 %v4423
    %4475 = vmatprep.subr.mxu0 0.0
    %4476 = vmatpush1.msra.mxu0 %v4424
    %4477 = vmatprep.subr.mxu0 0.0
    %4478 = vmatpush1.msra.mxu0 %v4425
    %4479 = vmatprep.subr.mxu0 0.0
    %4480 = vmatpush1.msra.mxu0 %v4426
    %4481 = vmatprep.subr.mxu0 0.0
    %4482 = vmatpush1.msra.mxu0 %v4427
    %4483 = vmatprep.subr.mxu0 0.0
    %4484 = vmatpush1.msra.mxu0 %v4428
    %4485 = vmatprep.subr.mxu0 0.0
    %4486 = vmatpush1.msra.mxu0 %v4429
    %4487 = vmatprep.subr.mxu0 0.0
    %4488 = vmatpush1.msra.mxu0 %v4430
    %4489 = vmatprep.subr.mxu0 0.0
    %4490 = vmatpush1.msra.mxu0 0.0
    %4491 = vmatprep.subr.mxu0 0.0
    %4492 = vmatpush1.msra.mxu0 0.0
    %4493 = vmatprep.subr.mxu0 0.0
    %4494 = vmatpush1.msra.mxu0 0.0
    %4495 = vmatprep.subr.mxu0 0.0
    %4496 = vmatpush1.msra.mxu0 0.0
    %4497 = vmatprep.subr.mxu0 0.0
    %4498 = vmatpush1.msra.mxu0 0.0
    %4499 = vmatprep.subr.mxu0 0.0
    %4500 = vmatpush1.msra.mxu0 0.0
    %4501 = vmatprep.subr.mxu0 0.0
    %4502 = vmatpush1.msra.mxu0 0.0
    %4503 = vmatprep.subr.mxu0 0.0
    %4504 = vmatpush1.msra.mxu0 0.0
    %4505 = vmatprep.subr.mxu0 0.0
    %4506 = vmatpush1.msra.mxu0 0.0
    %4507 = vmatprep.subr.mxu0 0.0
    %4508 = vmatpush1.msra.mxu0 0.0
    %4509 = vmatprep.subr.mxu0 0.0
    %4510 = vmatpush1.msra.mxu0 0.0
    %4511 = vmatprep.subr.mxu0 0.0
    %4512 = vmatpush1.msra.mxu0 0.0
    %4513 = vmatprep.subr.mxu0 0.0
    %4514 = vmatpush1.msra.mxu0 0.0
    %4515 = vmatprep.subr.mxu0 0.0
    %4516 = vmatpush1.msra.mxu0 0.0
    %4517 = vmatprep.subr.mxu0 0.0
    %4518 = vmatpush1.msra.mxu0 0.0
    %4519 = vmatprep.subr.mxu0 0.0
    %4520 = vmatpush1.msra.mxu0 0.0
    %4521 = vmatprep.mubr.f32.mxu0 0.0
    %4522 = vmatmul.mubr.f32.gmra.mrb[0].mxu0 %v4448
    %v4523 = vpop.f32.mrb[0].mxu0
    %v4524 = vadd.f32 0.0, %v4523
    %v4525 = vpop.f32.mrb[0].mxu0
    %4526 = vdwg.mxu0
    %v4527 = vmul.f32 %v4524, 0.125
    %4528 = vmatprep.subr.mxu0 0.0
    %4529 = vmatpush1.msra.mxu0 %v4415
    %4530 = vmatprep.subr.mxu0 0.0
    %4531 = vmatpush1.msra.mxu0 %v4416
    %4532 = vmatprep.subr.mxu0 0.0
    %4533 = vmatpush1.msra.mxu0 %v4417
    %4534 = vmatprep.subr.mxu0 0.0
    %4535 = vmatpush1.msra.mxu0 %v4418
    %4536 = vmatprep.subr.mxu0 0.0
    %4537 = vmatpush1.msra.mxu0 %v4419
    %4538 = vmatprep.subr.mxu0 0.0
    %4539 = vmatpush1.msra.mxu0 %v4420
    %4540 = vmatprep.subr.mxu0 0.0
    %4541 = vmatpush1.msra.mxu0 %v4421
    %4542 = vmatprep.subr.mxu0 0.0
    %4543 = vmatpush1.msra.mxu0 %v4422
    %4544 = vmatprep.subr.mxu0 0.0
    %4545 = vmatpush1.msra.mxu0 %v4423
    %4546 = vmatprep.subr.mxu0 0.0
    %4547 = vmatpush1.msra.mxu0 %v4424
    %4548 = vmatprep.subr.mxu0 0.0
    %4549 = vmatpush1.msra.mxu0 %v4425
    %4550 = vmatprep.subr.mxu0 0.0
    %4551 = vmatpush1.msra.mxu0 %v4426
    %4552 = vmatprep.subr.mxu0 0.0
    %4553 = vmatpush1.msra.mxu0 %v4427
    %4554 = vmatprep.subr.mxu0 0.0
    %4555 = vmatpush1.msra.mxu0 %v4428
    %4556 = vmatprep.subr.mxu0 0.0
    %4557 = vmatpush1.msra.mxu0 %v4429
    %4558 = vmatprep.subr.mxu0 0.0
    %4559 = vmatpush1.msra.mxu0 %v4430
    %4560 = vmatprep.subr.mxu0 0.0
    %4561 = vmatpush1.msra.mxu0 0.0
    %4562 = vmatprep.subr.mxu0 0.0
    %4563 = vmatpush1.msra.mxu0 0.0
    %4564 = vmatprep.subr.mxu0 0.0
    %4565 = vmatpush1.msra.mxu0 0.0
    %4566 = vmatprep.subr.mxu0 0.0
    %4567 = vmatpush1.msra.mxu0 0.0
    %4568 = vmatprep.subr.mxu0 0.0
    %4569 = vmatpush1.msra.mxu0 0.0
    %4570 = vmatprep.subr.mxu0 0.0
    %4571 = vmatpush1.msra.mxu0 0.0
    %4572 = vmatprep.subr.mxu0 0.0
    %4573 = vmatpush1.msra.mxu0 0.0
    %4574 = vmatprep.subr.mxu0 0.0
    %4575 = vmatpush1.msra.mxu0 0.0
    %4576 = vmatprep.subr.mxu0 0.0
    %4577 = vmatpush1.msra.mxu0 0.0
    %4578 = vmatprep.subr.mxu0 0.0
    %4579 = vmatpush1.msra.mxu0 0.0
    %4580 = vmatprep.subr.mxu0 0.0
    %4581 = vmatpush1.msra.mxu0 0.0
    %4582 = vmatprep.subr.mxu0 0.0
    %4583 = vmatpush1.msra.mxu0 0.0
    %4584 = vmatprep.subr.mxu0 0.0
    %4585 = vmatpush1.msra.mxu0 0.0
    %4586 = vmatprep.subr.mxu0 0.0
    %4587 = vmatpush1.msra.mxu0 0.0
    %4588 = vmatprep.subr.mxu0 0.0
    %4589 = vmatpush1.msra.mxu0 0.0
    %4590 = vmatprep.subr.mxu0 0.0
    %4591 = vmatpush1.msra.mxu0 0.0
    %4592 = vmatprep.mubr.f32.mxu0 0.0
    %4593 = vmatmul.mubr.f32.gmra.mrb[0].mxu0 %v4456
    %v4594 = vpop.f32.mrb[0].mxu0
    %v4595 = vadd.f32 0.0, %v4594
    %v4596 = vpop.f32.mrb[0].mxu0
    %4597 = vdwg.mxu0
    %v4598 = vmul.f32 %v4595, 0.125
    %v4599 = vmul.f32 %v4527, %v4527
    %v4600 = vsub.f32 %v4598, %v4599
    %v4601 = vmax.f32 %v4600, 0.0
    %v4602 = vadd.f32 %v4601, 1e-05
    %v4603 = vrsqrt.pop %v4602
    %v4604 = vmul.f32 %v4439, %v4603
    %v4605 = vmul.f32 %v4527, %v4604
    %v4606 = vsub.f32 %v4440, %v4605
    %v4608 = vsel %vm645, %v4604, 0
    %4610 = vmatprep.subr.mxu0 0.0
    %4611 = vmatpush1.msra.mxu0 %v4431
    %4612 = vmatprep.subr.mxu0 0.0
    %4613 = vmatpush1.msra.mxu0 %v4432
    %4614 = vmatprep.subr.mxu0 0.0
    %4615 = vmatpush1.msra.mxu0 %v4433
    %4616 = vmatprep.subr.mxu0 0.0
    %4617 = vmatpush1.msra.mxu0 %v4434
    %4618 = vmatprep.subr.mxu0 0.0
    %4619 = vmatpush1.msra.mxu0 %v4435
    %4620 = vmatprep.subr.mxu0 0.0
    %4621 = vmatpush1.msra.mxu0 %v4436
    %4622 = vmatprep.subr.mxu0 0.0
    %4623 = vmatpush1.msra.mxu0 %v4437
    %4624 = vmatprep.subr.mxu0 0.0
    %4625 = vmatpush1.msra.mxu0 %v4438
    %4626 = vmatprep.subr.mxu0 0.0
    %4627 = vmatpush1.msra.mxu0 0.0
    %4628 = vmatprep.subr.mxu0 0.0
    %4629 = vmatpush1.msra.mxu0 0.0
    %4630 = vmatprep.subr.mxu0 0.0
    %4631 = vmatpush1.msra.mxu0 0.0
    %4632 = vmatprep.subr.mxu0 0.0
    %4633 = vmatpush1.msra.mxu0 0.0
    %4634 = vmatprep.subr.mxu0 0.0
    %4635 = vmatpush1.msra.mxu0 0.0
    %4636 = vmatprep.subr.mxu0 0.0
    %4637 = vmatpush1.msra.mxu0 0.0
    %4638 = vmatprep.subr.mxu0 0.0
    %4639 = vmatpush1.msra.mxu0 0.0
    %4640 = vmatprep.subr.mxu0 0.0
    %4641 = vmatpush1.msra.mxu0 0.0
    %4642 = vmatprep.subr.mxu0 0.0
    %4643 = vmatpush1.msra.mxu0 0.0
    %4644 = vmatprep.subr.mxu0 0.0
    %4645 = vmatpush1.msra.mxu0 0.0
    %4646 = vmatprep.subr.mxu0 0.0
    %4647 = vmatpush1.msra.mxu0 0.0
    %4648 = vmatprep.subr.mxu0 0.0
    %4649 = vmatpush1.msra.mxu0 0.0
    %4650 = vmatprep.subr.mxu0 0.0
    %4651 = vmatpush1.msra.mxu0 0.0
    %4652 = vmatprep.subr.mxu0 0.0
    %4653 = vmatpush1.msra.mxu0 0.0
    %4654 = vmatprep.subr.mxu0 0.0
    %4655 = vmatpush1.msra.mxu0 0.0
    %4656 = vmatprep.subr.mxu0 0.0
    %4657 = vmatpush1.msra.mxu0 0.0
    %4658 = vmatprep.subr.mxu0 0.0
    %4659 = vmatpush1.msra.mxu0 0.0
    %4660 = vmatprep.subr.mxu0 0.0
    %4661 = vmatpush1.msra.mxu0 0.0
    %4662 = vmatprep.subr.mxu0 0.0
    %4663 = vmatpush1.msra.mxu0 0.0
    %4664 = vmatprep.subr.mxu0 0.0
    %4665 = vmatpush1.msra.mxu0 0.0
    %4666 = vmatprep.subr.mxu0 0.0
    %4667 = vmatpush1.msra.mxu0 0.0
    %4668 = vmatprep.subr.mxu0 0.0
    %4669 = vmatpush1.msra.mxu0 0.0
    %4670 = vmatprep.subr.mxu0 0.0
    %4671 = vmatpush1.msra.mxu0 0.0
    %4672 = vmatprep.subr.mxu0 0.0
    %4673 = vmatpush1.msra.mxu0 0.0
    %4674 = vmatprep.mubr.f32.mxu0 0.0
    %4675 = vmatmul.mubr.f32.gmra.mrb[0].mxu0 %v4608
    %v4676 = vpop.f32.mrb[0].mxu0
    %v4677 = vadd.f32 0.0, %v4676
    %v4678 = vpop.f32.mrb[0].mxu0
    %4679 = vdwg.mxu0
    %v4681 = vsel %vm645, %v4606, 0
    %4683 = vmatprep.subr.mxu0 0.0
    %4684 = vmatpush1.msra.mxu0 %v4431
    %4685 = vmatprep.subr.mxu0 0.0
    %4686 = vmatpush1.msra.mxu0 %v4432
    %4687 = vmatprep.subr.mxu0 0.0
    %4688 = vmatpush1.msra.mxu0 %v4433
    %4689 = vmatprep.subr.mxu0 0.0
    %4690 = vmatpush1.msra.mxu0 %v4434
    %4691 = vmatprep.subr.mxu0 0.0
    %4692 = vmatpush1.msra.mxu0 %v4435
    %4693 = vmatprep.subr.mxu0 0.0
    %4694 = vmatpush1.msra.mxu0 %v4436
    %4695 = vmatprep.subr.mxu0 0.0
    %4696 = vmatpush1.msra.mxu0 %v4437
    %4697 = vmatprep.subr.mxu0 0.0
    %4698 = vmatpush1.msra.mxu0 %v4438
    %4699 = vmatprep.subr.mxu0 0.0
    %4700 = vmatpush1.msra.mxu0 0.0
    %4701 = vmatprep.subr.mxu0 0.0
    %4702 = vmatpush1.msra.mxu0 0.0
    %4703 = vmatprep.subr.mxu0 0.0
    %4704 = vmatpush1.msra.mxu0 0.0
    %4705 = vmatprep.subr.mxu0 0.0
    %4706 = vmatpush1.msra.mxu0 0.0
    %4707 = vmatprep.subr.mxu0 0.0
    %4708 = vmatpush1.msra.mxu0 0.0
    %4709 = vmatprep.subr.mxu0 0.0
    %4710 = vmatpush1.msra.mxu0 0.0
    %4711 = vmatprep.subr.mxu0 0.0
    %4712 = vmatpush1.msra.mxu0 0.0
    %4713 = vmatprep.subr.mxu0 0.0
    %4714 = vmatpush1.msra.mxu0 0.0
    %4715 = vmatprep.subr.mxu0 0.0
    %4716 = vmatpush1.msra.mxu0 0.0
    %4717 = vmatprep.subr.mxu0 0.0
    %4718 = vmatpush1.msra.mxu0 0.0
    %4719 = vmatprep.subr.mxu0 0.0
    %4720 = vmatpush1.msra.mxu0 0.0
    %4721 = vmatprep.subr.mxu0 0.0
    %4722 = vmatpush1.msra.mxu0 0.0
    %4723 = vmatprep.subr.mxu0 0.0
    %4724 = vmatpush1.msra.mxu0 0.0
    %4725 = vmatprep.subr.mxu0 0.0
    %4726 = vmatpush1.msra.mxu0 0.0
    %4727 = vmatprep.subr.mxu0 0.0
    %4728 = vmatpush1.msra.mxu0 0.0
    %4729 = vmatprep.subr.mxu0 0.0
    %4730 = vmatpush1.msra.mxu0 0.0
    %4731 = vmatprep.subr.mxu0 0.0
    %4732 = vmatpush1.msra.mxu0 0.0
    %4733 = vmatprep.subr.mxu0 0.0
    %4734 = vmatpush1.msra.mxu0 0.0
    %4735 = vmatprep.subr.mxu0 0.0
    %4736 = vmatpush1.msra.mxu0 0.0
    %4737 = vmatprep.subr.mxu0 0.0
    %4738 = vmatpush1.msra.mxu0 0.0
    %4739 = vmatprep.subr.mxu0 0.0
    %4740 = vmatpush1.msra.mxu0 0.0
    %4741 = vmatprep.subr.mxu0 0.0
    %4742 = vmatpush1.msra.mxu0 0.0
    %4743 = vmatprep.subr.mxu0 0.0
    %4744 = vmatpush1.msra.mxu0 0.0
    %4745 = vmatprep.subr.mxu0 0.0
    %4746 = vmatpush1.msra.mxu0 0.0
    %4747 = vmatprep.mubr.f32.mxu0 0.0
    %4748 = vmatmul.mubr.f32.gmra.mrb[0].mxu0 %v4681
    %v4749 = vpop.f32.mrb[0].mxu0
    %v4750 = vadd.f32 0.0, %v4749
    %v4751 = vpop.f32.mrb[0].mxu0
    %4752 = vdwg.mxu0
    %v4753 = vlaneseq
    %v4754 = vshrl.u32 %v4753, 7
    %v4755 = vsub.s32 0, %v4754
    %v4756 = vrot.slane %v4677, %v4755
    %v4757 = vmul.f32 %v4414, %v4756
    %v4758 = vlaneseq
    %v4759 = vshrl.u32 %v4758, 7
    %v4760 = vsub.s32 0, %v4759
    %v4761 = vrot.slane %v4750, %v4760
    %v4762 = vadd.f32 %v4757, %v4761
    %vm4763 = vcmp.gt.f32.partialorder %v4762, 0.0
    %v4764 = vmul.f32 %v4762, 0.2
    %v4765 = vsel %vm4763, %v4762, %v4764
    %v4766 = vld [vmem:[%s22] sm:$0x3]
    %vm4767 = vcmask 31744
    %v4769 = vsel %vm4767, %v4766, 0
    %v4772 = vsel %vm4441, %v4765, 0
    %4774 = vmatprep.subr.mxu0 0.0
    %4775 = vmatpush1.msra.mxu0 %v4772
    %4776 = vmatprep.subr.mxu0 0.0
    %4777 = vmatpush1.msra.mxu0 0.0
    %4778 = vmatprep.subr.mxu0 0.0
    %4779 = vmatpush1.msra.mxu0 0.0
    %4780 = vmatprep.subr.mxu0 0.0
    %4781 = vmatpush1.msra.mxu0 0.0
    %4782 = vmatprep.subr.mxu0 0.0
    %4783 = vmatpush1.msra.mxu0 0.0
    %4784 = vmatprep.subr.mxu0 0.0
    %4785 = vmatpush1.msra.mxu0 0.0
    %4786 = vmatprep.subr.mxu0 0.0
    %4787 = vmatpush1.msra.mxu0 0.0
    %4788 = vmatprep.subr.mxu0 0.0
    %4789 = vmatpush1.msra.mxu0 0.0
    %4790 = vmatprep.subr.mxu0 0.0
    %4791 = vmatpush1.msra.mxu0 0.0
    %4792 = vmatprep.subr.mxu0 0.0
    %4793 = vmatpush1.msra.mxu0 0.0
    %4794 = vmatprep.subr.mxu0 0.0
    %4795 = vmatpush1.msra.mxu0 0.0
    %4796 = vmatprep.subr.mxu0 0.0
    %4797 = vmatpush1.msra.mxu0 0.0
    %4798 = vmatprep.subr.mxu0 0.0
    %4799 = vmatpush1.msra.mxu0 0.0
    %4800 = vmatprep.subr.mxu0 0.0
    %4801 = vmatpush1.msra.mxu0 0.0
    %4802 = vmatprep.subr.mxu0 0.0
    %4803 = vmatpush1.msra.mxu0 0.0
    %4804 = vmatprep.subr.mxu0 0.0
    %4805 = vmatpush1.msra.mxu0 0.0
    %4806 = vmatprep.subr.mxu0 0.0
    %4807 = vmatpush1.msra.mxu0 0.0
    %4808 = vmatprep.subr.mxu0 0.0
    %4809 = vmatpush1.msra.mxu0 0.0
    %4810 = vmatprep.subr.mxu0 0.0
    %4811 = vmatpush1.msra.mxu0 0.0
    %4812 = vmatprep.subr.mxu0 0.0
    %4813 = vmatpush1.msra.mxu0 0.0
    %4814 = vmatprep.subr.mxu0 0.0
    %4815 = vmatpush1.msra.mxu0 0.0
    %4816 = vmatprep.subr.mxu0 0.0
    %4817 = vmatpush1.msra.mxu0 0.0
    %4818 = vmatprep.subr.mxu0 0.0
    %4819 = vmatpush1.msra.mxu0 0.0
    %4820 = vmatprep.subr.mxu0 0.0
    %4821 = vmatpush1.msra.mxu0 0.0
    %4822 = vmatprep.subr.mxu0 0.0
    %4823 = vmatpush1.msra.mxu0 0.0
    %4824 = vmatprep.subr.mxu0 0.0
    %4825 = vmatpush1.msra.mxu0 0.0
    %4826 = vmatprep.subr.mxu0 0.0
    %4827 = vmatpush1.msra.mxu0 0.0
    %4828 = vmatprep.subr.mxu0 0.0
    %4829 = vmatpush1.msra.mxu0 0.0
    %4830 = vmatprep.subr.mxu0 0.0
    %4831 = vmatpush1.msra.mxu0 0.0
    %4832 = vmatprep.subr.mxu0 0.0
    %4833 = vmatpush1.msra.mxu0 0.0
    %4834 = vmatprep.subr.mxu0 0.0
    %4835 = vmatpush1.msra.mxu0 0.0
    %4836 = vmatprep.subr.mxu0 0.0
    %4837 = vmatpush1.msra.mxu0 0.0
    %4838 = vmatprep.mubr.f32.mxu0 0.0
    %4839 = vmatmul.mubr.f32.gmra.mrb[0].mxu0 %v4769
    %v4840 = vpop.f32.mrb[0].mxu0
    %v4841 = vadd.f32 0.0, %v4840
    %v4842 = vpop.f32.mrb[0].mxu0
    %4843 = vdwg.mxu0
    %v4844 = vld [vmem:[%s23] sm:$0xff]
    %v4845 = vld [vmem:[%s23 + $0x8] sm:$0xff]
    %v4846 = vld [vmem:[%s23 + $0x10] sm:$0xff]
    %v4847 = vld [vmem:[%s23 + $0x18] sm:$0xff]
    %v4848 = vld [vmem:[%s23 + $0x20] sm:$0xff]
    %v4849 = vld [vmem:[%s23 + $0x28] sm:$0xff]
    %v4850 = vld [vmem:[%s23 + $0x30] sm:$0xff]
    %v4851 = vld [vmem:[%s23 + $0x38] sm:$0xff]
    %v4852 = vld [vmem:[%s23 + $0x40] sm:$0xff]
    %v4853 = vld [vmem:[%s23 + $0x48] sm:$0xff]
    %v4854 = vld [vmem:[%s23 + $0x50] sm:$0xff]
    %v4855 = vld [vmem:[%s23 + $0x58] sm:$0xff]
    %v4856 = vld [vmem:[%s23 + $0x60] sm:$0xff]
    %v4857 = vld [vmem:[%s23 + $0x68] sm:$0xff]
    %v4858 = vld [vmem:[%s23 + $0x70] sm:$0xff]
    %v4859 = vld [vmem:[%s23 + $0x78] sm:$0xff]
    %s4860 = scalar_lea.vmem %s22, 2
    %v4861 = vld [vmem:[%s4860] sm:$0x3]
    %v4863 = vsel %vm4767, %v4861, 0
    %4865 = vmatprep.subr.mxu0 0.0
    %4866 = vmatpush1.msra.mxu0 %v4772
    %4867 = vmatprep.subr.mxu0 0.0
    %4868 = vmatpush1.msra.mxu0 0.0
    %4869 = vmatprep.subr.mxu0 0.0
    %4870 = vmatpush1.msra.mxu0 0.0
    %4871 = vmatprep.subr.mxu0 0.0
    %4872 = vmatpush1.msra.mxu0 0.0
    %4873 = vmatprep.subr.mxu0 0.0
    %4874 = vmatpush1.msra.mxu0 0.0
    %4875 = vmatprep.subr.mxu0 0.0
    %4876 = vmatpush1.msra.mxu0 0.0
    %4877 = vmatprep.subr.mxu0 0.0
    %4878 = vmatpush1.msra.mxu0 0.0
    %4879 = vmatprep.subr.mxu0 0.0
    %4880 = vmatpush1.msra.mxu0 0.0
    %4881 = vmatprep.subr.mxu0 0.0
    %4882 = vmatpush1.msra.mxu0 0.0
    %4883 = vmatprep.subr.mxu0 0.0
    %4884 = vmatpush1.msra.mxu0 0.0
    %4885 = vmatprep.subr.mxu0 0.0
    %4886 = vmatpush1.msra.mxu0 0.0
    %4887 = vmatprep.subr.mxu0 0.0
    %4888 = vmatpush1.msra.mxu0 0.0
    %4889 = vmatprep.subr.mxu0 0.0
    %4890 = vmatpush1.msra.mxu0 0.0
    %4891 = vmatprep.subr.mxu0 0.0
    %4892 = vmatpush1.msra.mxu0 0.0
    %4893 = vmatprep.subr.mxu0 0.0
    %4894 = vmatpush1.msra.mxu0 0.0
    %4895 = vmatprep.subr.mxu0 0.0
    %4896 = vmatpush1.msra.mxu0 0.0
    %4897 = vmatprep.subr.mxu0 0.0
    %4898 = vmatpush1.msra.mxu0 0.0
    %4899 = vmatprep.subr.mxu0 0.0
    %4900 = vmatpush1.msra.mxu0 0.0
    %4901 = vmatprep.subr.mxu0 0.0
    %4902 = vmatpush1.msra.mxu0 0.0
    %4903 = vmatprep.subr.mxu0 0.0
    %4904 = vmatpush1.msra.mxu0 0.0
    %4905 = vmatprep.subr.mxu0 0.0
    %4906 = vmatpush1.msra.mxu0 0.0
    %4907 = vmatprep.subr.mxu0 0.0
    %4908 = vmatpush1.msra.mxu0 0.0
    %4909 = vmatprep.subr.mxu0 0.0
    %4910 = vmatpush1.msra.mxu0 0.0
    %4911 = vmatprep.subr.mxu0 0.0
    %4912 = vmatpush1.msra.mxu0 0.0
    %4913 = vmatprep.subr.mxu0 0.0
    %4914 = vmatpush1.msra.mxu0 0.0
    %4915 = vmatprep.subr.mxu0 0.0
    %4916 = vmatpush1.msra.mxu0 0.0
    %4917 = vmatprep.subr.mxu0 0.0
    %4918 = vmatpush1.msra.mxu0 0.0
    %4919 = vmatprep.subr.mxu0 0.0
    %4920 = vmatpush1.msra.mxu0 0.0
    %4921 = vmatprep.subr.mxu0 0.0
    %4922 = vmatpush1.msra.mxu0 0.0
    %4923 = vmatprep.subr.mxu0 0.0
    %4924 = vmatpush1.msra.mxu0 0.0
    %4925 = vmatprep.subr.mxu0 0.0
    %4926 = vmatpush1.msra.mxu0 0.0
    %4927 = vmatprep.subr.mxu0 0.0
    %4928 = vmatpush1.msra.mxu0 0.0
    %4929 = vmatprep.mubr.f32.mxu0 0.0
    %4930 = vmatmul.mubr.f32.gmra.mrb[0].mxu0 %v4863
    %v4931 = vpop.f32.mrb[0].mxu0
    %v4932 = vadd.f32 0.0, %v4931
    %v4933 = vpop.f32.mrb[0].mxu0
    %4934 = vdwg.mxu0
    %s4935 = scalar_lea.vmem %s23, 128
    %v4936 = vld [vmem:[%s4935] sm:$0xff]
    %v4937 = vld [vmem:[%s4935 + $0x8] sm:$0xff]
    %v4938 = vld [vmem:[%s4935 + $0x10] sm:$0xff]
    %v4939 = vld [vmem:[%s4935 + $0x18] sm:$0xff]
    %v4940 = vld [vmem:[%s4935 + $0x20] sm:$0xff]
    %v4941 = vld [vmem:[%s4935 + $0x28] sm:$0xff]
    %v4942 = vld [vmem:[%s4935 + $0x30] sm:$0xff]
    %v4943 = vld [vmem:[%s4935 + $0x38] sm:$0xff]
    %v4944 = vld [vmem:[%s4935 + $0x40] sm:$0xff]
    %v4945 = vld [vmem:[%s4935 + $0x48] sm:$0xff]
    %v4946 = vld [vmem:[%s4935 + $0x50] sm:$0xff]
    %v4947 = vld [vmem:[%s4935 + $0x58] sm:$0xff]
    %v4948 = vld [vmem:[%s4935 + $0x60] sm:$0xff]
    %v4949 = vld [vmem:[%s4935 + $0x68] sm:$0xff]
    %v4950 = vld [vmem:[%s4935 + $0x70] sm:$0xff]
    %v4951 = vld [vmem:[%s4935 + $0x78] sm:$0xff]
    %4952 = vmatprep.subr.mxu0 0.0
    %4953 = vmatpush1.msra.mxu0 %v4936
    %4954 = vmatprep.subr.mxu0 0.0
    %4955 = vmatpush1.msra.mxu0 %v4937
    %4956 = vmatprep.subr.mxu0 0.0
    %4957 = vmatpush1.msra.mxu0 %v4938
    %4958 = vmatprep.subr.mxu0 0.0
    %4959 = vmatpush1.msra.mxu0 %v4939
    %4960 = vmatprep.subr.mxu0 0.0
    %4961 = vmatpush1.msra.mxu0 %v4940
    %4962 = vmatprep.subr.mxu0 0.0
    %4963 = vmatpush1.msra.mxu0 %v4941
    %4964 = vmatprep.subr.mxu0 0.0
    %4965 = vmatpush1.msra.mxu0 %v4942
    %4966 = vmatprep.subr.mxu0 0.0
    %4967 = vmatpush1.msra.mxu0 %v4943
    %4968 = vmatprep.subr.mxu0 0.0
    %4969 = vmatpush1.msra.mxu0 %v4944
    %4970 = vmatprep.subr.mxu0 0.0
    %4971 = vmatpush1.msra.mxu0 %v4945
    %4972 = vmatprep.subr.mxu0 0.0
    %4973 = vmatpush1.msra.mxu0 %v4946
    %4974 = vmatprep.subr.mxu0 0.0
    %4975 = vmatpush1.msra.mxu0 %v4947
    %4976 = vmatprep.subr.mxu0 0.0
    %4977 = vmatpush1.msra.mxu0 %v4948
    %4978 = vmatprep.subr.mxu0 0.0
    %4979 = vmatpush1.msra.mxu0 %v4949
    %4980 = vmatprep.subr.mxu0 0.0
    %4981 = vmatpush1.msra.mxu0 %v4950
    %4982 = vmatprep.subr.mxu0 0.0
    %4983 = vmatpush1.msra.mxu0 %v4951
    %4984 = vmatprep.subr.mxu0 0.0
    %4985 = vmatpush1.msra.mxu0 0.0
    %4986 = vmatprep.subr.mxu0 0.0
    %4987 = vmatpush1.msra.mxu0 0.0
    %4988 = vmatprep.subr.mxu0 0.0
    %4989 = vmatpush1.msra.mxu0 0.0
    %4990 = vmatprep.subr.mxu0 0.0
    %4991 = vmatpush1.msra.mxu0 0.0
    %4992 = vmatprep.subr.mxu0 0.0
    %4993 = vmatpush1.msra.mxu0 0.0
    %4994 = vmatprep.subr.mxu0 0.0
    %4995 = vmatpush1.msra.mxu0 0.0
    %4996 = vmatprep.subr.mxu0 0.0
    %4997 = vmatpush1.msra.mxu0 0.0
    %4998 = vmatprep.subr.mxu0 0.0
    %4999 = vmatpush1.msra.mxu0 0.0
    %5000 = vmatprep.subr.mxu0 0.0
    %5001 = vmatpush1.msra.mxu0 0.0
    %5002 = vmatprep.subr.mxu0 0.0
    %5003 = vmatpush1.msra.mxu0 0.0
    %5004 = vmatprep.subr.mxu0 0.0
    %5005 = vmatpush1.msra.mxu0 0.0
    %5006 = vmatprep.subr.mxu0 0.0
    %5007 = vmatpush1.msra.mxu0 0.0
    %5008 = vmatprep.subr.mxu0 0.0
    %5009 = vmatpush1.msra.mxu0 0.0
    %5010 = vmatprep.subr.mxu0 0.0
    %5011 = vmatpush1.msra.mxu0 0.0
    %5012 = vmatprep.subr.mxu0 0.0
    %5013 = vmatpush1.msra.mxu0 0.0
    %5014 = vmatprep.subr.mxu0 0.0
    %5015 = vmatpush1.msra.mxu0 0.0
    %5016 = vmatprep.mubr.f32.mxu0 0.0
    %5017 = vmatmul.mubr.f32.gmra.mrb[0].mxu0 %v4932
    %v5018 = vpop.f32.mrb[0].mxu0
    %v5019 = vadd.f32 0.0, %v5018
    %v5020 = vpop.f32.mrb[0].mxu0
    %5021 = vdwg.mxu0
    %5022 = vmatprep.subr.mxu0 0.0
    %5023 = vmatpush1.msra.mxu0 %v4844
    %5024 = vmatprep.subr.mxu0 0.0
    %5025 = vmatpush1.msra.mxu0 %v4845
    %5026 = vmatprep.subr.mxu0 0.0
    %5027 = vmatpush1.msra.mxu0 %v4846
    %5028 = vmatprep.subr.mxu0 0.0
    %5029 = vmatpush1.msra.mxu0 %v4847
    %5030 = vmatprep.subr.mxu0 0.0
    %5031 = vmatpush1.msra.mxu0 %v4848
    %5032 = vmatprep.subr.mxu0 0.0
    %5033 = vmatpush1.msra.mxu0 %v4849
    %5034 = vmatprep.subr.mxu0 0.0
    %5035 = vmatpush1.msra.mxu0 %v4850
    %5036 = vmatprep.subr.mxu0 0.0
    %5037 = vmatpush1.msra.mxu0 %v4851
    %5038 = vmatprep.subr.mxu0 0.0
    %5039 = vmatpush1.msra.mxu0 %v4852
    %5040 = vmatprep.subr.mxu0 0.0
    %5041 = vmatpush1.msra.mxu0 %v4853
    %5042 = vmatprep.subr.mxu0 0.0
    %5043 = vmatpush1.msra.mxu0 %v4854
    %5044 = vmatprep.subr.mxu0 0.0
    %5045 = vmatpush1.msra.mxu0 %v4855
    %5046 = vmatprep.subr.mxu0 0.0
    %5047 = vmatpush1.msra.mxu0 %v4856
    %5048 = vmatprep.subr.mxu0 0.0
    %5049 = vmatpush1.msra.mxu0 %v4857
    %5050 = vmatprep.subr.mxu0 0.0
    %5051 = vmatpush1.msra.mxu0 %v4858
    %5052 = vmatprep.subr.mxu0 0.0
    %5053 = vmatpush1.msra.mxu0 %v4859
    %5054 = vmatprep.subr.mxu0 0.0
    %5055 = vmatpush1.msra.mxu0 0.0
    %5056 = vmatprep.subr.mxu0 0.0
    %5057 = vmatpush1.msra.mxu0 0.0
    %5058 = vmatprep.subr.mxu0 0.0
    %5059 = vmatpush1.msra.mxu0 0.0
    %5060 = vmatprep.subr.mxu0 0.0
    %5061 = vmatpush1.msra.mxu0 0.0
    %5062 = vmatprep.subr.mxu0 0.0
    %5063 = vmatpush1.msra.mxu0 0.0
    %5064 = vmatprep.subr.mxu0 0.0
    %5065 = vmatpush1.msra.mxu0 0.0
    %5066 = vmatprep.subr.mxu0 0.0
    %5067 = vmatpush1.msra.mxu0 0.0
    %5068 = vmatprep.subr.mxu0 0.0
    %5069 = vmatpush1.msra.mxu0 0.0
    %5070 = vmatprep.subr.mxu0 0.0
    %5071 = vmatpush1.msra.mxu0 0.0
    %5072 = vmatprep.subr.mxu0 0.0
    %5073 = vmatpush1.msra.mxu0 0.0
    %5074 = vmatprep.subr.mxu0 0.0
    %5075 = vmatpush1.msra.mxu0 0.0
    %5076 = vmatprep.subr.mxu0 0.0
    %5077 = vmatpush1.msra.mxu0 0.0
    %5078 = vmatprep.subr.mxu0 0.0
    %5079 = vmatpush1.msra.mxu0 0.0
    %5080 = vmatprep.subr.mxu0 0.0
    %5081 = vmatpush1.msra.mxu0 0.0
    %5082 = vmatprep.subr.mxu0 0.0
    %5083 = vmatpush1.msra.mxu0 0.0
    %5084 = vmatprep.subr.mxu0 0.0
    %5085 = vmatpush1.msra.mxu0 0.0
    %5086 = vmatprep.mubr.f32.mxu0 0.0
    %5087 = vmatmul.mubr.f32.gmra.mrb[0].mxu0 %v4841
    %v5088 = vpop.f32.mrb[0].mxu0
    %v5089 = vadd.f32 %v5019, %v5088
    %v5090 = vpop.f32.mrb[0].mxu0
    %5091 = vdwg.mxu0
    %v5092 = vld [vmem:[#allocation2] sm:$0x1]
    %v5094 = vlaneseq
    %v5095 = vshrl.u32 %v5094, 7
    %v5096 = vsub.s32 0, %v5095
    %v5097 = vrot.slane %v5092, %v5096
    %v5099 = vadd.f32 %v5089, %v5097
    %v5100 = vxor.u32 %v5099, 2147483648
    %v5101 = vmul.f32 %v5100, 1.442695
    %v5102 = vpow.pop %v5101
    %v5103 = vadd.f32 %v5102, 1.0
    %v5104 = vrcp.pop %v5103
    %v5105 = vmul.f32 1.0, %v5104
    %vm5106 = vcmask 1024
    %5107 = vst.msk [vmem:[%s25] sm:$0x3] %vm5106, %v5105
    // Predicated region
    $region162: #{forward.1} parent=1 // pred_check
      _
    $region163: #{forward.1} parent=1 // pred_check_branch
      %5109 = sbr.rel (0) target = $region165
    $region164: #{forward.1} parent=1 // pred_region
      _
    $region165: #{forward.1} parent=1 // pred_fallthru
      _
    // Predicated region
    $region166: #{forward.1} parent=1 // pred_check
      _
    $region167: #{forward.1} parent=1 // pred_check_branch
      %5111 = sbr.rel (0) target = $region169
    $region168: #{forward.1} parent=1 // pred_region
      _
    $region169: #{forward.1} parent=1 // pred_fallthru
      _
    %5112 = vsyncpa [#allocation4], 1
    %5113 = vsyncpa [#allocation6], 1
    %5114 = vsyncpa [#allocation9], 1
    %5115 = vsyncpa [#allocation12], 1
    %5116 = vsyncpa [#allocation15], 1
    %5117 = vsyncpa [#allocation18], 1
    %5118 = vsyncpa [#allocation21], 1
    %5119 = vsyncpa [#allocation24], 1

</llo_original>
